<compile_context>
chip_gen: v7x
topology: tpu7x:2x2x1
jax: 0.10.0
libtpu: 0.0.40
codegen_flags: <defaults>
</compile_context>

<pallas_src>
import math

import jax
import jax.numpy as jnp
from jax.experimental import pallas as pl
from jax.experimental.pallas import tpu as pltpu


def age_encoding_kernel(x_ref, div_ref, off_ref, w_ref, o_ref):
    # x_ref:   (tm, 1)          ages (f32)
    # div_ref: (1, n_embd)      [div/365.25, div/365.25]
    # off_ref: (1, n_embd)      [0,...,0, pi/2,...,pi/2]
    # w_ref:   (n_embd, n_embd) vstack(W[:,0::2].T, W[:,1::2].T)
    # o_ref:   (tm, n_embd)
    arg = x_ref[...] * div_ref[...] + off_ref[...]      # (tm, n_embd), VPU
    feats = jnp.sin(arg)                                 # EUP: [sin | cos]
    out = jnp.dot(feats.astype(w_ref.dtype), w_ref[...],
                  preferred_element_type=jnp.float32)    # single MXU pass
    o_ref[...] = out.astype(o_ref.dtype)


def age_encoding(x, div_term, w_linear, *, tm=256,
                 weight_dtype=jnp.float32, out_dtype=jnp.float32):
    """x: [T, B, 1] float32 ages; div_term: [n_embd//2]; w_linear:
    [n_embd, n_embd] (PyTorch nn.Linear weight, out = y @ w_linear.T).
    Returns [T, B, n_embd].  Set weight_dtype/out_dtype=jnp.bfloat16 on
    v6e/v7x to halve weight DMA and output HBM traffic (f32 accumulation)."""
    T, B, _ = x.shape
    n_embd = w_linear.shape[0]
    half = div_term.shape[0]
    assert 2 * half == n_embd

    M = T * B
    n_tiles = pl.cdiv(M, tm)
    M_pad = n_tiles * tm

    # ----- host-side parameter glue (pure layout/scale prep) -----
    x_flat = x.reshape(M, 1).astype(jnp.float32)
    if M_pad != M:
        x_flat = jnp.pad(x_flat, ((0, M_pad - M), (0, 0)))

    scaled_div = (div_term.astype(jnp.float32) / 365.25)
    div_cat = jnp.concatenate([scaled_div, scaled_div]).reshape(1, n_embd)
    offs = jnp.concatenate([
        jnp.zeros((half,), jnp.float32),
        jnp.full((half,), math.pi / 2, jnp.float32)]).reshape(1, n_embd)
    # even y slots get sin, odd get cos -> split columns of W accordingly and
    # stack so a single [sin | cos] @ w_cat reproduces the interleaved y @ W.T
    w_cat = jnp.concatenate(
        [w_linear[:, 0::2].T, w_linear[:, 1::2].T], axis=0).astype(weight_dtype)

    cost = pl.CostEstimate(
        flops=2 * M_pad * n_embd * n_embd,
        transcendentals=M_pad * n_embd,
        bytes_accessed=(M_pad * 4                       # ages in
                        + 2 * n_embd * 4                # div/offset rows
                        + n_embd * n_embd * jnp.dtype(weight_dtype).itemsize
                        + M_pad * n_embd * jnp.dtype(out_dtype).itemsize))

    out_flat = pl.pallas_call(
        age_encoding_kernel,
        out_shape=jax.ShapeDtypeStruct((M_pad, n_embd), out_dtype),
        grid_spec=pltpu.PrefetchScalarGridSpec(
            num_scalar_prefetch=0,
            grid=(n_tiles,),
            in_specs=[
                pl.BlockSpec((tm, 1), lambda i: (i, 0)),
                pl.BlockSpec((1, n_embd), lambda i: (0, 0)),
                pl.BlockSpec((1, n_embd), lambda i: (0, 0)),
                pl.BlockSpec((n_embd, n_embd), lambda i: (0, 0)),
            ],
            out_specs=pl.BlockSpec((tm, n_embd), lambda i: (i, 0)),
        ),
        compiler_params=pltpu.CompilerParams(
            dimension_semantics=("parallel",)),
        cost_estimate=cost,
    )(x_flat, div_cat, offs, w_cat)

    return out_flat[:M].reshape(T, B, n_embd)


def age_encoding_ref(x, div_term, w_linear):
    """Pure-JAX reference mirroring the PyTorch forward (interleaved y)."""
    T, B, _ = x.shape
    n_embd = w_linear.shape[0]
    arg = (x / 365.25) * div_term[None, None, :]   # (T, B, half)
    y = jnp.zeros((T, B, n_embd), jnp.float32)
    y = y.at[..., 0::2].set(jnp.sin(arg))
    y = y.at[..., 1::2].set(jnp.cos(arg))
    return y @ w_linear.T


if __name__ == "__main__":
    n_embd = 32
    half = n_embd // 2
    # small but non-tile-aligned M = T*B = 288 -> pads to 512, grid of 2 tiles
    T, B = 48, 6

    key = jax.random.PRNGKey(0)
    k_x, k_w = jax.random.split(key)

    # deterministic parameter init (synthetic, not a checkpoint load)
    div_term = jnp.exp(
        jnp.arange(0, n_embd, 2, dtype=jnp.float32)
        * (-math.log(10000.0) / n_embd))
    w_linear = (jax.random.normal(k_w, (n_embd, n_embd), jnp.float32)
                * (1.0 / math.sqrt(n_embd)))

    # ages in days, e.g. 0..~36500
    x = jax.random.uniform(k_x, (T, B, 1), jnp.float32, 0.0, 36500.0)

    out = age_encoding(x, div_term, w_linear)
    out = jax.block_until_ready(out)

    ref = age_encoding_ref(x, div_term, w_linear)
    assert out.shape == (T, B, n_embd)
    assert jnp.allclose(out, ref, atol=1e-3, rtol=1e-3)

    print("KERNEL_OK")
</pallas_src>

<mosaic_0001>
module attributes {stable_mosaic.version = 11 : i64} {
  func.func @age_encoding_kernel(%arg0: i32, %arg1: memref<256x1xf32, #tpu.memory_space<vmem>>, %arg2: memref<1x32xf32, #tpu.memory_space<vmem>>, %arg3: memref<1x32xf32, #tpu.memory_space<vmem>>, %arg4: memref<32x32xf32, #tpu.memory_space<vmem>>, %arg5: memref<256x32xf32, #tpu.memory_space<vmem>>) attributes {dimension_semantics = [#tpu.dimension_semantics<parallel>], iteration_bounds = array<i64: 2>, scalar_prefetch = 0 : i64, scratch_operands = 0 : i64, tpu.core_type = #tpu.core_type<tc>, window_params = [{transform_indices = @transform_0, window_bounds = array<i64: 256, 1>}, {pipeline_mode = #tpu.pipeline_mode<synchronous>, transform_indices = @transform_1, window_bounds = array<i64: 1, 32>}, {pipeline_mode = #tpu.pipeline_mode<synchronous>, transform_indices = @transform_2, window_bounds = array<i64: 1, 32>}, {pipeline_mode = #tpu.pipeline_mode<synchronous>, transform_indices = @transform_3, window_bounds = array<i64: 32, 32>}, {transform_indices = @transform_4, window_bounds = array<i64: 256, 32>}]} {
    %c0 = arith.constant 0 : index
    %c0_0 = arith.constant 0 : index
    %0 = vector.load %arg1[%c0, %c0_0] : memref<256x1xf32, #tpu.memory_space<vmem>>, vector<256x1xf32>
    %c0_1 = arith.constant 0 : index
    %c0_2 = arith.constant 0 : index
    %1 = vector.load %arg2[%c0_1, %c0_2] : memref<1x32xf32, #tpu.memory_space<vmem>>, vector<1x32xf32>
    %2 = vector.broadcast %0 : vector<256x1xf32> to vector<256x32xf32>
    %3 = vector.broadcast %1 : vector<1x32xf32> to vector<256x32xf32>
    %4 = arith.mulf %2, %3 : vector<256x32xf32>
    %c0_3 = arith.constant 0 : index
    %c0_4 = arith.constant 0 : index
    %5 = vector.load %arg3[%c0_3, %c0_4] : memref<1x32xf32, #tpu.memory_space<vmem>>, vector<1x32xf32>
    %6 = vector.broadcast %5 : vector<1x32xf32> to vector<256x32xf32>
    %7 = arith.addf %4, %6 : vector<256x32xf32>
    %8 = math.sin %7 : vector<256x32xf32>
    %c0_5 = arith.constant 0 : index
    %c0_6 = arith.constant 0 : index
    %9 = vector.load %arg4[%c0_5, %c0_6] : memref<32x32xf32, #tpu.memory_space<vmem>>, vector<32x32xf32>
    %cst = arith.constant dense<0.000000e+00> : vector<256x32xf32>
    %10 = tpu.matmul %8, %9, %cst {dimension_numbers = #tpu.dot_dimension_numbers<[1], [0], [0], [1], [0, 0, 1, 1], [], []>} : vector<256x32xf32>, vector<32x32xf32>, vector<256x32xf32> -> vector<256x32xf32>
    %c0_7 = arith.constant 0 : index
    %c0_8 = arith.constant 0 : index
    %11 = vector.load %arg5[%c0_7, %c0_8] : memref<256x32xf32, #tpu.memory_space<vmem>>, vector<256x32xf32>
    tpu.vector_store %arg5[%c0_7, %c0_8], %10 {strides = array<i32>} : memref<256x32xf32, #tpu.memory_space<vmem>>, vector<256x32xf32>,
    return
  }
  func.func @transform_0(%arg0: i32) -> (i32, i32) {
    %c0_i32 = arith.constant 0 : i32
    %c0_i32_0 = arith.constant 0 : i32
    return %arg0, %c0_i32 : i32, i32
  }
  func.func @transform_1(%arg0: i32) -> (i32, i32) {
    %c0_i32 = arith.constant 0 : i32
    %c0_i32_0 = arith.constant 0 : i32
    %c0_i32_1 = arith.constant 0 : i32
    return %c0_i32, %c0_i32_0 : i32, i32
  }
  func.func @transform_2(%arg0: i32) -> (i32, i32) {
    %c0_i32 = arith.constant 0 : i32
    %c0_i32_0 = arith.constant 0 : i32
    %c0_i32_1 = arith.constant 0 : i32
    return %c0_i32, %c0_i32_0 : i32, i32
  }
  func.func @transform_3(%arg0: i32) -> (i32, i32) {
    %c0_i32 = arith.constant 0 : i32
    %c0_i32_0 = arith.constant 0 : i32
    %c0_i32_1 = arith.constant 0 : i32
    return %c0_i32, %c0_i32_0 : i32, i32
  }
  func.func @transform_4(%arg0: i32) -> (i32, i32) {
    %c0_i32 = arith.constant 0 : i32
    %c0_i32_0 = arith.constant 0 : i32
    return %arg0, %c0_i32 : i32, i32
  }
}

</mosaic_0001>

<llo_original>
// kernel: tpu_custom_call.1
$region0: #{tpu_custom_call.1}
  #allocation0 [shape = 'u32[]', space=smem, size = 0x4, offset = 0x4, fixed_abs, tag = 'smem constant byte address 0x4 - core index']
  #allocation1 [shape = 'u32[144,128]{1,0:T(1,128)}', space=vmem, size = 0x12000, scoped, tag = 'internal scratch']
  %s0 = inlined_call_operand.vmem [shape: f32[512,1], index: 0, kind: input, shape index: {}]
  %s1 = inlined_call_operand.vmem [shape: f32[1,32], index: 1, kind: input, shape index: {}]
  %s2 = inlined_call_operand.vmem [shape: f32[1,32], index: 2, kind: input, shape index: {}]
  %s3 = inlined_call_operand.vmem [shape: f32[32,32], index: 3, kind: input, shape index: {}]
  %s4 = inlined_call_operand.vmem [shape: f32[512,32], index: 4, kind: output, shape index: {}]
  %s5 = sld [smem:[#allocation0]]
  $region49: #{tpu_custom_call.1} parent=0
    _
  %s7 = ssub.s32 1, %s5
  %s8 = scalar_select 0, %s7, %s5
  loop: start=0, step=1, limit=4
  $region2: #{tpu_custom_call.1} parent=0 // loop_pre_header
    _
  $region3: #{tpu_custom_call.1} parent=0 // loop_header
    %s10 = sphi 0, %s14
    %p11 = scmp.ge.s32.totalorder %s10, 4
    %s20 = sphi 0, %s22
    %s23 = sphi 0, %s20
    %s24 = sphi 0, %s23
    %s40 = sphi 0, %s24
    %s44 = sphi 0, %s44
    %s46 = sphi 0, %s44
    %s47 = sphi 0, %s46
    %s61 = sphi 0, %s47
    %s65 = sphi 0, %s65
    %s67 = sphi 0, %s65
    %s68 = sphi 0, %s67
    %s82 = sphi 0, %s68
    %s86 = sphi 0, %s86
    %s88 = sphi 0, %s86
    %s89 = sphi 0, %s88
    %s103 = sphi 0, %s89
    %s109 = sphi 0, %s111
    %s112 = sphi 0, %s109
    %s113 = sphi 0, %s112
    %s129 = sphi 0, %s113
  $region4: #{tpu_custom_call.1} parent=0 // loop_header_branch
    %13 = sbr.rel (%p11) target = $region8
  $region5: #{tpu_custom_call.1} parent=0 // loop_body
    %s15 = ssub.s32 %s10, 1
    %s16 = ssub.s32 %s10, 2
    %s17 = sadd.s32 %s10, 1
    %s18 = ssub.s32 %s10, %s17
    %p19 = scmp.eq.s32.totalorder %s18, 0
    %s21 = sadd.s32 %s20, 1
    %s22 = scalar_select %p19, %s20, %s21
    %p25 = pneg %p19
    %p26 = scmp.eq.s32.totalorder %s10, 1
    %p27 = por %p25, %p26
    %p28 = scmp.ne.s32.totalorder %s20, %s23
    %p29 = scmp.eq.s32.totalorder %s10, 0
    %p30 = por %p28, %p29
    %p31 = scmp.ne.s32.totalorder %s20, %s23
    %p32 = scmp.eq.s32.totalorder %s15, 1
    %p33 = por %p31, %p32
    %p34 = scmp.ne.s32.totalorder %s23, %s24
    %p35 = scmp.eq.s32.totalorder %s15, 0
    %p36 = por %p34, %p35
    %p37 = scmp.ne.s32.totalorder %s23, %s24
    %p38 = scmp.eq.s32.totalorder %s16, 1
    %p39 = por %p37, %p38
    %p41 = scmp.ne.s32.totalorder %s24, %s40
    %p42 = scmp.eq.s32.totalorder %s16, 0
    %p43 = por %p41, %p42
    %s45 = sadd.s32 %s44, 1
    %p48 = scmp.eq.s32.totalorder %s10, 1
    %p49 = scmp.ne.s32.totalorder %s44, %s46
    %p50 = scmp.eq.s32.totalorder %s10, 0
    %p51 = por %p49, %p50
    %p52 = scmp.ne.s32.totalorder %s44, %s46
    %p53 = scmp.eq.s32.totalorder %s15, 1
    %p54 = por %p52, %p53
    %p55 = scmp.ne.s32.totalorder %s46, %s47
    %p56 = scmp.eq.s32.totalorder %s15, 0
    %p57 = por %p55, %p56
    %p58 = scmp.ne.s32.totalorder %s46, %s47
    %p59 = scmp.eq.s32.totalorder %s16, 1
    %p60 = por %p58, %p59
    %p62 = scmp.ne.s32.totalorder %s47, %s61
    %p63 = scmp.eq.s32.totalorder %s16, 0
    %p64 = por %p62, %p63
    %s66 = sadd.s32 %s65, 1
    %p69 = scmp.eq.s32.totalorder %s10, 1
    %p70 = scmp.ne.s32.totalorder %s65, %s67
    %p71 = scmp.eq.s32.totalorder %s10, 0
    %p72 = por %p70, %p71
    %p73 = scmp.ne.s32.totalorder %s65, %s67
    %p74 = scmp.eq.s32.totalorder %s15, 1
    %p75 = por %p73, %p74
    %p76 = scmp.ne.s32.totalorder %s67, %s68
    %p77 = scmp.eq.s32.totalorder %s15, 0
    %p78 = por %p76, %p77
    %p79 = scmp.ne.s32.totalorder %s67, %s68
    %p80 = scmp.eq.s32.totalorder %s16, 1
    %p81 = por %p79, %p80
    %p83 = scmp.ne.s32.totalorder %s68, %s82
    %p84 = scmp.eq.s32.totalorder %s16, 0
    %p85 = por %p83, %p84
    %s87 = sadd.s32 %s86, 1
    %p90 = scmp.eq.s32.totalorder %s10, 1
    %p91 = scmp.ne.s32.totalorder %s86, %s88
    %p92 = scmp.eq.s32.totalorder %s10, 0
    %p93 = por %p91, %p92
    %p94 = scmp.ne.s32.totalorder %s86, %s88
    %p95 = scmp.eq.s32.totalorder %s15, 1
    %p96 = por %p94, %p95
    %p97 = scmp.ne.s32.totalorder %s88, %s89
    %p98 = scmp.eq.s32.totalorder %s15, 0
    %p99 = por %p97, %p98
    %p100 = scmp.ne.s32.totalorder %s88, %s89
    %p101 = scmp.eq.s32.totalorder %s16, 1
    %p102 = por %p100, %p101
    %p104 = scmp.ne.s32.totalorder %s89, %s103
    %p105 = scmp.eq.s32.totalorder %s16, 0
    %p106 = por %p104, %p105
    %s107 = ssub.s32 %s10, %s17
    %p108 = scmp.eq.s32.totalorder %s107, 0
    %s110 = sadd.s32 %s109, 1
    %s111 = scalar_select %p108, %s109, %s110
    %p114 = pneg %p108
    %p115 = scmp.eq.s32.totalorder %s10, 1
    %p116 = por %p114, %p115
    %p117 = scmp.ne.s32.totalorder %s109, %s112
    %p118 = scmp.eq.s32.totalorder %s10, 0
    %p119 = por %p117, %p118
    %p120 = scmp.ne.s32.totalorder %s109, %s112
    %p121 = scmp.eq.s32.totalorder %s15, 1
    %p122 = por %p120, %p121
    %p123 = scmp.ne.s32.totalorder %s112, %s113
    %p124 = scmp.eq.s32.totalorder %s15, 0
    %p125 = por %p123, %p124
    %p126 = scmp.ne.s32.totalorder %s112, %s113
    %p127 = scmp.eq.s32.totalorder %s16, 1
    %p128 = por %p126, %p127
    %p130 = scmp.ne.s32.totalorder %s113, %s129
    %p131 = scmp.eq.s32.totalorder %s16, 0
    %p132 = por %p130, %p131
    %p133 = scmp.le.s32.totalorder 1, %s10
    %p134 = scmp.lt.s32.totalorder %s10, 3
    %p135 = pnand %p133, %p134
    %p136 = pneg %p135
    // Predicated region
    $region9: #{tpu_custom_call.1} parent=5 // pred_check
      _
    $region10: #{tpu_custom_call.1} parent=5 // pred_check_branch
      %138 = sbr.rel (%p135) target = $region12
    $region11: #{tpu_custom_call.1} parent=5 // pred_region
      %s139 = ssub.s32 %s10, 1
      // Predicated region
      $region13: #{tpu_custom_call.1} parent=11 // pred_check
        %p140 = pneg %p57
      $region14: #{tpu_custom_call.1} parent=11 // pred_check_branch
        %142 = sbr.rel (%p140) target = $region16
      $region15: #{tpu_custom_call.1} parent=11 // pred_region
        _
      $region16: #{tpu_custom_call.1} parent=11 // pred_fallthru
        _
      // Predicated region
      $region17: #{tpu_custom_call.1} parent=11 // pred_check
        %p143 = pneg %p78
      $region18: #{tpu_custom_call.1} parent=11 // pred_check_branch
        %145 = sbr.rel (%p143) target = $region20
      $region19: #{tpu_custom_call.1} parent=11 // pred_region
        _
      $region20: #{tpu_custom_call.1} parent=11 // pred_fallthru
        _
      // Predicated region
      $region21: #{tpu_custom_call.1} parent=11 // pred_check
        %p146 = pneg %p99
      $region22: #{tpu_custom_call.1} parent=11 // pred_check_branch
        %148 = sbr.rel (%p146) target = $region24
      $region23: #{tpu_custom_call.1} parent=11 // pred_region
        _
      $region24: #{tpu_custom_call.1} parent=11 // pred_fallthru
        _
    $region12: #{tpu_custom_call.1} parent=5 // pred_fallthru
      _
    %p149 = scmp.lt.s32.totalorder %s10, 2
    // Predicated region
    $region25: #{tpu_custom_call.1} parent=5 // pred_check
      %p150 = pneg %p149
    $region26: #{tpu_custom_call.1} parent=5 // pred_check_branch
      %152 = sbr.rel (%p150) target = $region28
    $region27: #{tpu_custom_call.1} parent=5 // pred_region
      // Predicated region
      $region29: #{tpu_custom_call.1} parent=27 // pred_check
        %p153 = pneg %p30
      $region30: #{tpu_custom_call.1} parent=27 // pred_check_branch
        %155 = sbr.rel (%p153) target = $region32
      $region31: #{tpu_custom_call.1} parent=27 // pred_region
        %s156 = smul.u32 32, %s10
        %p157 = scmp.lt.s32.totalorder %s156, 63
        %s158 = scalar_select %p157, %s156, 63
        %s159 = smul.addr %s158, 8
        %s160 = scalar_lea.vmem %s0, %s159
        %s161 = smul.u32 32, %s10
      $region32: #{tpu_custom_call.1} parent=27 // pred_fallthru
        _
    $region28: #{tpu_custom_call.1} parent=5 // pred_fallthru
      _
    %p162 = scmp.le.s32.totalorder 1, %s10
    %p163 = scmp.lt.s32.totalorder %s10, 3
    %p164 = pnand %p162, %p163
    %p165 = pneg %p164
    // Predicated region
    $region33: #{tpu_custom_call.1} parent=5 // pred_check
      _
    $region34: #{tpu_custom_call.1} parent=5 // pred_check_branch
      %167 = sbr.rel (%p164) target = $region36
    $region35: #{tpu_custom_call.1} parent=5 // pred_region
      %s168 = ssub.s32 %s10, 1
      %s169 = smul.u32 32, %s15
      %p170 = scmp.lt.s32.totalorder %s169, 63
      %s171 = scalar_select %p170, %s169, 63
      %s172 = smul.addr %s171, 8
      %s173 = scalar_lea.vmem %s0, %s172
      %p174 = pneg %p36
      %p175 = pneg %p33
      %p176 = pneg %p57
      %p177 = pneg %p54
      %p178 = pneg %p78
      %p179 = pneg %p75
      %p180 = pneg %p99
      %p181 = pneg %p96
      %p182 = pneg %p125
      %p183 = pneg %p122
      %s184 = smul.u32 32, %s15
      %p185 = scmp.lt.s32.totalorder %s184, 63
      %s186 = scalar_select %p185, %s184, 63
      %s187 = smul.addr %s186, 8
      %s188 = scalar_lea.vmem %s4, %s187
      %s189 = smul.u32 32, %s15
      %p190 = scmp.lt.s32.totalorder %s189, 63
      %s191 = scalar_select %p190, %s189, 63
      %s192 = smul.addr %s191, 8
      %s193 = scalar_lea.vmem %s0, %s192
      %s194 = smul.u32 32, %s15
      %s195 = smul.u32 32, %s15
      %p196 = scmp.lt.s32.totalorder %s195, 63
      %s197 = scalar_select %p196, %s195, 63
      %s198 = smul.addr %s197, 8
      %s199 = scalar_lea.vmem %s4, %s198
      %s200 = smul.u32 32, %s15
      %v201 = vld [vmem:[%s193] sm:$0xff]
      %v202 = vld [vmem:[%s193 + $0x8] sm:$0xff]
      %v203 = vld [vmem:[%s193 + $0x10] sm:$0xff]
      %v204 = vld [vmem:[%s193 + $0x18] sm:$0xff]
      %v205 = vld [vmem:[%s193 + $0x20] sm:$0xff]
      %v206 = vld [vmem:[%s193 + $0x28] sm:$0xff]
      %v207 = vld [vmem:[%s193 + $0x30] sm:$0xff]
      %v208 = vld [vmem:[%s193 + $0x38] sm:$0xff]
      %v209 = vld [vmem:[%s193 + $0x40] sm:$0xff]
      %v210 = vld [vmem:[%s193 + $0x48] sm:$0xff]
      %v211 = vld [vmem:[%s193 + $0x50] sm:$0xff]
      %v212 = vld [vmem:[%s193 + $0x58] sm:$0xff]
      %v213 = vld [vmem:[%s193 + $0x60] sm:$0xff]
      %v214 = vld [vmem:[%s193 + $0x68] sm:$0xff]
      %v215 = vld [vmem:[%s193 + $0x70] sm:$0xff]
      %v216 = vld [vmem:[%s193 + $0x78] sm:$0xff]
      %v217 = vld [vmem:[%s193 + $0x80] sm:$0xff]
      %v218 = vld [vmem:[%s193 + $0x88] sm:$0xff]
      %v219 = vld [vmem:[%s193 + $0x90] sm:$0xff]
      %v220 = vld [vmem:[%s193 + $0x98] sm:$0xff]
      %v221 = vld [vmem:[%s193 + $0xa0] sm:$0xff]
      %v222 = vld [vmem:[%s193 + $0xa8] sm:$0xff]
      %v223 = vld [vmem:[%s193 + $0xb0] sm:$0xff]
      %v224 = vld [vmem:[%s193 + $0xb8] sm:$0xff]
      %v225 = vld [vmem:[%s193 + $0xc0] sm:$0xff]
      %v226 = vld [vmem:[%s193 + $0xc8] sm:$0xff]
      %v227 = vld [vmem:[%s193 + $0xd0] sm:$0xff]
      %v228 = vld [vmem:[%s193 + $0xd8] sm:$0xff]
      %v229 = vld [vmem:[%s193 + $0xe0] sm:$0xff]
      %v230 = vld [vmem:[%s193 + $0xe8] sm:$0xff]
      %v231 = vld [vmem:[%s193 + $0xf0] sm:$0xff]
      %v232 = vld [vmem:[%s193 + $0xf8] sm:$0xff]
      %v233 = vld [vmem:[%s1] sm:$0x1]
      %235 = vset.pattern.permute.xlu0 0
      %236 = vperm.xlu0 %235, %v201
      %v237 = vpop.permute.xlu0 %236
      %240 = vset.pattern.permute.xlu0 0
      %241 = vperm.xlu0 %240, %v202
      %v242 = vpop.permute.xlu0 %241
      %245 = vset.pattern.permute.xlu0 0
      %246 = vperm.xlu0 %245, %v203
      %v247 = vpop.permute.xlu0 %246
      %250 = vset.pattern.permute.xlu0 0
      %251 = vperm.xlu0 %250, %v204
      %v252 = vpop.permute.xlu0 %251
      %255 = vset.pattern.permute.xlu0 0
      %256 = vperm.xlu0 %255, %v205
      %v257 = vpop.permute.xlu0 %256
      %260 = vset.pattern.permute.xlu0 0
      %261 = vperm.xlu0 %260, %v206
      %v262 = vpop.permute.xlu0 %261
      %265 = vset.pattern.permute.xlu0 0
      %266 = vperm.xlu0 %265, %v207
      %v267 = vpop.permute.xlu0 %266
      %270 = vset.pattern.permute.xlu0 0
      %271 = vperm.xlu0 %270, %v208
      %v272 = vpop.permute.xlu0 %271
      %275 = vset.pattern.permute.xlu0 0
      %276 = vperm.xlu0 %275, %v209
      %v277 = vpop.permute.xlu0 %276
      %280 = vset.pattern.permute.xlu0 0
      %281 = vperm.xlu0 %280, %v210
      %v282 = vpop.permute.xlu0 %281
      %285 = vset.pattern.permute.xlu0 0
      %286 = vperm.xlu0 %285, %v211
      %v287 = vpop.permute.xlu0 %286
      %290 = vset.pattern.permute.xlu0 0
      %291 = vperm.xlu0 %290, %v212
      %v292 = vpop.permute.xlu0 %291
      %295 = vset.pattern.permute.xlu0 0
      %296 = vperm.xlu0 %295, %v213
      %v297 = vpop.permute.xlu0 %296
      %300 = vset.pattern.permute.xlu0 0
      %301 = vperm.xlu0 %300, %v214
      %v302 = vpop.permute.xlu0 %301
      %305 = vset.pattern.permute.xlu0 0
      %306 = vperm.xlu0 %305, %v215
      %v307 = vpop.permute.xlu0 %306
      %310 = vset.pattern.permute.xlu0 0
      %311 = vperm.xlu0 %310, %v216
      %v312 = vpop.permute.xlu0 %311
      %315 = vset.pattern.permute.xlu0 0
      %316 = vperm.xlu0 %315, %v217
      %v317 = vpop.permute.xlu0 %316
      %320 = vset.pattern.permute.xlu0 0
      %321 = vperm.xlu0 %320, %v218
      %v322 = vpop.permute.xlu0 %321
      %325 = vset.pattern.permute.xlu0 0
      %326 = vperm.xlu0 %325, %v219
      %v327 = vpop.permute.xlu0 %326
      %330 = vset.pattern.permute.xlu0 0
      %331 = vperm.xlu0 %330, %v220
      %v332 = vpop.permute.xlu0 %331
      %335 = vset.pattern.permute.xlu0 0
      %336 = vperm.xlu0 %335, %v221
      %v337 = vpop.permute.xlu0 %336
      %340 = vset.pattern.permute.xlu0 0
      %341 = vperm.xlu0 %340, %v222
      %v342 = vpop.permute.xlu0 %341
      %345 = vset.pattern.permute.xlu0 0
      %346 = vperm.xlu0 %345, %v223
      %v347 = vpop.permute.xlu0 %346
      %350 = vset.pattern.permute.xlu0 0
      %351 = vperm.xlu0 %350, %v224
      %v352 = vpop.permute.xlu0 %351
      %355 = vset.pattern.permute.xlu0 0
      %356 = vperm.xlu0 %355, %v225
      %v357 = vpop.permute.xlu0 %356
      %360 = vset.pattern.permute.xlu0 0
      %361 = vperm.xlu0 %360, %v226
      %v362 = vpop.permute.xlu0 %361
      %365 = vset.pattern.permute.xlu0 0
      %366 = vperm.xlu0 %365, %v227
      %v367 = vpop.permute.xlu0 %366
      %370 = vset.pattern.permute.xlu0 0
      %371 = vperm.xlu0 %370, %v228
      %v372 = vpop.permute.xlu0 %371
      %375 = vset.pattern.permute.xlu0 0
      %376 = vperm.xlu0 %375, %v229
      %v377 = vpop.permute.xlu0 %376
      %380 = vset.pattern.permute.xlu0 0
      %381 = vperm.xlu0 %380, %v230
      %v382 = vpop.permute.xlu0 %381
      %385 = vset.pattern.permute.xlu0 0
      %386 = vperm.xlu0 %385, %v231
      %v387 = vpop.permute.xlu0 %386
      %390 = vset.pattern.permute.xlu0 0
      %391 = vperm.xlu0 %390, %v232
      %v392 = vpop.permute.xlu0 %391
      %v395 = vlaneseq
      %v396 = vshrl.u32 %v395, 7
      %v397 = vsub.s32 0, %v396
      %v398 = vrot.slane %v233, %v397
      %v400 = vmul.f32 %v237, %v398
      %v401 = vmul.f32 %v242, %v398
      %v402 = vmul.f32 %v247, %v398
      %v403 = vmul.f32 %v252, %v398
      %v404 = vmul.f32 %v257, %v398
      %v405 = vmul.f32 %v262, %v398
      %v406 = vmul.f32 %v267, %v398
      %v407 = vmul.f32 %v272, %v398
      %v408 = vmul.f32 %v277, %v398
      %v409 = vmul.f32 %v282, %v398
      %v410 = vmul.f32 %v287, %v398
      %v411 = vmul.f32 %v292, %v398
      %v412 = vmul.f32 %v297, %v398
      %v413 = vmul.f32 %v302, %v398
      %v414 = vmul.f32 %v307, %v398
      %v415 = vmul.f32 %v312, %v398
      %v416 = vmul.f32 %v317, %v398
      %v417 = vmul.f32 %v322, %v398
      %v418 = vmul.f32 %v327, %v398
      %v419 = vmul.f32 %v332, %v398
      %v420 = vmul.f32 %v337, %v398
      %v421 = vmul.f32 %v342, %v398
      %v422 = vmul.f32 %v347, %v398
      %v423 = vmul.f32 %v352, %v398
      %v424 = vmul.f32 %v357, %v398
      %v425 = vmul.f32 %v362, %v398
      %v426 = vmul.f32 %v367, %v398
      %v427 = vmul.f32 %v372, %v398
      %v428 = vmul.f32 %v377, %v398
      %v429 = vmul.f32 %v382, %v398
      %v430 = vmul.f32 %v387, %v398
      %v431 = vmul.f32 %v392, %v398
      %v432 = vld [vmem:[%s2] sm:$0x1]
      %v434 = vlaneseq
      %v435 = vshrl.u32 %v434, 7
      %v436 = vsub.s32 0, %v435
      %v437 = vrot.slane %v432, %v436
      %v439 = vadd.f32 %v400, %v437
      %v440 = vadd.f32 %v401, %v437
      %v441 = vadd.f32 %v402, %v437
      %v442 = vadd.f32 %v403, %v437
      %v443 = vadd.f32 %v404, %v437
      %v444 = vadd.f32 %v405, %v437
      %v445 = vadd.f32 %v406, %v437
      %v446 = vadd.f32 %v407, %v437
      %v447 = vadd.f32 %v408, %v437
      %v448 = vadd.f32 %v409, %v437
      %v449 = vadd.f32 %v410, %v437
      %v450 = vadd.f32 %v411, %v437
      %v451 = vadd.f32 %v412, %v437
      %v452 = vadd.f32 %v413, %v437
      %v453 = vadd.f32 %v414, %v437
      %v454 = vadd.f32 %v415, %v437
      %v455 = vadd.f32 %v416, %v437
      %v456 = vadd.f32 %v417, %v437
      %v457 = vadd.f32 %v418, %v437
      %v458 = vadd.f32 %v419, %v437
      %v459 = vadd.f32 %v420, %v437
      %v460 = vadd.f32 %v421, %v437
      %v461 = vadd.f32 %v422, %v437
      %v462 = vadd.f32 %v423, %v437
      %v463 = vadd.f32 %v424, %v437
      %v464 = vadd.f32 %v425, %v437
      %v465 = vadd.f32 %v426, %v437
      %v466 = vadd.f32 %v427, %v437
      %v467 = vadd.f32 %v428, %v437
      %v468 = vadd.f32 %v429, %v437
      %v469 = vadd.f32 %v430, %v437
      %v470 = vadd.f32 %v431, %v437
      %v471 = vand.u32 2147483647, %v439
      %vm472 = vcmp.le.f32.partialorder %v471, 0.7853982
      %vm473 = vcmp.lt.s32.totalorder %v439, 0
      %v474 = vand.u32 %v439, 2139095040
      %v475 = vshrl.u32 %v474, 23
      %v476 = vsub.s32 %v475, 127
      %v477 = vand.u32 2147483647, %v439
      %v478 = vand.u32 %v477, 8388607
      %v479 = vor.u32 %v478, 8388608
      %v480 = vsub.s32 0, %v479
      %v481 = vadd.s32 %v476, 1
      %vm482 = vcmp.gt.s32.totalorder %v481, 0
      %v483 = vsel %vm482, %v481, 0
      %v484 = vshrl.u32 %v483, 5
      %v485 = vand.u32 %v483, 31
      %v486 = vsub.s32 32, %v485
      %v487 = vshrl.u32 683565275, %v486
      %v488 = vshll.u32 683565275, %v485
      %v489 = vshrl.u32 2475754826, %v486
      %v490 = vor.u32 %v488, %v489
      %v491 = vshll.u32 2475754826, %v485
      %v492 = vshrl.u32 2131351028, %v486
      %v493 = vor.u32 %v491, %v492
      %v494 = vshll.u32 2131351028, %v485
      %v495 = vshrl.u32 2102212464, %v486
      %v496 = vor.u32 %v494, %v495
      %v497 = vshll.u32 2102212464, %v485
      %v498 = vshrl.u32 920167782, %v486
      %v499 = vor.u32 %v497, %v498
      %v500 = vshll.u32 920167782, %v485
      %v501 = vshrl.u32 1326507024, %v486
      %v502 = vor.u32 %v500, %v501
      %vm503 = vcmp.lt.s32.totalorder %v484, 1
      %vm504 = vcmp.lt.s32.totalorder %v484, 2
      %vm505 = vcmp.lt.s32.totalorder %v484, 3
      %vm506 = vcmp.lt.s32.totalorder %v484, 4
      %v507 = vsel %vm503, %v487, %v490
      %v508 = vsel %vm506, %v496, 2102212464
      %v509 = vsel %vm505, %v493, %v508
      %v510 = vsel %vm504, %v507, %v509
      %v511 = vsel %vm503, %v490, %v493
      %v512 = vsel %vm506, %v499, 920167782
      %v513 = vsel %vm505, %v496, %v512
      %v514 = vsel %vm504, %v511, %v513
      %v515 = vsel %vm503, %v493, %v496
      %v516 = vsel %vm506, %v502, 1326507024
      %v517 = vsel %vm505, %v499, %v516
      %v518 = vsel %vm504, %v515, %v517
      %v519 = vshll.u32 %v479, 8
      %v520 = vmul.u32.u64.compose %v519, %v518
      %v521 = vextract.low.u32 %v520
      %v522 = vextract.high.u32 %v520
      %v523 = vmul.u32.u64.compose %v519, %v514
      %v524 = vextract.low.u32 %v523
      %v525 = vextract.high.u32 %v523
      %v526 = vmul.u32 %v519, %v510
      %v527 = vadd.s32 %v522, %v524
      %vm528 = vc.u32 %v522, %v524
      %v529 = vadd.s32 %v525, 1
      %v530 = vsel %vm528, %v529, %v525
      %v531 = vadd.s32 %v526, %v530
      %v532 = vadd.s32 %v531, 536870912
      %v533 = vshrl.u32 %v532, 30
      %v534 = vshll.u32 %v533, 30
      %v535 = vsub.s32 %v531, %v534
      %vm536 = vcmp.lt.s32.totalorder %v535, 0
      %v537 = vsub.s32 0, %v535
      %v538 = vsel %vm536, %v537, %v535
      %v539 = vclz %v538
      %v540 = vsub.s32 %v539, 2
      %vm541 = vcmp.gt.s32.totalorder 0, %v540
      %v542 = vsel %vm541, 0, %v540
      %v543 = vsub.s32 32, %v542
      %v544 = vshll.u32 %v535, %v542
      %v545 = vshrl.u32 %v527, %v543
      %v546 = vor.u32 %v544, %v545
      %v547 = vsub.s32 4294967266, %v542
      %v548 = vadd.s32 %v547, 127
      %v549 = vshll.u32 %v548, 23
      %v550 = vor.u32 4788187, %v549
      %v551 = vand.u32 2147483647, %v550
      %v553 = vcvt.s32.f32 %v546
      %v554 = vmul.f32 %v553, %v551
      %v555 = vxor.u32 %v554, 2147483648
      %v556 = vsel %vm473, %v555, %v554
      %v557 = vsub.s32 4, %v533
      %v558 = vsel %vm473, %v557, %v533
      %v559 = vsel %vm472, %v439, %v556
      %v560 = vsel %vm472, 0, %v558
      %v561 = vcosq.f32.pop %v559
      %v562 = vsinq.f32.pop %v559
      %vm563 = vweird.f32 %v439
      %v564 = vadd.s32 %v560, 3
      %v565 = vand.u32 %v564, 3
      %vm566 = vcmp.lt.s32.totalorder %v565, 2
      %vm567 = vcmp.eq.s32.totalorder %v565, 0
      %v568 = vxor.u32 %v562, 2147483648
      %v569 = vsel %vm567, %v561, %v568
      %vm570 = vcmp.eq.s32.totalorder %v565, 2
      %v571 = vxor.u32 %v561, 2147483648
      %v572 = vsel %vm570, %v571, %v562
      %v573 = vsel %vm566, %v569, %v572
      %v574 = vsel %vm563, nan, %v573
      %v575 = vand.u32 2147483647, %v440
      %vm576 = vcmp.le.f32.partialorder %v575, 0.7853982
      %vm577 = vcmp.lt.s32.totalorder %v440, 0
      %v578 = vand.u32 %v440, 2139095040
      %v579 = vshrl.u32 %v578, 23
      %v580 = vsub.s32 %v579, 127
      %v581 = vand.u32 2147483647, %v440
      %v582 = vand.u32 %v581, 8388607
      %v583 = vor.u32 %v582, 8388608
      %v584 = vsub.s32 0, %v583
      %v585 = vadd.s32 %v580, 1
      %vm586 = vcmp.gt.s32.totalorder %v585, 0
      %v587 = vsel %vm586, %v585, 0
      %v588 = vshrl.u32 %v587, 5
      %v589 = vand.u32 %v587, 31
      %v590 = vsub.s32 32, %v589
      %v591 = vshrl.u32 683565275, %v590
      %v592 = vshll.u32 683565275, %v589
      %v593 = vshrl.u32 2475754826, %v590
      %v594 = vor.u32 %v592, %v593
      %v595 = vshll.u32 2475754826, %v589
      %v596 = vshrl.u32 2131351028, %v590
      %v597 = vor.u32 %v595, %v596
      %v598 = vshll.u32 2131351028, %v589
      %v599 = vshrl.u32 2102212464, %v590
      %v600 = vor.u32 %v598, %v599
      %v601 = vshll.u32 2102212464, %v589
      %v602 = vshrl.u32 920167782, %v590
      %v603 = vor.u32 %v601, %v602
      %v604 = vshll.u32 920167782, %v589
      %v605 = vshrl.u32 1326507024, %v590
      %v606 = vor.u32 %v604, %v605
      %vm607 = vcmp.lt.s32.totalorder %v588, 1
      %vm608 = vcmp.lt.s32.totalorder %v588, 2
      %vm609 = vcmp.lt.s32.totalorder %v588, 3
      %vm610 = vcmp.lt.s32.totalorder %v588, 4
      %v611 = vsel %vm607, %v591, %v594
      %v612 = vsel %vm610, %v600, 2102212464
      %v613 = vsel %vm609, %v597, %v612
      %v614 = vsel %vm608, %v611, %v613
      %v615 = vsel %vm607, %v594, %v597
      %v616 = vsel %vm610, %v603, 920167782
      %v617 = vsel %vm609, %v600, %v616
      %v618 = vsel %vm608, %v615, %v617
      %v619 = vsel %vm607, %v597, %v600
      %v620 = vsel %vm610, %v606, 1326507024
      %v621 = vsel %vm609, %v603, %v620
      %v622 = vsel %vm608, %v619, %v621
      %v623 = vshll.u32 %v583, 8
      %v624 = vmul.u32.u64.compose %v623, %v622
      %v625 = vextract.low.u32 %v624
      %v626 = vextract.high.u32 %v624
      %v627 = vmul.u32.u64.compose %v623, %v618
      %v628 = vextract.low.u32 %v627
      %v629 = vextract.high.u32 %v627
      %v630 = vmul.u32 %v623, %v614
      %v631 = vadd.s32 %v626, %v628
      %vm632 = vc.u32 %v626, %v628
      %v633 = vadd.s32 %v629, 1
      %v634 = vsel %vm632, %v633, %v629
      %v635 = vadd.s32 %v630, %v634
      %v636 = vadd.s32 %v635, 536870912
      %v637 = vshrl.u32 %v636, 30
      %v638 = vshll.u32 %v637, 30
      %v639 = vsub.s32 %v635, %v638
      %vm640 = vcmp.lt.s32.totalorder %v639, 0
      %v641 = vsub.s32 0, %v639
      %v642 = vsel %vm640, %v641, %v639
      %v643 = vclz %v642
      %v644 = vsub.s32 %v643, 2
      %vm645 = vcmp.gt.s32.totalorder 0, %v644
      %v646 = vsel %vm645, 0, %v644
      %v647 = vsub.s32 32, %v646
      %v648 = vshll.u32 %v639, %v646
      %v649 = vshrl.u32 %v631, %v647
      %v650 = vor.u32 %v648, %v649
      %v651 = vsub.s32 4294967266, %v646
      %v652 = vadd.s32 %v651, 127
      %v653 = vshll.u32 %v652, 23
      %v654 = vor.u32 4788187, %v653
      %v655 = vand.u32 2147483647, %v654
      %v657 = vcvt.s32.f32 %v650
      %v658 = vmul.f32 %v657, %v655
      %v659 = vxor.u32 %v658, 2147483648
      %v660 = vsel %vm577, %v659, %v658
      %v661 = vsub.s32 4, %v637
      %v662 = vsel %vm577, %v661, %v637
      %v663 = vsel %vm576, %v440, %v660
      %v664 = vsel %vm576, 0, %v662
      %v665 = vcosq.f32.pop %v663
      %v666 = vsinq.f32.pop %v663
      %vm667 = vweird.f32 %v440
      %v668 = vadd.s32 %v664, 3
      %v669 = vand.u32 %v668, 3
      %vm670 = vcmp.lt.s32.totalorder %v669, 2
      %vm671 = vcmp.eq.s32.totalorder %v669, 0
      %v672 = vxor.u32 %v666, 2147483648
      %v673 = vsel %vm671, %v665, %v672
      %vm674 = vcmp.eq.s32.totalorder %v669, 2
      %v675 = vxor.u32 %v665, 2147483648
      %v676 = vsel %vm674, %v675, %v666
      %v677 = vsel %vm670, %v673, %v676
      %v678 = vsel %vm667, nan, %v677
      %v679 = vand.u32 2147483647, %v441
      %vm680 = vcmp.le.f32.partialorder %v679, 0.7853982
      %vm681 = vcmp.lt.s32.totalorder %v441, 0
      %v682 = vand.u32 %v441, 2139095040
      %v683 = vshrl.u32 %v682, 23
      %v684 = vsub.s32 %v683, 127
      %v685 = vand.u32 2147483647, %v441
      %v686 = vand.u32 %v685, 8388607
      %v687 = vor.u32 %v686, 8388608
      %v688 = vsub.s32 0, %v687
      %v689 = vadd.s32 %v684, 1
      %vm690 = vcmp.gt.s32.totalorder %v689, 0
      %v691 = vsel %vm690, %v689, 0
      %v692 = vshrl.u32 %v691, 5
      %v693 = vand.u32 %v691, 31
      %v694 = vsub.s32 32, %v693
      %v695 = vshrl.u32 683565275, %v694
      %v696 = vshll.u32 683565275, %v693
      %v697 = vshrl.u32 2475754826, %v694
      %v698 = vor.u32 %v696, %v697
      %v699 = vshll.u32 2475754826, %v693
      %v700 = vshrl.u32 2131351028, %v694
      %v701 = vor.u32 %v699, %v700
      %v702 = vshll.u32 2131351028, %v693
      %v703 = vshrl.u32 2102212464, %v694
      %v704 = vor.u32 %v702, %v703
      %v705 = vshll.u32 2102212464, %v693
      %v706 = vshrl.u32 920167782, %v694
      %v707 = vor.u32 %v705, %v706
      %v708 = vshll.u32 920167782, %v693
      %v709 = vshrl.u32 1326507024, %v694
      %v710 = vor.u32 %v708, %v709
      %vm711 = vcmp.lt.s32.totalorder %v692, 1
      %vm712 = vcmp.lt.s32.totalorder %v692, 2
      %vm713 = vcmp.lt.s32.totalorder %v692, 3
      %vm714 = vcmp.lt.s32.totalorder %v692, 4
      %v715 = vsel %vm711, %v695, %v698
      %v716 = vsel %vm714, %v704, 2102212464
      %v717 = vsel %vm713, %v701, %v716
      %v718 = vsel %vm712, %v715, %v717
      %v719 = vsel %vm711, %v698, %v701
      %v720 = vsel %vm714, %v707, 920167782
      %v721 = vsel %vm713, %v704, %v720
      %v722 = vsel %vm712, %v719, %v721
      %v723 = vsel %vm711, %v701, %v704
      %v724 = vsel %vm714, %v710, 1326507024
      %v725 = vsel %vm713, %v707, %v724
      %v726 = vsel %vm712, %v723, %v725
      %v727 = vshll.u32 %v687, 8
      %v728 = vmul.u32.u64.compose %v727, %v726
      %v729 = vextract.low.u32 %v728
      %v730 = vextract.high.u32 %v728
      %v731 = vmul.u32.u64.compose %v727, %v722
      %v732 = vextract.low.u32 %v731
      %v733 = vextract.high.u32 %v731
      %v734 = vmul.u32 %v727, %v718
      %v735 = vadd.s32 %v730, %v732
      %vm736 = vc.u32 %v730, %v732
      %v737 = vadd.s32 %v733, 1
      %v738 = vsel %vm736, %v737, %v733
      %v739 = vadd.s32 %v734, %v738
      %v740 = vadd.s32 %v739, 536870912
      %v741 = vshrl.u32 %v740, 30
      %v742 = vshll.u32 %v741, 30
      %v743 = vsub.s32 %v739, %v742
      %vm744 = vcmp.lt.s32.totalorder %v743, 0
      %v745 = vsub.s32 0, %v743
      %v746 = vsel %vm744, %v745, %v743
      %v747 = vclz %v746
      %v748 = vsub.s32 %v747, 2
      %vm749 = vcmp.gt.s32.totalorder 0, %v748
      %v750 = vsel %vm749, 0, %v748
      %v751 = vsub.s32 32, %v750
      %v752 = vshll.u32 %v743, %v750
      %v753 = vshrl.u32 %v735, %v751
      %v754 = vor.u32 %v752, %v753
      %v755 = vsub.s32 4294967266, %v750
      %v756 = vadd.s32 %v755, 127
      %v757 = vshll.u32 %v756, 23
      %v758 = vor.u32 4788187, %v757
      %v759 = vand.u32 2147483647, %v758
      %v761 = vcvt.s32.f32 %v754
      %v762 = vmul.f32 %v761, %v759
      %v763 = vxor.u32 %v762, 2147483648
      %v764 = vsel %vm681, %v763, %v762
      %v765 = vsub.s32 4, %v741
      %v766 = vsel %vm681, %v765, %v741
      %v767 = vsel %vm680, %v441, %v764
      %v768 = vsel %vm680, 0, %v766
      %v769 = vcosq.f32.pop %v767
      %v770 = vsinq.f32.pop %v767
      %vm771 = vweird.f32 %v441
      %v772 = vadd.s32 %v768, 3
      %v773 = vand.u32 %v772, 3
      %vm774 = vcmp.lt.s32.totalorder %v773, 2
      %vm775 = vcmp.eq.s32.totalorder %v773, 0
      %v776 = vxor.u32 %v770, 2147483648
      %v777 = vsel %vm775, %v769, %v776
      %vm778 = vcmp.eq.s32.totalorder %v773, 2
      %v779 = vxor.u32 %v769, 2147483648
      %v780 = vsel %vm778, %v779, %v770
      %v781 = vsel %vm774, %v777, %v780
      %v782 = vsel %vm771, nan, %v781
      %v783 = vand.u32 2147483647, %v442
      %vm784 = vcmp.le.f32.partialorder %v783, 0.7853982
      %vm785 = vcmp.lt.s32.totalorder %v442, 0
      %v786 = vand.u32 %v442, 2139095040
      %v787 = vshrl.u32 %v786, 23
      %v788 = vsub.s32 %v787, 127
      %v789 = vand.u32 2147483647, %v442
      %v790 = vand.u32 %v789, 8388607
      %v791 = vor.u32 %v790, 8388608
      %v792 = vsub.s32 0, %v791
      %v793 = vadd.s32 %v788, 1
      %vm794 = vcmp.gt.s32.totalorder %v793, 0
      %v795 = vsel %vm794, %v793, 0
      %v796 = vshrl.u32 %v795, 5
      %v797 = vand.u32 %v795, 31
      %v798 = vsub.s32 32, %v797
      %v799 = vshrl.u32 683565275, %v798
      %v800 = vshll.u32 683565275, %v797
      %v801 = vshrl.u32 2475754826, %v798
      %v802 = vor.u32 %v800, %v801
      %v803 = vshll.u32 2475754826, %v797
      %v804 = vshrl.u32 2131351028, %v798
      %v805 = vor.u32 %v803, %v804
      %v806 = vshll.u32 2131351028, %v797
      %v807 = vshrl.u32 2102212464, %v798
      %v808 = vor.u32 %v806, %v807
      %v809 = vshll.u32 2102212464, %v797
      %v810 = vshrl.u32 920167782, %v798
      %v811 = vor.u32 %v809, %v810
      %v812 = vshll.u32 920167782, %v797
      %v813 = vshrl.u32 1326507024, %v798
      %v814 = vor.u32 %v812, %v813
      %vm815 = vcmp.lt.s32.totalorder %v796, 1
      %vm816 = vcmp.lt.s32.totalorder %v796, 2
      %vm817 = vcmp.lt.s32.totalorder %v796, 3
      %vm818 = vcmp.lt.s32.totalorder %v796, 4
      %v819 = vsel %vm815, %v799, %v802
      %v820 = vsel %vm818, %v808, 2102212464
      %v821 = vsel %vm817, %v805, %v820
      %v822 = vsel %vm816, %v819, %v821
      %v823 = vsel %vm815, %v802, %v805
      %v824 = vsel %vm818, %v811, 920167782
      %v825 = vsel %vm817, %v808, %v824
      %v826 = vsel %vm816, %v823, %v825
      %v827 = vsel %vm815, %v805, %v808
      %v828 = vsel %vm818, %v814, 1326507024
      %v829 = vsel %vm817, %v811, %v828
      %v830 = vsel %vm816, %v827, %v829
      %v831 = vshll.u32 %v791, 8
      %v832 = vmul.u32.u64.compose %v831, %v830
      %v833 = vextract.low.u32 %v832
      %v834 = vextract.high.u32 %v832
      %v835 = vmul.u32.u64.compose %v831, %v826
      %v836 = vextract.low.u32 %v835
      %v837 = vextract.high.u32 %v835
      %v838 = vmul.u32 %v831, %v822
      %v839 = vadd.s32 %v834, %v836
      %vm840 = vc.u32 %v834, %v836
      %v841 = vadd.s32 %v837, 1
      %v842 = vsel %vm840, %v841, %v837
      %v843 = vadd.s32 %v838, %v842
      %v844 = vadd.s32 %v843, 536870912
      %v845 = vshrl.u32 %v844, 30
      %v846 = vshll.u32 %v845, 30
      %v847 = vsub.s32 %v843, %v846
      %vm848 = vcmp.lt.s32.totalorder %v847, 0
      %v849 = vsub.s32 0, %v847
      %v850 = vsel %vm848, %v849, %v847
      %v851 = vclz %v850
      %v852 = vsub.s32 %v851, 2
      %vm853 = vcmp.gt.s32.totalorder 0, %v852
      %v854 = vsel %vm853, 0, %v852
      %v855 = vsub.s32 32, %v854
      %v856 = vshll.u32 %v847, %v854
      %v857 = vshrl.u32 %v839, %v855
      %v858 = vor.u32 %v856, %v857
      %v859 = vsub.s32 4294967266, %v854
      %v860 = vadd.s32 %v859, 127
      %v861 = vshll.u32 %v860, 23
      %v862 = vor.u32 4788187, %v861
      %v863 = vand.u32 2147483647, %v862
      %v865 = vcvt.s32.f32 %v858
      %v866 = vmul.f32 %v865, %v863
      %v867 = vxor.u32 %v866, 2147483648
      %v868 = vsel %vm785, %v867, %v866
      %v869 = vsub.s32 4, %v845
      %v870 = vsel %vm785, %v869, %v845
      %v871 = vsel %vm784, %v442, %v868
      %v872 = vsel %vm784, 0, %v870
      %v873 = vcosq.f32.pop %v871
      %v874 = vsinq.f32.pop %v871
      %vm875 = vweird.f32 %v442
      %v876 = vadd.s32 %v872, 3
      %v877 = vand.u32 %v876, 3
      %vm878 = vcmp.lt.s32.totalorder %v877, 2
      %vm879 = vcmp.eq.s32.totalorder %v877, 0
      %v880 = vxor.u32 %v874, 2147483648
      %v881 = vsel %vm879, %v873, %v880
      %vm882 = vcmp.eq.s32.totalorder %v877, 2
      %v883 = vxor.u32 %v873, 2147483648
      %v884 = vsel %vm882, %v883, %v874
      %v885 = vsel %vm878, %v881, %v884
      %v886 = vsel %vm875, nan, %v885
      %v887 = vand.u32 2147483647, %v443
      %vm888 = vcmp.le.f32.partialorder %v887, 0.7853982
      %vm889 = vcmp.lt.s32.totalorder %v443, 0
      %v890 = vand.u32 %v443, 2139095040
      %v891 = vshrl.u32 %v890, 23
      %v892 = vsub.s32 %v891, 127
      %v893 = vand.u32 2147483647, %v443
      %v894 = vand.u32 %v893, 8388607
      %v895 = vor.u32 %v894, 8388608
      %v896 = vsub.s32 0, %v895
      %v897 = vadd.s32 %v892, 1
      %vm898 = vcmp.gt.s32.totalorder %v897, 0
      %v899 = vsel %vm898, %v897, 0
      %v900 = vshrl.u32 %v899, 5
      %v901 = vand.u32 %v899, 31
      %v902 = vsub.s32 32, %v901
      %v903 = vshrl.u32 683565275, %v902
      %v904 = vshll.u32 683565275, %v901
      %v905 = vshrl.u32 2475754826, %v902
      %v906 = vor.u32 %v904, %v905
      %v907 = vshll.u32 2475754826, %v901
      %v908 = vshrl.u32 2131351028, %v902
      %v909 = vor.u32 %v907, %v908
      %v910 = vshll.u32 2131351028, %v901
      %v911 = vshrl.u32 2102212464, %v902
      %v912 = vor.u32 %v910, %v911
      %v913 = vshll.u32 2102212464, %v901
      %v914 = vshrl.u32 920167782, %v902
      %v915 = vor.u32 %v913, %v914
      %v916 = vshll.u32 920167782, %v901
      %v917 = vshrl.u32 1326507024, %v902
      %v918 = vor.u32 %v916, %v917
      %vm919 = vcmp.lt.s32.totalorder %v900, 1
      %vm920 = vcmp.lt.s32.totalorder %v900, 2
      %vm921 = vcmp.lt.s32.totalorder %v900, 3
      %vm922 = vcmp.lt.s32.totalorder %v900, 4
      %v923 = vsel %vm919, %v903, %v906
      %v924 = vsel %vm922, %v912, 2102212464
      %v925 = vsel %vm921, %v909, %v924
      %v926 = vsel %vm920, %v923, %v925
      %v927 = vsel %vm919, %v906, %v909
      %v928 = vsel %vm922, %v915, 920167782
      %v929 = vsel %vm921, %v912, %v928
      %v930 = vsel %vm920, %v927, %v929
      %v931 = vsel %vm919, %v909, %v912
      %v932 = vsel %vm922, %v918, 1326507024
      %v933 = vsel %vm921, %v915, %v932
      %v934 = vsel %vm920, %v931, %v933
      %v935 = vshll.u32 %v895, 8
      %v936 = vmul.u32.u64.compose %v935, %v934
      %v937 = vextract.low.u32 %v936
      %v938 = vextract.high.u32 %v936
      %v939 = vmul.u32.u64.compose %v935, %v930
      %v940 = vextract.low.u32 %v939
      %v941 = vextract.high.u32 %v939
      %v942 = vmul.u32 %v935, %v926
      %v943 = vadd.s32 %v938, %v940
      %vm944 = vc.u32 %v938, %v940
      %v945 = vadd.s32 %v941, 1
      %v946 = vsel %vm944, %v945, %v941
      %v947 = vadd.s32 %v942, %v946
      %v948 = vadd.s32 %v947, 536870912
      %v949 = vshrl.u32 %v948, 30
      %v950 = vshll.u32 %v949, 30
      %v951 = vsub.s32 %v947, %v950
      %vm952 = vcmp.lt.s32.totalorder %v951, 0
      %v953 = vsub.s32 0, %v951
      %v954 = vsel %vm952, %v953, %v951
      %v955 = vclz %v954
      %v956 = vsub.s32 %v955, 2
      %vm957 = vcmp.gt.s32.totalorder 0, %v956
      %v958 = vsel %vm957, 0, %v956
      %v959 = vsub.s32 32, %v958
      %v960 = vshll.u32 %v951, %v958
      %v961 = vshrl.u32 %v943, %v959
      %v962 = vor.u32 %v960, %v961
      %v963 = vsub.s32 4294967266, %v958
      %v964 = vadd.s32 %v963, 127
      %v965 = vshll.u32 %v964, 23
      %v966 = vor.u32 4788187, %v965
      %v967 = vand.u32 2147483647, %v966
      %v969 = vcvt.s32.f32 %v962
      %v970 = vmul.f32 %v969, %v967
      %v971 = vxor.u32 %v970, 2147483648
      %v972 = vsel %vm889, %v971, %v970
      %v973 = vsub.s32 4, %v949
      %v974 = vsel %vm889, %v973, %v949
      %v975 = vsel %vm888, %v443, %v972
      %v976 = vsel %vm888, 0, %v974
      %v977 = vcosq.f32.pop %v975
      %v978 = vsinq.f32.pop %v975
      %vm979 = vweird.f32 %v443
      %v980 = vadd.s32 %v976, 3
      %v981 = vand.u32 %v980, 3
      %vm982 = vcmp.lt.s32.totalorder %v981, 2
      %vm983 = vcmp.eq.s32.totalorder %v981, 0
      %v984 = vxor.u32 %v978, 2147483648
      %v985 = vsel %vm983, %v977, %v984
      %vm986 = vcmp.eq.s32.totalorder %v981, 2
      %v987 = vxor.u32 %v977, 2147483648
      %v988 = vsel %vm986, %v987, %v978
      %v989 = vsel %vm982, %v985, %v988
      %v990 = vsel %vm979, nan, %v989
      %v991 = vand.u32 2147483647, %v444
      %vm992 = vcmp.le.f32.partialorder %v991, 0.7853982
      %vm993 = vcmp.lt.s32.totalorder %v444, 0
      %v994 = vand.u32 %v444, 2139095040
      %v995 = vshrl.u32 %v994, 23
      %v996 = vsub.s32 %v995, 127
      %v997 = vand.u32 2147483647, %v444
      %v998 = vand.u32 %v997, 8388607
      %v999 = vor.u32 %v998, 8388608
      %v1000 = vsub.s32 0, %v999
      %v1001 = vadd.s32 %v996, 1
      %vm1002 = vcmp.gt.s32.totalorder %v1001, 0
      %v1003 = vsel %vm1002, %v1001, 0
      %v1004 = vshrl.u32 %v1003, 5
      %v1005 = vand.u32 %v1003, 31
      %v1006 = vsub.s32 32, %v1005
      %v1007 = vshrl.u32 683565275, %v1006
      %v1008 = vshll.u32 683565275, %v1005
      %v1009 = vshrl.u32 2475754826, %v1006
      %v1010 = vor.u32 %v1008, %v1009
      %v1011 = vshll.u32 2475754826, %v1005
      %v1012 = vshrl.u32 2131351028, %v1006
      %v1013 = vor.u32 %v1011, %v1012
      %v1014 = vshll.u32 2131351028, %v1005
      %v1015 = vshrl.u32 2102212464, %v1006
      %v1016 = vor.u32 %v1014, %v1015
      %v1017 = vshll.u32 2102212464, %v1005
      %v1018 = vshrl.u32 920167782, %v1006
      %v1019 = vor.u32 %v1017, %v1018
      %v1020 = vshll.u32 920167782, %v1005
      %v1021 = vshrl.u32 1326507024, %v1006
      %v1022 = vor.u32 %v1020, %v1021
      %vm1023 = vcmp.lt.s32.totalorder %v1004, 1
      %vm1024 = vcmp.lt.s32.totalorder %v1004, 2
      %vm1025 = vcmp.lt.s32.totalorder %v1004, 3
      %vm1026 = vcmp.lt.s32.totalorder %v1004, 4
      %v1027 = vsel %vm1023, %v1007, %v1010
      %v1028 = vsel %vm1026, %v1016, 2102212464
      %v1029 = vsel %vm1025, %v1013, %v1028
      %v1030 = vsel %vm1024, %v1027, %v1029
      %v1031 = vsel %vm1023, %v1010, %v1013
      %v1032 = vsel %vm1026, %v1019, 920167782
      %v1033 = vsel %vm1025, %v1016, %v1032
      %v1034 = vsel %vm1024, %v1031, %v1033
      %v1035 = vsel %vm1023, %v1013, %v1016
      %v1036 = vsel %vm1026, %v1022, 1326507024
      %v1037 = vsel %vm1025, %v1019, %v1036
      %v1038 = vsel %vm1024, %v1035, %v1037
      %v1039 = vshll.u32 %v999, 8
      %v1040 = vmul.u32.u64.compose %v1039, %v1038
      %v1041 = vextract.low.u32 %v1040
      %v1042 = vextract.high.u32 %v1040
      %v1043 = vmul.u32.u64.compose %v1039, %v1034
      %v1044 = vextract.low.u32 %v1043
      %v1045 = vextract.high.u32 %v1043
      %v1046 = vmul.u32 %v1039, %v1030
      %v1047 = vadd.s32 %v1042, %v1044
      %vm1048 = vc.u32 %v1042, %v1044
      %v1049 = vadd.s32 %v1045, 1
      %v1050 = vsel %vm1048, %v1049, %v1045
      %v1051 = vadd.s32 %v1046, %v1050
      %v1052 = vadd.s32 %v1051, 536870912
      %v1053 = vshrl.u32 %v1052, 30
      %v1054 = vshll.u32 %v1053, 30
      %v1055 = vsub.s32 %v1051, %v1054
      %vm1056 = vcmp.lt.s32.totalorder %v1055, 0
      %v1057 = vsub.s32 0, %v1055
      %v1058 = vsel %vm1056, %v1057, %v1055
      %v1059 = vclz %v1058
      %v1060 = vsub.s32 %v1059, 2
      %vm1061 = vcmp.gt.s32.totalorder 0, %v1060
      %v1062 = vsel %vm1061, 0, %v1060
      %v1063 = vsub.s32 32, %v1062
      %v1064 = vshll.u32 %v1055, %v1062
      %v1065 = vshrl.u32 %v1047, %v1063
      %v1066 = vor.u32 %v1064, %v1065
      %v1067 = vsub.s32 4294967266, %v1062
      %v1068 = vadd.s32 %v1067, 127
      %v1069 = vshll.u32 %v1068, 23
      %v1070 = vor.u32 4788187, %v1069
      %v1071 = vand.u32 2147483647, %v1070
      %v1073 = vcvt.s32.f32 %v1066
      %v1074 = vmul.f32 %v1073, %v1071
      %v1075 = vxor.u32 %v1074, 2147483648
      %v1076 = vsel %vm993, %v1075, %v1074
      %v1077 = vsub.s32 4, %v1053
      %v1078 = vsel %vm993, %v1077, %v1053
      %v1079 = vsel %vm992, %v444, %v1076
      %v1080 = vsel %vm992, 0, %v1078
      %v1081 = vcosq.f32.pop %v1079
      %v1082 = vsinq.f32.pop %v1079
      %vm1083 = vweird.f32 %v444
      %v1084 = vadd.s32 %v1080, 3
      %v1085 = vand.u32 %v1084, 3
      %vm1086 = vcmp.lt.s32.totalorder %v1085, 2
      %vm1087 = vcmp.eq.s32.totalorder %v1085, 0
      %v1088 = vxor.u32 %v1082, 2147483648
      %v1089 = vsel %vm1087, %v1081, %v1088
      %vm1090 = vcmp.eq.s32.totalorder %v1085, 2
      %v1091 = vxor.u32 %v1081, 2147483648
      %v1092 = vsel %vm1090, %v1091, %v1082
      %v1093 = vsel %vm1086, %v1089, %v1092
      %v1094 = vsel %vm1083, nan, %v1093
      %v1095 = vand.u32 2147483647, %v445
      %vm1096 = vcmp.le.f32.partialorder %v1095, 0.7853982
      %vm1097 = vcmp.lt.s32.totalorder %v445, 0
      %v1098 = vand.u32 %v445, 2139095040
      %v1099 = vshrl.u32 %v1098, 23
      %v1100 = vsub.s32 %v1099, 127
      %v1101 = vand.u32 2147483647, %v445
      %v1102 = vand.u32 %v1101, 8388607
      %v1103 = vor.u32 %v1102, 8388608
      %v1104 = vsub.s32 0, %v1103
      %v1105 = vadd.s32 %v1100, 1
      %vm1106 = vcmp.gt.s32.totalorder %v1105, 0
      %v1107 = vsel %vm1106, %v1105, 0
      %v1108 = vshrl.u32 %v1107, 5
      %v1109 = vand.u32 %v1107, 31
      %v1110 = vsub.s32 32, %v1109
      %v1111 = vshrl.u32 683565275, %v1110
      %v1112 = vshll.u32 683565275, %v1109
      %v1113 = vshrl.u32 2475754826, %v1110
      %v1114 = vor.u32 %v1112, %v1113
      %v1115 = vshll.u32 2475754826, %v1109
      %v1116 = vshrl.u32 2131351028, %v1110
      %v1117 = vor.u32 %v1115, %v1116
      %v1118 = vshll.u32 2131351028, %v1109
      %v1119 = vshrl.u32 2102212464, %v1110
      %v1120 = vor.u32 %v1118, %v1119
      %v1121 = vshll.u32 2102212464, %v1109
      %v1122 = vshrl.u32 920167782, %v1110
      %v1123 = vor.u32 %v1121, %v1122
      %v1124 = vshll.u32 920167782, %v1109
      %v1125 = vshrl.u32 1326507024, %v1110
      %v1126 = vor.u32 %v1124, %v1125
      %vm1127 = vcmp.lt.s32.totalorder %v1108, 1
      %vm1128 = vcmp.lt.s32.totalorder %v1108, 2
      %vm1129 = vcmp.lt.s32.totalorder %v1108, 3
      %vm1130 = vcmp.lt.s32.totalorder %v1108, 4
      %v1131 = vsel %vm1127, %v1111, %v1114
      %v1132 = vsel %vm1130, %v1120, 2102212464
      %v1133 = vsel %vm1129, %v1117, %v1132
      %v1134 = vsel %vm1128, %v1131, %v1133
      %v1135 = vsel %vm1127, %v1114, %v1117
      %v1136 = vsel %vm1130, %v1123, 920167782
      %v1137 = vsel %vm1129, %v1120, %v1136
      %v1138 = vsel %vm1128, %v1135, %v1137
      %v1139 = vsel %vm1127, %v1117, %v1120
      %v1140 = vsel %vm1130, %v1126, 1326507024
      %v1141 = vsel %vm1129, %v1123, %v1140
      %v1142 = vsel %vm1128, %v1139, %v1141
      %v1143 = vshll.u32 %v1103, 8
      %v1144 = vmul.u32.u64.compose %v1143, %v1142
      %v1145 = vextract.low.u32 %v1144
      %v1146 = vextract.high.u32 %v1144
      %v1147 = vmul.u32.u64.compose %v1143, %v1138
      %v1148 = vextract.low.u32 %v1147
      %v1149 = vextract.high.u32 %v1147
      %v1150 = vmul.u32 %v1143, %v1134
      %v1151 = vadd.s32 %v1146, %v1148
      %vm1152 = vc.u32 %v1146, %v1148
      %v1153 = vadd.s32 %v1149, 1
      %v1154 = vsel %vm1152, %v1153, %v1149
      %v1155 = vadd.s32 %v1150, %v1154
      %v1156 = vadd.s32 %v1155, 536870912
      %v1157 = vshrl.u32 %v1156, 30
      %v1158 = vshll.u32 %v1157, 30
      %v1159 = vsub.s32 %v1155, %v1158
      %vm1160 = vcmp.lt.s32.totalorder %v1159, 0
      %v1161 = vsub.s32 0, %v1159
      %v1162 = vsel %vm1160, %v1161, %v1159
      %v1163 = vclz %v1162
      %v1164 = vsub.s32 %v1163, 2
      %vm1165 = vcmp.gt.s32.totalorder 0, %v1164
      %v1166 = vsel %vm1165, 0, %v1164
      %v1167 = vsub.s32 32, %v1166
      %v1168 = vshll.u32 %v1159, %v1166
      %v1169 = vshrl.u32 %v1151, %v1167
      %v1170 = vor.u32 %v1168, %v1169
      %v1171 = vsub.s32 4294967266, %v1166
      %v1172 = vadd.s32 %v1171, 127
      %v1173 = vshll.u32 %v1172, 23
      %v1174 = vor.u32 4788187, %v1173
      %v1175 = vand.u32 2147483647, %v1174
      %v1177 = vcvt.s32.f32 %v1170
      %v1178 = vmul.f32 %v1177, %v1175
      %v1179 = vxor.u32 %v1178, 2147483648
      %v1180 = vsel %vm1097, %v1179, %v1178
      %v1181 = vsub.s32 4, %v1157
      %v1182 = vsel %vm1097, %v1181, %v1157
      %v1183 = vsel %vm1096, %v445, %v1180
      %v1184 = vsel %vm1096, 0, %v1182
      %v1185 = vcosq.f32.pop %v1183
      %v1186 = vsinq.f32.pop %v1183
      %vm1187 = vweird.f32 %v445
      %v1188 = vadd.s32 %v1184, 3
      %v1189 = vand.u32 %v1188, 3
      %vm1190 = vcmp.lt.s32.totalorder %v1189, 2
      %vm1191 = vcmp.eq.s32.totalorder %v1189, 0
      %v1192 = vxor.u32 %v1186, 2147483648
      %v1193 = vsel %vm1191, %v1185, %v1192
      %vm1194 = vcmp.eq.s32.totalorder %v1189, 2
      %v1195 = vxor.u32 %v1185, 2147483648
      %v1196 = vsel %vm1194, %v1195, %v1186
      %v1197 = vsel %vm1190, %v1193, %v1196
      %v1198 = vsel %vm1187, nan, %v1197
      %v1199 = vand.u32 2147483647, %v446
      %vm1200 = vcmp.le.f32.partialorder %v1199, 0.7853982
      %vm1201 = vcmp.lt.s32.totalorder %v446, 0
      %v1202 = vand.u32 %v446, 2139095040
      %v1203 = vshrl.u32 %v1202, 23
      %v1204 = vsub.s32 %v1203, 127
      %v1205 = vand.u32 2147483647, %v446
      %v1206 = vand.u32 %v1205, 8388607
      %v1207 = vor.u32 %v1206, 8388608
      %v1208 = vsub.s32 0, %v1207
      %v1209 = vadd.s32 %v1204, 1
      %vm1210 = vcmp.gt.s32.totalorder %v1209, 0
      %v1211 = vsel %vm1210, %v1209, 0
      %v1212 = vshrl.u32 %v1211, 5
      %v1213 = vand.u32 %v1211, 31
      %v1214 = vsub.s32 32, %v1213
      %v1215 = vshrl.u32 683565275, %v1214
      %v1216 = vshll.u32 683565275, %v1213
      %v1217 = vshrl.u32 2475754826, %v1214
      %v1218 = vor.u32 %v1216, %v1217
      %v1219 = vshll.u32 2475754826, %v1213
      %v1220 = vshrl.u32 2131351028, %v1214
      %v1221 = vor.u32 %v1219, %v1220
      %v1222 = vshll.u32 2131351028, %v1213
      %v1223 = vshrl.u32 2102212464, %v1214
      %v1224 = vor.u32 %v1222, %v1223
      %v1225 = vshll.u32 2102212464, %v1213
      %v1226 = vshrl.u32 920167782, %v1214
      %v1227 = vor.u32 %v1225, %v1226
      %v1228 = vshll.u32 920167782, %v1213
      %v1229 = vshrl.u32 1326507024, %v1214
      %v1230 = vor.u32 %v1228, %v1229
      %vm1231 = vcmp.lt.s32.totalorder %v1212, 1
      %vm1232 = vcmp.lt.s32.totalorder %v1212, 2
      %vm1233 = vcmp.lt.s32.totalorder %v1212, 3
      %vm1234 = vcmp.lt.s32.totalorder %v1212, 4
      %v1235 = vsel %vm1231, %v1215, %v1218
      %v1236 = vsel %vm1234, %v1224, 2102212464
      %v1237 = vsel %vm1233, %v1221, %v1236
      %v1238 = vsel %vm1232, %v1235, %v1237
      %v1239 = vsel %vm1231, %v1218, %v1221
      %v1240 = vsel %vm1234, %v1227, 920167782
      %v1241 = vsel %vm1233, %v1224, %v1240
      %v1242 = vsel %vm1232, %v1239, %v1241
      %v1243 = vsel %vm1231, %v1221, %v1224
      %v1244 = vsel %vm1234, %v1230, 1326507024
      %v1245 = vsel %vm1233, %v1227, %v1244
      %v1246 = vsel %vm1232, %v1243, %v1245
      %v1247 = vshll.u32 %v1207, 8
      %v1248 = vmul.u32.u64.compose %v1247, %v1246
      %v1249 = vextract.low.u32 %v1248
      %v1250 = vextract.high.u32 %v1248
      %v1251 = vmul.u32.u64.compose %v1247, %v1242
      %v1252 = vextract.low.u32 %v1251
      %v1253 = vextract.high.u32 %v1251
      %v1254 = vmul.u32 %v1247, %v1238
      %v1255 = vadd.s32 %v1250, %v1252
      %vm1256 = vc.u32 %v1250, %v1252
      %v1257 = vadd.s32 %v1253, 1
      %v1258 = vsel %vm1256, %v1257, %v1253
      %v1259 = vadd.s32 %v1254, %v1258
      %v1260 = vadd.s32 %v1259, 536870912
      %v1261 = vshrl.u32 %v1260, 30
      %v1262 = vshll.u32 %v1261, 30
      %v1263 = vsub.s32 %v1259, %v1262
      %vm1264 = vcmp.lt.s32.totalorder %v1263, 0
      %v1265 = vsub.s32 0, %v1263
      %v1266 = vsel %vm1264, %v1265, %v1263
      %v1267 = vclz %v1266
      %v1268 = vsub.s32 %v1267, 2
      %vm1269 = vcmp.gt.s32.totalorder 0, %v1268
      %v1270 = vsel %vm1269, 0, %v1268
      %v1271 = vsub.s32 32, %v1270
      %v1272 = vshll.u32 %v1263, %v1270
      %v1273 = vshrl.u32 %v1255, %v1271
      %v1274 = vor.u32 %v1272, %v1273
      %v1275 = vsub.s32 4294967266, %v1270
      %v1276 = vadd.s32 %v1275, 127
      %v1277 = vshll.u32 %v1276, 23
      %v1278 = vor.u32 4788187, %v1277
      %v1279 = vand.u32 2147483647, %v1278
      %v1281 = vcvt.s32.f32 %v1274
      %v1282 = vmul.f32 %v1281, %v1279
      %v1283 = vxor.u32 %v1282, 2147483648
      %v1284 = vsel %vm1201, %v1283, %v1282
      %v1285 = vsub.s32 4, %v1261
      %v1286 = vsel %vm1201, %v1285, %v1261
      %v1287 = vsel %vm1200, %v446, %v1284
      %v1288 = vsel %vm1200, 0, %v1286
      %v1289 = vcosq.f32.pop %v1287
      %v1290 = vsinq.f32.pop %v1287
      %vm1291 = vweird.f32 %v446
      %v1292 = vadd.s32 %v1288, 3
      %v1293 = vand.u32 %v1292, 3
      %vm1294 = vcmp.lt.s32.totalorder %v1293, 2
      %vm1295 = vcmp.eq.s32.totalorder %v1293, 0
      %v1296 = vxor.u32 %v1290, 2147483648
      %v1297 = vsel %vm1295, %v1289, %v1296
      %vm1298 = vcmp.eq.s32.totalorder %v1293, 2
      %v1299 = vxor.u32 %v1289, 2147483648
      %v1300 = vsel %vm1298, %v1299, %v1290
      %v1301 = vsel %vm1294, %v1297, %v1300
      %v1302 = vsel %vm1291, nan, %v1301
      %v1303 = vand.u32 2147483647, %v447
      %vm1304 = vcmp.le.f32.partialorder %v1303, 0.7853982
      %vm1305 = vcmp.lt.s32.totalorder %v447, 0
      %v1306 = vand.u32 %v447, 2139095040
      %v1307 = vshrl.u32 %v1306, 23
      %v1308 = vsub.s32 %v1307, 127
      %v1309 = vand.u32 2147483647, %v447
      %v1310 = vand.u32 %v1309, 8388607
      %v1311 = vor.u32 %v1310, 8388608
      %v1312 = vsub.s32 0, %v1311
      %v1313 = vadd.s32 %v1308, 1
      %vm1314 = vcmp.gt.s32.totalorder %v1313, 0
      %v1315 = vsel %vm1314, %v1313, 0
      %v1316 = vshrl.u32 %v1315, 5
      %v1317 = vand.u32 %v1315, 31
      %v1318 = vsub.s32 32, %v1317
      %v1319 = vshrl.u32 683565275, %v1318
      %v1320 = vshll.u32 683565275, %v1317
      %v1321 = vshrl.u32 2475754826, %v1318
      %v1322 = vor.u32 %v1320, %v1321
      %v1323 = vshll.u32 2475754826, %v1317
      %v1324 = vshrl.u32 2131351028, %v1318
      %v1325 = vor.u32 %v1323, %v1324
      %v1326 = vshll.u32 2131351028, %v1317
      %v1327 = vshrl.u32 2102212464, %v1318
      %v1328 = vor.u32 %v1326, %v1327
      %v1329 = vshll.u32 2102212464, %v1317
      %v1330 = vshrl.u32 920167782, %v1318
      %v1331 = vor.u32 %v1329, %v1330
      %v1332 = vshll.u32 920167782, %v1317
      %v1333 = vshrl.u32 1326507024, %v1318
      %v1334 = vor.u32 %v1332, %v1333
      %vm1335 = vcmp.lt.s32.totalorder %v1316, 1
      %vm1336 = vcmp.lt.s32.totalorder %v1316, 2
      %vm1337 = vcmp.lt.s32.totalorder %v1316, 3
      %vm1338 = vcmp.lt.s32.totalorder %v1316, 4
      %v1339 = vsel %vm1335, %v1319, %v1322
      %v1340 = vsel %vm1338, %v1328, 2102212464
      %v1341 = vsel %vm1337, %v1325, %v1340
      %v1342 = vsel %vm1336, %v1339, %v1341
      %v1343 = vsel %vm1335, %v1322, %v1325
      %v1344 = vsel %vm1338, %v1331, 920167782
      %v1345 = vsel %vm1337, %v1328, %v1344
      %v1346 = vsel %vm1336, %v1343, %v1345
      %v1347 = vsel %vm1335, %v1325, %v1328
      %v1348 = vsel %vm1338, %v1334, 1326507024
      %v1349 = vsel %vm1337, %v1331, %v1348
      %v1350 = vsel %vm1336, %v1347, %v1349
      %v1351 = vshll.u32 %v1311, 8
      %v1352 = vmul.u32.u64.compose %v1351, %v1350
      %v1353 = vextract.low.u32 %v1352
      %v1354 = vextract.high.u32 %v1352
      %v1355 = vmul.u32.u64.compose %v1351, %v1346
      %v1356 = vextract.low.u32 %v1355
      %v1357 = vextract.high.u32 %v1355
      %v1358 = vmul.u32 %v1351, %v1342
      %v1359 = vadd.s32 %v1354, %v1356
      %vm1360 = vc.u32 %v1354, %v1356
      %v1361 = vadd.s32 %v1357, 1
      %v1362 = vsel %vm1360, %v1361, %v1357
      %v1363 = vadd.s32 %v1358, %v1362
      %v1364 = vadd.s32 %v1363, 536870912
      %v1365 = vshrl.u32 %v1364, 30
      %v1366 = vshll.u32 %v1365, 30
      %v1367 = vsub.s32 %v1363, %v1366
      %vm1368 = vcmp.lt.s32.totalorder %v1367, 0
      %v1369 = vsub.s32 0, %v1367
      %v1370 = vsel %vm1368, %v1369, %v1367
      %v1371 = vclz %v1370
      %v1372 = vsub.s32 %v1371, 2
      %vm1373 = vcmp.gt.s32.totalorder 0, %v1372
      %v1374 = vsel %vm1373, 0, %v1372
      %v1375 = vsub.s32 32, %v1374
      %v1376 = vshll.u32 %v1367, %v1374
      %v1377 = vshrl.u32 %v1359, %v1375
      %v1378 = vor.u32 %v1376, %v1377
      %v1379 = vsub.s32 4294967266, %v1374
      %v1380 = vadd.s32 %v1379, 127
      %v1381 = vshll.u32 %v1380, 23
      %v1382 = vor.u32 4788187, %v1381
      %v1383 = vand.u32 2147483647, %v1382
      %v1385 = vcvt.s32.f32 %v1378
      %v1386 = vmul.f32 %v1385, %v1383
      %v1387 = vxor.u32 %v1386, 2147483648
      %v1388 = vsel %vm1305, %v1387, %v1386
      %v1389 = vsub.s32 4, %v1365
      %v1390 = vsel %vm1305, %v1389, %v1365
      %v1391 = vsel %vm1304, %v447, %v1388
      %v1392 = vsel %vm1304, 0, %v1390
      %v1393 = vcosq.f32.pop %v1391
      %v1394 = vsinq.f32.pop %v1391
      %vm1395 = vweird.f32 %v447
      %v1396 = vadd.s32 %v1392, 3
      %v1397 = vand.u32 %v1396, 3
      %vm1398 = vcmp.lt.s32.totalorder %v1397, 2
      %vm1399 = vcmp.eq.s32.totalorder %v1397, 0
      %v1400 = vxor.u32 %v1394, 2147483648
      %v1401 = vsel %vm1399, %v1393, %v1400
      %vm1402 = vcmp.eq.s32.totalorder %v1397, 2
      %v1403 = vxor.u32 %v1393, 2147483648
      %v1404 = vsel %vm1402, %v1403, %v1394
      %v1405 = vsel %vm1398, %v1401, %v1404
      %v1406 = vsel %vm1395, nan, %v1405
      %v1407 = vand.u32 2147483647, %v448
      %vm1408 = vcmp.le.f32.partialorder %v1407, 0.7853982
      %vm1409 = vcmp.lt.s32.totalorder %v448, 0
      %v1410 = vand.u32 %v448, 2139095040
      %v1411 = vshrl.u32 %v1410, 23
      %v1412 = vsub.s32 %v1411, 127
      %v1413 = vand.u32 2147483647, %v448
      %v1414 = vand.u32 %v1413, 8388607
      %v1415 = vor.u32 %v1414, 8388608
      %v1416 = vsub.s32 0, %v1415
      %v1417 = vadd.s32 %v1412, 1
      %vm1418 = vcmp.gt.s32.totalorder %v1417, 0
      %v1419 = vsel %vm1418, %v1417, 0
      %v1420 = vshrl.u32 %v1419, 5
      %v1421 = vand.u32 %v1419, 31
      %v1422 = vsub.s32 32, %v1421
      %v1423 = vshrl.u32 683565275, %v1422
      %v1424 = vshll.u32 683565275, %v1421
      %v1425 = vshrl.u32 2475754826, %v1422
      %v1426 = vor.u32 %v1424, %v1425
      %v1427 = vshll.u32 2475754826, %v1421
      %v1428 = vshrl.u32 2131351028, %v1422
      %v1429 = vor.u32 %v1427, %v1428
      %v1430 = vshll.u32 2131351028, %v1421
      %v1431 = vshrl.u32 2102212464, %v1422
      %v1432 = vor.u32 %v1430, %v1431
      %v1433 = vshll.u32 2102212464, %v1421
      %v1434 = vshrl.u32 920167782, %v1422
      %v1435 = vor.u32 %v1433, %v1434
      %v1436 = vshll.u32 920167782, %v1421
      %v1437 = vshrl.u32 1326507024, %v1422
      %v1438 = vor.u32 %v1436, %v1437
      %vm1439 = vcmp.lt.s32.totalorder %v1420, 1
      %vm1440 = vcmp.lt.s32.totalorder %v1420, 2
      %vm1441 = vcmp.lt.s32.totalorder %v1420, 3
      %vm1442 = vcmp.lt.s32.totalorder %v1420, 4
      %v1443 = vsel %vm1439, %v1423, %v1426
      %v1444 = vsel %vm1442, %v1432, 2102212464
      %v1445 = vsel %vm1441, %v1429, %v1444
      %v1446 = vsel %vm1440, %v1443, %v1445
      %v1447 = vsel %vm1439, %v1426, %v1429
      %v1448 = vsel %vm1442, %v1435, 920167782
      %v1449 = vsel %vm1441, %v1432, %v1448
      %v1450 = vsel %vm1440, %v1447, %v1449
      %v1451 = vsel %vm1439, %v1429, %v1432
      %v1452 = vsel %vm1442, %v1438, 1326507024
      %v1453 = vsel %vm1441, %v1435, %v1452
      %v1454 = vsel %vm1440, %v1451, %v1453
      %v1455 = vshll.u32 %v1415, 8
      %v1456 = vmul.u32.u64.compose %v1455, %v1454
      %v1457 = vextract.low.u32 %v1456
      %v1458 = vextract.high.u32 %v1456
      %v1459 = vmul.u32.u64.compose %v1455, %v1450
      %v1460 = vextract.low.u32 %v1459
      %v1461 = vextract.high.u32 %v1459
      %v1462 = vmul.u32 %v1455, %v1446
      %v1463 = vadd.s32 %v1458, %v1460
      %vm1464 = vc.u32 %v1458, %v1460
      %v1465 = vadd.s32 %v1461, 1
      %v1466 = vsel %vm1464, %v1465, %v1461
      %v1467 = vadd.s32 %v1462, %v1466
      %v1468 = vadd.s32 %v1467, 536870912
      %v1469 = vshrl.u32 %v1468, 30
      %v1470 = vshll.u32 %v1469, 30
      %v1471 = vsub.s32 %v1467, %v1470
      %vm1472 = vcmp.lt.s32.totalorder %v1471, 0
      %v1473 = vsub.s32 0, %v1471
      %v1474 = vsel %vm1472, %v1473, %v1471
      %v1475 = vclz %v1474
      %v1476 = vsub.s32 %v1475, 2
      %vm1477 = vcmp.gt.s32.totalorder 0, %v1476
      %v1478 = vsel %vm1477, 0, %v1476
      %v1479 = vsub.s32 32, %v1478
      %v1480 = vshll.u32 %v1471, %v1478
      %v1481 = vshrl.u32 %v1463, %v1479
      %v1482 = vor.u32 %v1480, %v1481
      %v1483 = vsub.s32 4294967266, %v1478
      %v1484 = vadd.s32 %v1483, 127
      %v1485 = vshll.u32 %v1484, 23
      %v1486 = vor.u32 4788187, %v1485
      %v1487 = vand.u32 2147483647, %v1486
      %v1489 = vcvt.s32.f32 %v1482
      %v1490 = vmul.f32 %v1489, %v1487
      %v1491 = vxor.u32 %v1490, 2147483648
      %v1492 = vsel %vm1409, %v1491, %v1490
      %v1493 = vsub.s32 4, %v1469
      %v1494 = vsel %vm1409, %v1493, %v1469
      %v1495 = vsel %vm1408, %v448, %v1492
      %v1496 = vsel %vm1408, 0, %v1494
      %v1497 = vcosq.f32.pop %v1495
      %v1498 = vsinq.f32.pop %v1495
      %vm1499 = vweird.f32 %v448
      %v1500 = vadd.s32 %v1496, 3
      %v1501 = vand.u32 %v1500, 3
      %vm1502 = vcmp.lt.s32.totalorder %v1501, 2
      %vm1503 = vcmp.eq.s32.totalorder %v1501, 0
      %v1504 = vxor.u32 %v1498, 2147483648
      %v1505 = vsel %vm1503, %v1497, %v1504
      %vm1506 = vcmp.eq.s32.totalorder %v1501, 2
      %v1507 = vxor.u32 %v1497, 2147483648
      %v1508 = vsel %vm1506, %v1507, %v1498
      %v1509 = vsel %vm1502, %v1505, %v1508
      %v1510 = vsel %vm1499, nan, %v1509
      %v1511 = vand.u32 2147483647, %v449
      %vm1512 = vcmp.le.f32.partialorder %v1511, 0.7853982
      %vm1513 = vcmp.lt.s32.totalorder %v449, 0
      %v1514 = vand.u32 %v449, 2139095040
      %v1515 = vshrl.u32 %v1514, 23
      %v1516 = vsub.s32 %v1515, 127
      %v1517 = vand.u32 2147483647, %v449
      %v1518 = vand.u32 %v1517, 8388607
      %v1519 = vor.u32 %v1518, 8388608
      %v1520 = vsub.s32 0, %v1519
      %v1521 = vadd.s32 %v1516, 1
      %vm1522 = vcmp.gt.s32.totalorder %v1521, 0
      %v1523 = vsel %vm1522, %v1521, 0
      %v1524 = vshrl.u32 %v1523, 5
      %v1525 = vand.u32 %v1523, 31
      %v1526 = vsub.s32 32, %v1525
      %v1527 = vshrl.u32 683565275, %v1526
      %v1528 = vshll.u32 683565275, %v1525
      %v1529 = vshrl.u32 2475754826, %v1526
      %v1530 = vor.u32 %v1528, %v1529
      %v1531 = vshll.u32 2475754826, %v1525
      %v1532 = vshrl.u32 2131351028, %v1526
      %v1533 = vor.u32 %v1531, %v1532
      %v1534 = vshll.u32 2131351028, %v1525
      %v1535 = vshrl.u32 2102212464, %v1526
      %v1536 = vor.u32 %v1534, %v1535
      %v1537 = vshll.u32 2102212464, %v1525
      %v1538 = vshrl.u32 920167782, %v1526
      %v1539 = vor.u32 %v1537, %v1538
      %v1540 = vshll.u32 920167782, %v1525
      %v1541 = vshrl.u32 1326507024, %v1526
      %v1542 = vor.u32 %v1540, %v1541
      %vm1543 = vcmp.lt.s32.totalorder %v1524, 1
      %vm1544 = vcmp.lt.s32.totalorder %v1524, 2
      %vm1545 = vcmp.lt.s32.totalorder %v1524, 3
      %vm1546 = vcmp.lt.s32.totalorder %v1524, 4
      %v1547 = vsel %vm1543, %v1527, %v1530
      %v1548 = vsel %vm1546, %v1536, 2102212464
      %v1549 = vsel %vm1545, %v1533, %v1548
      %v1550 = vsel %vm1544, %v1547, %v1549
      %v1551 = vsel %vm1543, %v1530, %v1533
      %v1552 = vsel %vm1546, %v1539, 920167782
      %v1553 = vsel %vm1545, %v1536, %v1552
      %v1554 = vsel %vm1544, %v1551, %v1553
      %v1555 = vsel %vm1543, %v1533, %v1536
      %v1556 = vsel %vm1546, %v1542, 1326507024
      %v1557 = vsel %vm1545, %v1539, %v1556
      %v1558 = vsel %vm1544, %v1555, %v1557
      %v1559 = vshll.u32 %v1519, 8
      %v1560 = vmul.u32.u64.compose %v1559, %v1558
      %v1561 = vextract.low.u32 %v1560
      %v1562 = vextract.high.u32 %v1560
      %v1563 = vmul.u32.u64.compose %v1559, %v1554
      %v1564 = vextract.low.u32 %v1563
      %v1565 = vextract.high.u32 %v1563
      %v1566 = vmul.u32 %v1559, %v1550
      %v1567 = vadd.s32 %v1562, %v1564
      %vm1568 = vc.u32 %v1562, %v1564
      %v1569 = vadd.s32 %v1565, 1
      %v1570 = vsel %vm1568, %v1569, %v1565
      %v1571 = vadd.s32 %v1566, %v1570
      %v1572 = vadd.s32 %v1571, 536870912
      %v1573 = vshrl.u32 %v1572, 30
      %v1574 = vshll.u32 %v1573, 30
      %v1575 = vsub.s32 %v1571, %v1574
      %vm1576 = vcmp.lt.s32.totalorder %v1575, 0
      %v1577 = vsub.s32 0, %v1575
      %v1578 = vsel %vm1576, %v1577, %v1575
      %v1579 = vclz %v1578
      %v1580 = vsub.s32 %v1579, 2
      %vm1581 = vcmp.gt.s32.totalorder 0, %v1580
      %v1582 = vsel %vm1581, 0, %v1580
      %v1583 = vsub.s32 32, %v1582
      %v1584 = vshll.u32 %v1575, %v1582
      %v1585 = vshrl.u32 %v1567, %v1583
      %v1586 = vor.u32 %v1584, %v1585
      %v1587 = vsub.s32 4294967266, %v1582
      %v1588 = vadd.s32 %v1587, 127
      %v1589 = vshll.u32 %v1588, 23
      %v1590 = vor.u32 4788187, %v1589
      %v1591 = vand.u32 2147483647, %v1590
      %v1593 = vcvt.s32.f32 %v1586
      %v1594 = vmul.f32 %v1593, %v1591
      %v1595 = vxor.u32 %v1594, 2147483648
      %v1596 = vsel %vm1513, %v1595, %v1594
      %v1597 = vsub.s32 4, %v1573
      %v1598 = vsel %vm1513, %v1597, %v1573
      %v1599 = vsel %vm1512, %v449, %v1596
      %v1600 = vsel %vm1512, 0, %v1598
      %v1601 = vcosq.f32.pop %v1599
      %v1602 = vsinq.f32.pop %v1599
      %vm1603 = vweird.f32 %v449
      %v1604 = vadd.s32 %v1600, 3
      %v1605 = vand.u32 %v1604, 3
      %vm1606 = vcmp.lt.s32.totalorder %v1605, 2
      %vm1607 = vcmp.eq.s32.totalorder %v1605, 0
      %v1608 = vxor.u32 %v1602, 2147483648
      %v1609 = vsel %vm1607, %v1601, %v1608
      %vm1610 = vcmp.eq.s32.totalorder %v1605, 2
      %v1611 = vxor.u32 %v1601, 2147483648
      %v1612 = vsel %vm1610, %v1611, %v1602
      %v1613 = vsel %vm1606, %v1609, %v1612
      %v1614 = vsel %vm1603, nan, %v1613
      %v1615 = vand.u32 2147483647, %v450
      %vm1616 = vcmp.le.f32.partialorder %v1615, 0.7853982
      %vm1617 = vcmp.lt.s32.totalorder %v450, 0
      %v1618 = vand.u32 %v450, 2139095040
      %v1619 = vshrl.u32 %v1618, 23
      %v1620 = vsub.s32 %v1619, 127
      %v1621 = vand.u32 2147483647, %v450
      %v1622 = vand.u32 %v1621, 8388607
      %v1623 = vor.u32 %v1622, 8388608
      %v1624 = vsub.s32 0, %v1623
      %v1625 = vadd.s32 %v1620, 1
      %vm1626 = vcmp.gt.s32.totalorder %v1625, 0
      %v1627 = vsel %vm1626, %v1625, 0
      %v1628 = vshrl.u32 %v1627, 5
      %v1629 = vand.u32 %v1627, 31
      %v1630 = vsub.s32 32, %v1629
      %v1631 = vshrl.u32 683565275, %v1630
      %v1632 = vshll.u32 683565275, %v1629
      %v1633 = vshrl.u32 2475754826, %v1630
      %v1634 = vor.u32 %v1632, %v1633
      %v1635 = vshll.u32 2475754826, %v1629
      %v1636 = vshrl.u32 2131351028, %v1630
      %v1637 = vor.u32 %v1635, %v1636
      %v1638 = vshll.u32 2131351028, %v1629
      %v1639 = vshrl.u32 2102212464, %v1630
      %v1640 = vor.u32 %v1638, %v1639
      %v1641 = vshll.u32 2102212464, %v1629
      %v1642 = vshrl.u32 920167782, %v1630
      %v1643 = vor.u32 %v1641, %v1642
      %v1644 = vshll.u32 920167782, %v1629
      %v1645 = vshrl.u32 1326507024, %v1630
      %v1646 = vor.u32 %v1644, %v1645
      %vm1647 = vcmp.lt.s32.totalorder %v1628, 1
      %vm1648 = vcmp.lt.s32.totalorder %v1628, 2
      %vm1649 = vcmp.lt.s32.totalorder %v1628, 3
      %vm1650 = vcmp.lt.s32.totalorder %v1628, 4
      %v1651 = vsel %vm1647, %v1631, %v1634
      %v1652 = vsel %vm1650, %v1640, 2102212464
      %v1653 = vsel %vm1649, %v1637, %v1652
      %v1654 = vsel %vm1648, %v1651, %v1653
      %v1655 = vsel %vm1647, %v1634, %v1637
      %v1656 = vsel %vm1650, %v1643, 920167782
      %v1657 = vsel %vm1649, %v1640, %v1656
      %v1658 = vsel %vm1648, %v1655, %v1657
      %v1659 = vsel %vm1647, %v1637, %v1640
      %v1660 = vsel %vm1650, %v1646, 1326507024
      %v1661 = vsel %vm1649, %v1643, %v1660
      %v1662 = vsel %vm1648, %v1659, %v1661
      %v1663 = vshll.u32 %v1623, 8
      %v1664 = vmul.u32.u64.compose %v1663, %v1662
      %v1665 = vextract.low.u32 %v1664
      %v1666 = vextract.high.u32 %v1664
      %v1667 = vmul.u32.u64.compose %v1663, %v1658
      %v1668 = vextract.low.u32 %v1667
      %v1669 = vextract.high.u32 %v1667
      %v1670 = vmul.u32 %v1663, %v1654
      %v1671 = vadd.s32 %v1666, %v1668
      %vm1672 = vc.u32 %v1666, %v1668
      %v1673 = vadd.s32 %v1669, 1
      %v1674 = vsel %vm1672, %v1673, %v1669
      %v1675 = vadd.s32 %v1670, %v1674
      %v1676 = vadd.s32 %v1675, 536870912
      %v1677 = vshrl.u32 %v1676, 30
      %v1678 = vshll.u32 %v1677, 30
      %v1679 = vsub.s32 %v1675, %v1678
      %vm1680 = vcmp.lt.s32.totalorder %v1679, 0
      %v1681 = vsub.s32 0, %v1679
      %v1682 = vsel %vm1680, %v1681, %v1679
      %v1683 = vclz %v1682
      %v1684 = vsub.s32 %v1683, 2
      %vm1685 = vcmp.gt.s32.totalorder 0, %v1684
      %v1686 = vsel %vm1685, 0, %v1684
      %v1687 = vsub.s32 32, %v1686
      %v1688 = vshll.u32 %v1679, %v1686
      %v1689 = vshrl.u32 %v1671, %v1687
      %v1690 = vor.u32 %v1688, %v1689
      %v1691 = vsub.s32 4294967266, %v1686
      %v1692 = vadd.s32 %v1691, 127
      %v1693 = vshll.u32 %v1692, 23
      %v1694 = vor.u32 4788187, %v1693
      %v1695 = vand.u32 2147483647, %v1694
      %v1697 = vcvt.s32.f32 %v1690
      %v1698 = vmul.f32 %v1697, %v1695
      %v1699 = vxor.u32 %v1698, 2147483648
      %v1700 = vsel %vm1617, %v1699, %v1698
      %v1701 = vsub.s32 4, %v1677
      %v1702 = vsel %vm1617, %v1701, %v1677
      %v1703 = vsel %vm1616, %v450, %v1700
      %v1704 = vsel %vm1616, 0, %v1702
      %v1705 = vcosq.f32.pop %v1703
      %v1706 = vsinq.f32.pop %v1703
      %vm1707 = vweird.f32 %v450
      %v1708 = vadd.s32 %v1704, 3
      %v1709 = vand.u32 %v1708, 3
      %vm1710 = vcmp.lt.s32.totalorder %v1709, 2
      %vm1711 = vcmp.eq.s32.totalorder %v1709, 0
      %v1712 = vxor.u32 %v1706, 2147483648
      %v1713 = vsel %vm1711, %v1705, %v1712
      %vm1714 = vcmp.eq.s32.totalorder %v1709, 2
      %v1715 = vxor.u32 %v1705, 2147483648
      %v1716 = vsel %vm1714, %v1715, %v1706
      %v1717 = vsel %vm1710, %v1713, %v1716
      %v1718 = vsel %vm1707, nan, %v1717
      %v1719 = vand.u32 2147483647, %v451
      %vm1720 = vcmp.le.f32.partialorder %v1719, 0.7853982
      %vm1721 = vcmp.lt.s32.totalorder %v451, 0
      %v1722 = vand.u32 %v451, 2139095040
      %v1723 = vshrl.u32 %v1722, 23
      %v1724 = vsub.s32 %v1723, 127
      %v1725 = vand.u32 2147483647, %v451
      %v1726 = vand.u32 %v1725, 8388607
      %v1727 = vor.u32 %v1726, 8388608
      %v1728 = vsub.s32 0, %v1727
      %v1729 = vadd.s32 %v1724, 1
      %vm1730 = vcmp.gt.s32.totalorder %v1729, 0
      %v1731 = vsel %vm1730, %v1729, 0
      %v1732 = vshrl.u32 %v1731, 5
      %v1733 = vand.u32 %v1731, 31
      %v1734 = vsub.s32 32, %v1733
      %v1735 = vshrl.u32 683565275, %v1734
      %v1736 = vshll.u32 683565275, %v1733
      %v1737 = vshrl.u32 2475754826, %v1734
      %v1738 = vor.u32 %v1736, %v1737
      %v1739 = vshll.u32 2475754826, %v1733
      %v1740 = vshrl.u32 2131351028, %v1734
      %v1741 = vor.u32 %v1739, %v1740
      %v1742 = vshll.u32 2131351028, %v1733
      %v1743 = vshrl.u32 2102212464, %v1734
      %v1744 = vor.u32 %v1742, %v1743
      %v1745 = vshll.u32 2102212464, %v1733
      %v1746 = vshrl.u32 920167782, %v1734
      %v1747 = vor.u32 %v1745, %v1746
      %v1748 = vshll.u32 920167782, %v1733
      %v1749 = vshrl.u32 1326507024, %v1734
      %v1750 = vor.u32 %v1748, %v1749
      %vm1751 = vcmp.lt.s32.totalorder %v1732, 1
      %vm1752 = vcmp.lt.s32.totalorder %v1732, 2
      %vm1753 = vcmp.lt.s32.totalorder %v1732, 3
      %vm1754 = vcmp.lt.s32.totalorder %v1732, 4
      %v1755 = vsel %vm1751, %v1735, %v1738
      %v1756 = vsel %vm1754, %v1744, 2102212464
      %v1757 = vsel %vm1753, %v1741, %v1756
      %v1758 = vsel %vm1752, %v1755, %v1757
      %v1759 = vsel %vm1751, %v1738, %v1741
      %v1760 = vsel %vm1754, %v1747, 920167782
      %v1761 = vsel %vm1753, %v1744, %v1760
      %v1762 = vsel %vm1752, %v1759, %v1761
      %v1763 = vsel %vm1751, %v1741, %v1744
      %v1764 = vsel %vm1754, %v1750, 1326507024
      %v1765 = vsel %vm1753, %v1747, %v1764
      %v1766 = vsel %vm1752, %v1763, %v1765
      %v1767 = vshll.u32 %v1727, 8
      %v1768 = vmul.u32.u64.compose %v1767, %v1766
      %v1769 = vextract.low.u32 %v1768
      %v1770 = vextract.high.u32 %v1768
      %v1771 = vmul.u32.u64.compose %v1767, %v1762
      %v1772 = vextract.low.u32 %v1771
      %v1773 = vextract.high.u32 %v1771
      %v1774 = vmul.u32 %v1767, %v1758
      %v1775 = vadd.s32 %v1770, %v1772
      %vm1776 = vc.u32 %v1770, %v1772
      %v1777 = vadd.s32 %v1773, 1
      %v1778 = vsel %vm1776, %v1777, %v1773
      %v1779 = vadd.s32 %v1774, %v1778
      %v1780 = vadd.s32 %v1779, 536870912
      %v1781 = vshrl.u32 %v1780, 30
      %v1782 = vshll.u32 %v1781, 30
      %v1783 = vsub.s32 %v1779, %v1782
      %vm1784 = vcmp.lt.s32.totalorder %v1783, 0
      %v1785 = vsub.s32 0, %v1783
      %v1786 = vsel %vm1784, %v1785, %v1783
      %v1787 = vclz %v1786
      %v1788 = vsub.s32 %v1787, 2
      %vm1789 = vcmp.gt.s32.totalorder 0, %v1788
      %v1790 = vsel %vm1789, 0, %v1788
      %v1791 = vsub.s32 32, %v1790
      %v1792 = vshll.u32 %v1783, %v1790
      %v1793 = vshrl.u32 %v1775, %v1791
      %v1794 = vor.u32 %v1792, %v1793
      %v1795 = vsub.s32 4294967266, %v1790
      %v1796 = vadd.s32 %v1795, 127
      %v1797 = vshll.u32 %v1796, 23
      %v1798 = vor.u32 4788187, %v1797
      %v1799 = vand.u32 2147483647, %v1798
      %v1801 = vcvt.s32.f32 %v1794
      %v1802 = vmul.f32 %v1801, %v1799
      %v1803 = vxor.u32 %v1802, 2147483648
      %v1804 = vsel %vm1721, %v1803, %v1802
      %v1805 = vsub.s32 4, %v1781
      %v1806 = vsel %vm1721, %v1805, %v1781
      %v1807 = vsel %vm1720, %v451, %v1804
      %v1808 = vsel %vm1720, 0, %v1806
      %v1809 = vcosq.f32.pop %v1807
      %v1810 = vsinq.f32.pop %v1807
      %vm1811 = vweird.f32 %v451
      %v1812 = vadd.s32 %v1808, 3
      %v1813 = vand.u32 %v1812, 3
      %vm1814 = vcmp.lt.s32.totalorder %v1813, 2
      %vm1815 = vcmp.eq.s32.totalorder %v1813, 0
      %v1816 = vxor.u32 %v1810, 2147483648
      %v1817 = vsel %vm1815, %v1809, %v1816
      %vm1818 = vcmp.eq.s32.totalorder %v1813, 2
      %v1819 = vxor.u32 %v1809, 2147483648
      %v1820 = vsel %vm1818, %v1819, %v1810
      %v1821 = vsel %vm1814, %v1817, %v1820
      %v1822 = vsel %vm1811, nan, %v1821
      %v1823 = vand.u32 2147483647, %v452
      %vm1824 = vcmp.le.f32.partialorder %v1823, 0.7853982
      %vm1825 = vcmp.lt.s32.totalorder %v452, 0
      %v1826 = vand.u32 %v452, 2139095040
      %v1827 = vshrl.u32 %v1826, 23
      %v1828 = vsub.s32 %v1827, 127
      %v1829 = vand.u32 2147483647, %v452
      %v1830 = vand.u32 %v1829, 8388607
      %v1831 = vor.u32 %v1830, 8388608
      %v1832 = vsub.s32 0, %v1831
      %v1833 = vadd.s32 %v1828, 1
      %vm1834 = vcmp.gt.s32.totalorder %v1833, 0
      %v1835 = vsel %vm1834, %v1833, 0
      %v1836 = vshrl.u32 %v1835, 5
      %v1837 = vand.u32 %v1835, 31
      %v1838 = vsub.s32 32, %v1837
      %v1839 = vshrl.u32 683565275, %v1838
      %v1840 = vshll.u32 683565275, %v1837
      %v1841 = vshrl.u32 2475754826, %v1838
      %v1842 = vor.u32 %v1840, %v1841
      %v1843 = vshll.u32 2475754826, %v1837
      %v1844 = vshrl.u32 2131351028, %v1838
      %v1845 = vor.u32 %v1843, %v1844
      %v1846 = vshll.u32 2131351028, %v1837
      %v1847 = vshrl.u32 2102212464, %v1838
      %v1848 = vor.u32 %v1846, %v1847
      %v1849 = vshll.u32 2102212464, %v1837
      %v1850 = vshrl.u32 920167782, %v1838
      %v1851 = vor.u32 %v1849, %v1850
      %v1852 = vshll.u32 920167782, %v1837
      %v1853 = vshrl.u32 1326507024, %v1838
      %v1854 = vor.u32 %v1852, %v1853
      %vm1855 = vcmp.lt.s32.totalorder %v1836, 1
      %vm1856 = vcmp.lt.s32.totalorder %v1836, 2
      %vm1857 = vcmp.lt.s32.totalorder %v1836, 3
      %vm1858 = vcmp.lt.s32.totalorder %v1836, 4
      %v1859 = vsel %vm1855, %v1839, %v1842
      %v1860 = vsel %vm1858, %v1848, 2102212464
      %v1861 = vsel %vm1857, %v1845, %v1860
      %v1862 = vsel %vm1856, %v1859, %v1861
      %v1863 = vsel %vm1855, %v1842, %v1845
      %v1864 = vsel %vm1858, %v1851, 920167782
      %v1865 = vsel %vm1857, %v1848, %v1864
      %v1866 = vsel %vm1856, %v1863, %v1865
      %v1867 = vsel %vm1855, %v1845, %v1848
      %v1868 = vsel %vm1858, %v1854, 1326507024
      %v1869 = vsel %vm1857, %v1851, %v1868
      %v1870 = vsel %vm1856, %v1867, %v1869
      %v1871 = vshll.u32 %v1831, 8
      %v1872 = vmul.u32.u64.compose %v1871, %v1870
      %v1873 = vextract.low.u32 %v1872
      %v1874 = vextract.high.u32 %v1872
      %v1875 = vmul.u32.u64.compose %v1871, %v1866
      %v1876 = vextract.low.u32 %v1875
      %v1877 = vextract.high.u32 %v1875
      %v1878 = vmul.u32 %v1871, %v1862
      %v1879 = vadd.s32 %v1874, %v1876
      %vm1880 = vc.u32 %v1874, %v1876
      %v1881 = vadd.s32 %v1877, 1
      %v1882 = vsel %vm1880, %v1881, %v1877
      %v1883 = vadd.s32 %v1878, %v1882
      %v1884 = vadd.s32 %v1883, 536870912
      %v1885 = vshrl.u32 %v1884, 30
      %v1886 = vshll.u32 %v1885, 30
      %v1887 = vsub.s32 %v1883, %v1886
      %vm1888 = vcmp.lt.s32.totalorder %v1887, 0
      %v1889 = vsub.s32 0, %v1887
      %v1890 = vsel %vm1888, %v1889, %v1887
      %v1891 = vclz %v1890
      %v1892 = vsub.s32 %v1891, 2
      %vm1893 = vcmp.gt.s32.totalorder 0, %v1892
      %v1894 = vsel %vm1893, 0, %v1892
      %v1895 = vsub.s32 32, %v1894
      %v1896 = vshll.u32 %v1887, %v1894
      %v1897 = vshrl.u32 %v1879, %v1895
      %v1898 = vor.u32 %v1896, %v1897
      %v1899 = vsub.s32 4294967266, %v1894
      %v1900 = vadd.s32 %v1899, 127
      %v1901 = vshll.u32 %v1900, 23
      %v1902 = vor.u32 4788187, %v1901
      %v1903 = vand.u32 2147483647, %v1902
      %v1905 = vcvt.s32.f32 %v1898
      %v1906 = vmul.f32 %v1905, %v1903
      %v1907 = vxor.u32 %v1906, 2147483648
      %v1908 = vsel %vm1825, %v1907, %v1906
      %v1909 = vsub.s32 4, %v1885
      %v1910 = vsel %vm1825, %v1909, %v1885
      %v1911 = vsel %vm1824, %v452, %v1908
      %v1912 = vsel %vm1824, 0, %v1910
      %v1913 = vcosq.f32.pop %v1911
      %v1914 = vsinq.f32.pop %v1911
      %vm1915 = vweird.f32 %v452
      %v1916 = vadd.s32 %v1912, 3
      %v1917 = vand.u32 %v1916, 3
      %vm1918 = vcmp.lt.s32.totalorder %v1917, 2
      %vm1919 = vcmp.eq.s32.totalorder %v1917, 0
      %v1920 = vxor.u32 %v1914, 2147483648
      %v1921 = vsel %vm1919, %v1913, %v1920
      %vm1922 = vcmp.eq.s32.totalorder %v1917, 2
      %v1923 = vxor.u32 %v1913, 2147483648
      %v1924 = vsel %vm1922, %v1923, %v1914
      %v1925 = vsel %vm1918, %v1921, %v1924
      %v1926 = vsel %vm1915, nan, %v1925
      %v1927 = vand.u32 2147483647, %v453
      %vm1928 = vcmp.le.f32.partialorder %v1927, 0.7853982
      %vm1929 = vcmp.lt.s32.totalorder %v453, 0
      %v1930 = vand.u32 %v453, 2139095040
      %v1931 = vshrl.u32 %v1930, 23
      %v1932 = vsub.s32 %v1931, 127
      %v1933 = vand.u32 2147483647, %v453
      %v1934 = vand.u32 %v1933, 8388607
      %v1935 = vor.u32 %v1934, 8388608
      %v1936 = vsub.s32 0, %v1935
      %v1937 = vadd.s32 %v1932, 1
      %vm1938 = vcmp.gt.s32.totalorder %v1937, 0
      %v1939 = vsel %vm1938, %v1937, 0
      %v1940 = vshrl.u32 %v1939, 5
      %v1941 = vand.u32 %v1939, 31
      %v1942 = vsub.s32 32, %v1941
      %v1943 = vshrl.u32 683565275, %v1942
      %v1944 = vshll.u32 683565275, %v1941
      %v1945 = vshrl.u32 2475754826, %v1942
      %v1946 = vor.u32 %v1944, %v1945
      %v1947 = vshll.u32 2475754826, %v1941
      %v1948 = vshrl.u32 2131351028, %v1942
      %v1949 = vor.u32 %v1947, %v1948
      %v1950 = vshll.u32 2131351028, %v1941
      %v1951 = vshrl.u32 2102212464, %v1942
      %v1952 = vor.u32 %v1950, %v1951
      %v1953 = vshll.u32 2102212464, %v1941
      %v1954 = vshrl.u32 920167782, %v1942
      %v1955 = vor.u32 %v1953, %v1954
      %v1956 = vshll.u32 920167782, %v1941
      %v1957 = vshrl.u32 1326507024, %v1942
      %v1958 = vor.u32 %v1956, %v1957
      %vm1959 = vcmp.lt.s32.totalorder %v1940, 1
      %vm1960 = vcmp.lt.s32.totalorder %v1940, 2
      %vm1961 = vcmp.lt.s32.totalorder %v1940, 3
      %vm1962 = vcmp.lt.s32.totalorder %v1940, 4
      %v1963 = vsel %vm1959, %v1943, %v1946
      %v1964 = vsel %vm1962, %v1952, 2102212464
      %v1965 = vsel %vm1961, %v1949, %v1964
      %v1966 = vsel %vm1960, %v1963, %v1965
      %v1967 = vsel %vm1959, %v1946, %v1949
      %v1968 = vsel %vm1962, %v1955, 920167782
      %v1969 = vsel %vm1961, %v1952, %v1968
      %v1970 = vsel %vm1960, %v1967, %v1969
      %v1971 = vsel %vm1959, %v1949, %v1952
      %v1972 = vsel %vm1962, %v1958, 1326507024
      %v1973 = vsel %vm1961, %v1955, %v1972
      %v1974 = vsel %vm1960, %v1971, %v1973
      %v1975 = vshll.u32 %v1935, 8
      %v1976 = vmul.u32.u64.compose %v1975, %v1974
      %v1977 = vextract.low.u32 %v1976
      %v1978 = vextract.high.u32 %v1976
      %v1979 = vmul.u32.u64.compose %v1975, %v1970
      %v1980 = vextract.low.u32 %v1979
      %v1981 = vextract.high.u32 %v1979
      %v1982 = vmul.u32 %v1975, %v1966
      %v1983 = vadd.s32 %v1978, %v1980
      %vm1984 = vc.u32 %v1978, %v1980
      %v1985 = vadd.s32 %v1981, 1
      %v1986 = vsel %vm1984, %v1985, %v1981
      %v1987 = vadd.s32 %v1982, %v1986
      %v1988 = vadd.s32 %v1987, 536870912
      %v1989 = vshrl.u32 %v1988, 30
      %v1990 = vshll.u32 %v1989, 30
      %v1991 = vsub.s32 %v1987, %v1990
      %vm1992 = vcmp.lt.s32.totalorder %v1991, 0
      %v1993 = vsub.s32 0, %v1991
      %v1994 = vsel %vm1992, %v1993, %v1991
      %v1995 = vclz %v1994
      %v1996 = vsub.s32 %v1995, 2
      %vm1997 = vcmp.gt.s32.totalorder 0, %v1996
      %v1998 = vsel %vm1997, 0, %v1996
      %v1999 = vsub.s32 32, %v1998
      %v2000 = vshll.u32 %v1991, %v1998
      %v2001 = vshrl.u32 %v1983, %v1999
      %v2002 = vor.u32 %v2000, %v2001
      %v2003 = vsub.s32 4294967266, %v1998
      %v2004 = vadd.s32 %v2003, 127
      %v2005 = vshll.u32 %v2004, 23
      %v2006 = vor.u32 4788187, %v2005
      %v2007 = vand.u32 2147483647, %v2006
      %v2009 = vcvt.s32.f32 %v2002
      %v2010 = vmul.f32 %v2009, %v2007
      %v2011 = vxor.u32 %v2010, 2147483648
      %v2012 = vsel %vm1929, %v2011, %v2010
      %v2013 = vsub.s32 4, %v1989
      %v2014 = vsel %vm1929, %v2013, %v1989
      %v2015 = vsel %vm1928, %v453, %v2012
      %v2016 = vsel %vm1928, 0, %v2014
      %v2017 = vcosq.f32.pop %v2015
      %v2018 = vsinq.f32.pop %v2015
      %vm2019 = vweird.f32 %v453
      %v2020 = vadd.s32 %v2016, 3
      %v2021 = vand.u32 %v2020, 3
      %vm2022 = vcmp.lt.s32.totalorder %v2021, 2
      %vm2023 = vcmp.eq.s32.totalorder %v2021, 0
      %v2024 = vxor.u32 %v2018, 2147483648
      %v2025 = vsel %vm2023, %v2017, %v2024
      %vm2026 = vcmp.eq.s32.totalorder %v2021, 2
      %v2027 = vxor.u32 %v2017, 2147483648
      %v2028 = vsel %vm2026, %v2027, %v2018
      %v2029 = vsel %vm2022, %v2025, %v2028
      %v2030 = vsel %vm2019, nan, %v2029
      %v2031 = vand.u32 2147483647, %v454
      %vm2032 = vcmp.le.f32.partialorder %v2031, 0.7853982
      %vm2033 = vcmp.lt.s32.totalorder %v454, 0
      %v2034 = vand.u32 %v454, 2139095040
      %v2035 = vshrl.u32 %v2034, 23
      %v2036 = vsub.s32 %v2035, 127
      %v2037 = vand.u32 2147483647, %v454
      %v2038 = vand.u32 %v2037, 8388607
      %v2039 = vor.u32 %v2038, 8388608
      %v2040 = vsub.s32 0, %v2039
      %v2041 = vadd.s32 %v2036, 1
      %vm2042 = vcmp.gt.s32.totalorder %v2041, 0
      %v2043 = vsel %vm2042, %v2041, 0
      %v2044 = vshrl.u32 %v2043, 5
      %v2045 = vand.u32 %v2043, 31
      %v2046 = vsub.s32 32, %v2045
      %v2047 = vshrl.u32 683565275, %v2046
      %v2048 = vshll.u32 683565275, %v2045
      %v2049 = vshrl.u32 2475754826, %v2046
      %v2050 = vor.u32 %v2048, %v2049
      %v2051 = vshll.u32 2475754826, %v2045
      %v2052 = vshrl.u32 2131351028, %v2046
      %v2053 = vor.u32 %v2051, %v2052
      %v2054 = vshll.u32 2131351028, %v2045
      %v2055 = vshrl.u32 2102212464, %v2046
      %v2056 = vor.u32 %v2054, %v2055
      %v2057 = vshll.u32 2102212464, %v2045
      %v2058 = vshrl.u32 920167782, %v2046
      %v2059 = vor.u32 %v2057, %v2058
      %v2060 = vshll.u32 920167782, %v2045
      %v2061 = vshrl.u32 1326507024, %v2046
      %v2062 = vor.u32 %v2060, %v2061
      %vm2063 = vcmp.lt.s32.totalorder %v2044, 1
      %vm2064 = vcmp.lt.s32.totalorder %v2044, 2
      %vm2065 = vcmp.lt.s32.totalorder %v2044, 3
      %vm2066 = vcmp.lt.s32.totalorder %v2044, 4
      %v2067 = vsel %vm2063, %v2047, %v2050
      %v2068 = vsel %vm2066, %v2056, 2102212464
      %v2069 = vsel %vm2065, %v2053, %v2068
      %v2070 = vsel %vm2064, %v2067, %v2069
      %v2071 = vsel %vm2063, %v2050, %v2053
      %v2072 = vsel %vm2066, %v2059, 920167782
      %v2073 = vsel %vm2065, %v2056, %v2072
      %v2074 = vsel %vm2064, %v2071, %v2073
      %v2075 = vsel %vm2063, %v2053, %v2056
      %v2076 = vsel %vm2066, %v2062, 1326507024
      %v2077 = vsel %vm2065, %v2059, %v2076
      %v2078 = vsel %vm2064, %v2075, %v2077
      %v2079 = vshll.u32 %v2039, 8
      %v2080 = vmul.u32.u64.compose %v2079, %v2078
      %v2081 = vextract.low.u32 %v2080
      %v2082 = vextract.high.u32 %v2080
      %v2083 = vmul.u32.u64.compose %v2079, %v2074
      %v2084 = vextract.low.u32 %v2083
      %v2085 = vextract.high.u32 %v2083
      %v2086 = vmul.u32 %v2079, %v2070
      %v2087 = vadd.s32 %v2082, %v2084
      %vm2088 = vc.u32 %v2082, %v2084
      %v2089 = vadd.s32 %v2085, 1
      %v2090 = vsel %vm2088, %v2089, %v2085
      %v2091 = vadd.s32 %v2086, %v2090
      %v2092 = vadd.s32 %v2091, 536870912
      %v2093 = vshrl.u32 %v2092, 30
      %v2094 = vshll.u32 %v2093, 30
      %v2095 = vsub.s32 %v2091, %v2094
      %vm2096 = vcmp.lt.s32.totalorder %v2095, 0
      %v2097 = vsub.s32 0, %v2095
      %v2098 = vsel %vm2096, %v2097, %v2095
      %v2099 = vclz %v2098
      %v2100 = vsub.s32 %v2099, 2
      %vm2101 = vcmp.gt.s32.totalorder 0, %v2100
      %v2102 = vsel %vm2101, 0, %v2100
      %v2103 = vsub.s32 32, %v2102
      %v2104 = vshll.u32 %v2095, %v2102
      %v2105 = vshrl.u32 %v2087, %v2103
      %v2106 = vor.u32 %v2104, %v2105
      %v2107 = vsub.s32 4294967266, %v2102
      %v2108 = vadd.s32 %v2107, 127
      %v2109 = vshll.u32 %v2108, 23
      %v2110 = vor.u32 4788187, %v2109
      %v2111 = vand.u32 2147483647, %v2110
      %v2113 = vcvt.s32.f32 %v2106
      %v2114 = vmul.f32 %v2113, %v2111
      %v2115 = vxor.u32 %v2114, 2147483648
      %v2116 = vsel %vm2033, %v2115, %v2114
      %v2117 = vsub.s32 4, %v2093
      %v2118 = vsel %vm2033, %v2117, %v2093
      %v2119 = vsel %vm2032, %v454, %v2116
      %v2120 = vsel %vm2032, 0, %v2118
      %v2121 = vcosq.f32.pop %v2119
      %v2122 = vsinq.f32.pop %v2119
      %vm2123 = vweird.f32 %v454
      %v2124 = vadd.s32 %v2120, 3
      %v2125 = vand.u32 %v2124, 3
      %vm2126 = vcmp.lt.s32.totalorder %v2125, 2
      %vm2127 = vcmp.eq.s32.totalorder %v2125, 0
      %v2128 = vxor.u32 %v2122, 2147483648
      %v2129 = vsel %vm2127, %v2121, %v2128
      %vm2130 = vcmp.eq.s32.totalorder %v2125, 2
      %v2131 = vxor.u32 %v2121, 2147483648
      %v2132 = vsel %vm2130, %v2131, %v2122
      %v2133 = vsel %vm2126, %v2129, %v2132
      %v2134 = vsel %vm2123, nan, %v2133
      %v2135 = vand.u32 2147483647, %v455
      %vm2136 = vcmp.le.f32.partialorder %v2135, 0.7853982
      %vm2137 = vcmp.lt.s32.totalorder %v455, 0
      %v2138 = vand.u32 %v455, 2139095040
      %v2139 = vshrl.u32 %v2138, 23
      %v2140 = vsub.s32 %v2139, 127
      %v2141 = vand.u32 2147483647, %v455
      %v2142 = vand.u32 %v2141, 8388607
      %v2143 = vor.u32 %v2142, 8388608
      %v2144 = vsub.s32 0, %v2143
      %v2145 = vadd.s32 %v2140, 1
      %vm2146 = vcmp.gt.s32.totalorder %v2145, 0
      %v2147 = vsel %vm2146, %v2145, 0
      %v2148 = vshrl.u32 %v2147, 5
      %v2149 = vand.u32 %v2147, 31
      %v2150 = vsub.s32 32, %v2149
      %v2151 = vshrl.u32 683565275, %v2150
      %v2152 = vshll.u32 683565275, %v2149
      %v2153 = vshrl.u32 2475754826, %v2150
      %v2154 = vor.u32 %v2152, %v2153
      %v2155 = vshll.u32 2475754826, %v2149
      %v2156 = vshrl.u32 2131351028, %v2150
      %v2157 = vor.u32 %v2155, %v2156
      %v2158 = vshll.u32 2131351028, %v2149
      %v2159 = vshrl.u32 2102212464, %v2150
      %v2160 = vor.u32 %v2158, %v2159
      %v2161 = vshll.u32 2102212464, %v2149
      %v2162 = vshrl.u32 920167782, %v2150
      %v2163 = vor.u32 %v2161, %v2162
      %v2164 = vshll.u32 920167782, %v2149
      %v2165 = vshrl.u32 1326507024, %v2150
      %v2166 = vor.u32 %v2164, %v2165
      %vm2167 = vcmp.lt.s32.totalorder %v2148, 1
      %vm2168 = vcmp.lt.s32.totalorder %v2148, 2
      %vm2169 = vcmp.lt.s32.totalorder %v2148, 3
      %vm2170 = vcmp.lt.s32.totalorder %v2148, 4
      %v2171 = vsel %vm2167, %v2151, %v2154
      %v2172 = vsel %vm2170, %v2160, 2102212464
      %v2173 = vsel %vm2169, %v2157, %v2172
      %v2174 = vsel %vm2168, %v2171, %v2173
      %v2175 = vsel %vm2167, %v2154, %v2157
      %v2176 = vsel %vm2170, %v2163, 920167782
      %v2177 = vsel %vm2169, %v2160, %v2176
      %v2178 = vsel %vm2168, %v2175, %v2177
      %v2179 = vsel %vm2167, %v2157, %v2160
      %v2180 = vsel %vm2170, %v2166, 1326507024
      %v2181 = vsel %vm2169, %v2163, %v2180
      %v2182 = vsel %vm2168, %v2179, %v2181
      %v2183 = vshll.u32 %v2143, 8
      %v2184 = vmul.u32.u64.compose %v2183, %v2182
      %v2185 = vextract.low.u32 %v2184
      %v2186 = vextract.high.u32 %v2184
      %v2187 = vmul.u32.u64.compose %v2183, %v2178
      %v2188 = vextract.low.u32 %v2187
      %v2189 = vextract.high.u32 %v2187
      %v2190 = vmul.u32 %v2183, %v2174
      %v2191 = vadd.s32 %v2186, %v2188
      %vm2192 = vc.u32 %v2186, %v2188
      %v2193 = vadd.s32 %v2189, 1
      %v2194 = vsel %vm2192, %v2193, %v2189
      %v2195 = vadd.s32 %v2190, %v2194
      %v2196 = vadd.s32 %v2195, 536870912
      %v2197 = vshrl.u32 %v2196, 30
      %v2198 = vshll.u32 %v2197, 30
      %v2199 = vsub.s32 %v2195, %v2198
      %vm2200 = vcmp.lt.s32.totalorder %v2199, 0
      %v2201 = vsub.s32 0, %v2199
      %v2202 = vsel %vm2200, %v2201, %v2199
      %v2203 = vclz %v2202
      %v2204 = vsub.s32 %v2203, 2
      %vm2205 = vcmp.gt.s32.totalorder 0, %v2204
      %v2206 = vsel %vm2205, 0, %v2204
      %v2207 = vsub.s32 32, %v2206
      %v2208 = vshll.u32 %v2199, %v2206
      %v2209 = vshrl.u32 %v2191, %v2207
      %v2210 = vor.u32 %v2208, %v2209
      %v2211 = vsub.s32 4294967266, %v2206
      %v2212 = vadd.s32 %v2211, 127
      %v2213 = vshll.u32 %v2212, 23
      %v2214 = vor.u32 4788187, %v2213
      %v2215 = vand.u32 2147483647, %v2214
      %v2217 = vcvt.s32.f32 %v2210
      %v2218 = vmul.f32 %v2217, %v2215
      %v2219 = vxor.u32 %v2218, 2147483648
      %v2220 = vsel %vm2137, %v2219, %v2218
      %v2221 = vsub.s32 4, %v2197
      %v2222 = vsel %vm2137, %v2221, %v2197
      %v2223 = vsel %vm2136, %v455, %v2220
      %v2224 = vsel %vm2136, 0, %v2222
      %v2225 = vcosq.f32.pop %v2223
      %v2226 = vsinq.f32.pop %v2223
      %vm2227 = vweird.f32 %v455
      %v2228 = vadd.s32 %v2224, 3
      %v2229 = vand.u32 %v2228, 3
      %vm2230 = vcmp.lt.s32.totalorder %v2229, 2
      %vm2231 = vcmp.eq.s32.totalorder %v2229, 0
      %v2232 = vxor.u32 %v2226, 2147483648
      %v2233 = vsel %vm2231, %v2225, %v2232
      %vm2234 = vcmp.eq.s32.totalorder %v2229, 2
      %v2235 = vxor.u32 %v2225, 2147483648
      %v2236 = vsel %vm2234, %v2235, %v2226
      %v2237 = vsel %vm2230, %v2233, %v2236
      %v2238 = vsel %vm2227, nan, %v2237
      %v2239 = vand.u32 2147483647, %v456
      %vm2240 = vcmp.le.f32.partialorder %v2239, 0.7853982
      %vm2241 = vcmp.lt.s32.totalorder %v456, 0
      %v2242 = vand.u32 %v456, 2139095040
      %v2243 = vshrl.u32 %v2242, 23
      %v2244 = vsub.s32 %v2243, 127
      %v2245 = vand.u32 2147483647, %v456
      %v2246 = vand.u32 %v2245, 8388607
      %v2247 = vor.u32 %v2246, 8388608
      %v2248 = vsub.s32 0, %v2247
      %v2249 = vadd.s32 %v2244, 1
      %vm2250 = vcmp.gt.s32.totalorder %v2249, 0
      %v2251 = vsel %vm2250, %v2249, 0
      %v2252 = vshrl.u32 %v2251, 5
      %v2253 = vand.u32 %v2251, 31
      %v2254 = vsub.s32 32, %v2253
      %v2255 = vshrl.u32 683565275, %v2254
      %v2256 = vshll.u32 683565275, %v2253
      %v2257 = vshrl.u32 2475754826, %v2254
      %v2258 = vor.u32 %v2256, %v2257
      %v2259 = vshll.u32 2475754826, %v2253
      %v2260 = vshrl.u32 2131351028, %v2254
      %v2261 = vor.u32 %v2259, %v2260
      %v2262 = vshll.u32 2131351028, %v2253
      %v2263 = vshrl.u32 2102212464, %v2254
      %v2264 = vor.u32 %v2262, %v2263
      %v2265 = vshll.u32 2102212464, %v2253
      %v2266 = vshrl.u32 920167782, %v2254
      %v2267 = vor.u32 %v2265, %v2266
      %v2268 = vshll.u32 920167782, %v2253
      %v2269 = vshrl.u32 1326507024, %v2254
      %v2270 = vor.u32 %v2268, %v2269
      %vm2271 = vcmp.lt.s32.totalorder %v2252, 1
      %vm2272 = vcmp.lt.s32.totalorder %v2252, 2
      %vm2273 = vcmp.lt.s32.totalorder %v2252, 3
      %vm2274 = vcmp.lt.s32.totalorder %v2252, 4
      %v2275 = vsel %vm2271, %v2255, %v2258
      %v2276 = vsel %vm2274, %v2264, 2102212464
      %v2277 = vsel %vm2273, %v2261, %v2276
      %v2278 = vsel %vm2272, %v2275, %v2277
      %v2279 = vsel %vm2271, %v2258, %v2261
      %v2280 = vsel %vm2274, %v2267, 920167782
      %v2281 = vsel %vm2273, %v2264, %v2280
      %v2282 = vsel %vm2272, %v2279, %v2281
      %v2283 = vsel %vm2271, %v2261, %v2264
      %v2284 = vsel %vm2274, %v2270, 1326507024
      %v2285 = vsel %vm2273, %v2267, %v2284
      %v2286 = vsel %vm2272, %v2283, %v2285
      %v2287 = vshll.u32 %v2247, 8
      %v2288 = vmul.u32.u64.compose %v2287, %v2286
      %v2289 = vextract.low.u32 %v2288
      %v2290 = vextract.high.u32 %v2288
      %v2291 = vmul.u32.u64.compose %v2287, %v2282
      %v2292 = vextract.low.u32 %v2291
      %v2293 = vextract.high.u32 %v2291
      %v2294 = vmul.u32 %v2287, %v2278
      %v2295 = vadd.s32 %v2290, %v2292
      %vm2296 = vc.u32 %v2290, %v2292
      %v2297 = vadd.s32 %v2293, 1
      %v2298 = vsel %vm2296, %v2297, %v2293
      %v2299 = vadd.s32 %v2294, %v2298
      %v2300 = vadd.s32 %v2299, 536870912
      %v2301 = vshrl.u32 %v2300, 30
      %v2302 = vshll.u32 %v2301, 30
      %v2303 = vsub.s32 %v2299, %v2302
      %vm2304 = vcmp.lt.s32.totalorder %v2303, 0
      %v2305 = vsub.s32 0, %v2303
      %v2306 = vsel %vm2304, %v2305, %v2303
      %v2307 = vclz %v2306
      %v2308 = vsub.s32 %v2307, 2
      %vm2309 = vcmp.gt.s32.totalorder 0, %v2308
      %v2310 = vsel %vm2309, 0, %v2308
      %v2311 = vsub.s32 32, %v2310
      %v2312 = vshll.u32 %v2303, %v2310
      %v2313 = vshrl.u32 %v2295, %v2311
      %v2314 = vor.u32 %v2312, %v2313
      %v2315 = vsub.s32 4294967266, %v2310
      %v2316 = vadd.s32 %v2315, 127
      %v2317 = vshll.u32 %v2316, 23
      %v2318 = vor.u32 4788187, %v2317
      %v2319 = vand.u32 2147483647, %v2318
      %v2321 = vcvt.s32.f32 %v2314
      %v2322 = vmul.f32 %v2321, %v2319
      %v2323 = vxor.u32 %v2322, 2147483648
      %v2324 = vsel %vm2241, %v2323, %v2322
      %v2325 = vsub.s32 4, %v2301
      %v2326 = vsel %vm2241, %v2325, %v2301
      %v2327 = vsel %vm2240, %v456, %v2324
      %v2328 = vsel %vm2240, 0, %v2326
      %v2329 = vcosq.f32.pop %v2327
      %v2330 = vsinq.f32.pop %v2327
      %vm2331 = vweird.f32 %v456
      %v2332 = vadd.s32 %v2328, 3
      %v2333 = vand.u32 %v2332, 3
      %vm2334 = vcmp.lt.s32.totalorder %v2333, 2
      %vm2335 = vcmp.eq.s32.totalorder %v2333, 0
      %v2336 = vxor.u32 %v2330, 2147483648
      %v2337 = vsel %vm2335, %v2329, %v2336
      %vm2338 = vcmp.eq.s32.totalorder %v2333, 2
      %v2339 = vxor.u32 %v2329, 2147483648
      %v2340 = vsel %vm2338, %v2339, %v2330
      %v2341 = vsel %vm2334, %v2337, %v2340
      %v2342 = vsel %vm2331, nan, %v2341
      %v2343 = vand.u32 2147483647, %v457
      %vm2344 = vcmp.le.f32.partialorder %v2343, 0.7853982
      %vm2345 = vcmp.lt.s32.totalorder %v457, 0
      %v2346 = vand.u32 %v457, 2139095040
      %v2347 = vshrl.u32 %v2346, 23
      %v2348 = vsub.s32 %v2347, 127
      %v2349 = vand.u32 2147483647, %v457
      %v2350 = vand.u32 %v2349, 8388607
      %v2351 = vor.u32 %v2350, 8388608
      %v2352 = vsub.s32 0, %v2351
      %v2353 = vadd.s32 %v2348, 1
      %vm2354 = vcmp.gt.s32.totalorder %v2353, 0
      %v2355 = vsel %vm2354, %v2353, 0
      %v2356 = vshrl.u32 %v2355, 5
      %v2357 = vand.u32 %v2355, 31
      %v2358 = vsub.s32 32, %v2357
      %v2359 = vshrl.u32 683565275, %v2358
      %v2360 = vshll.u32 683565275, %v2357
      %v2361 = vshrl.u32 2475754826, %v2358
      %v2362 = vor.u32 %v2360, %v2361
      %v2363 = vshll.u32 2475754826, %v2357
      %v2364 = vshrl.u32 2131351028, %v2358
      %v2365 = vor.u32 %v2363, %v2364
      %v2366 = vshll.u32 2131351028, %v2357
      %v2367 = vshrl.u32 2102212464, %v2358
      %v2368 = vor.u32 %v2366, %v2367
      %v2369 = vshll.u32 2102212464, %v2357
      %v2370 = vshrl.u32 920167782, %v2358
      %v2371 = vor.u32 %v2369, %v2370
      %v2372 = vshll.u32 920167782, %v2357
      %v2373 = vshrl.u32 1326507024, %v2358
      %v2374 = vor.u32 %v2372, %v2373
      %vm2375 = vcmp.lt.s32.totalorder %v2356, 1
      %vm2376 = vcmp.lt.s32.totalorder %v2356, 2
      %vm2377 = vcmp.lt.s32.totalorder %v2356, 3
      %vm2378 = vcmp.lt.s32.totalorder %v2356, 4
      %v2379 = vsel %vm2375, %v2359, %v2362
      %v2380 = vsel %vm2378, %v2368, 2102212464
      %v2381 = vsel %vm2377, %v2365, %v2380
      %v2382 = vsel %vm2376, %v2379, %v2381
      %v2383 = vsel %vm2375, %v2362, %v2365
      %v2384 = vsel %vm2378, %v2371, 920167782
      %v2385 = vsel %vm2377, %v2368, %v2384
      %v2386 = vsel %vm2376, %v2383, %v2385
      %v2387 = vsel %vm2375, %v2365, %v2368
      %v2388 = vsel %vm2378, %v2374, 1326507024
      %v2389 = vsel %vm2377, %v2371, %v2388
      %v2390 = vsel %vm2376, %v2387, %v2389
      %v2391 = vshll.u32 %v2351, 8
      %v2392 = vmul.u32.u64.compose %v2391, %v2390
      %v2393 = vextract.low.u32 %v2392
      %v2394 = vextract.high.u32 %v2392
      %v2395 = vmul.u32.u64.compose %v2391, %v2386
      %v2396 = vextract.low.u32 %v2395
      %v2397 = vextract.high.u32 %v2395
      %v2398 = vmul.u32 %v2391, %v2382
      %v2399 = vadd.s32 %v2394, %v2396
      %vm2400 = vc.u32 %v2394, %v2396
      %v2401 = vadd.s32 %v2397, 1
      %v2402 = vsel %vm2400, %v2401, %v2397
      %v2403 = vadd.s32 %v2398, %v2402
      %v2404 = vadd.s32 %v2403, 536870912
      %v2405 = vshrl.u32 %v2404, 30
      %v2406 = vshll.u32 %v2405, 30
      %v2407 = vsub.s32 %v2403, %v2406
      %vm2408 = vcmp.lt.s32.totalorder %v2407, 0
      %v2409 = vsub.s32 0, %v2407
      %v2410 = vsel %vm2408, %v2409, %v2407
      %v2411 = vclz %v2410
      %v2412 = vsub.s32 %v2411, 2
      %vm2413 = vcmp.gt.s32.totalorder 0, %v2412
      %v2414 = vsel %vm2413, 0, %v2412
      %v2415 = vsub.s32 32, %v2414
      %v2416 = vshll.u32 %v2407, %v2414
      %v2417 = vshrl.u32 %v2399, %v2415
      %v2418 = vor.u32 %v2416, %v2417
      %v2419 = vsub.s32 4294967266, %v2414
      %v2420 = vadd.s32 %v2419, 127
      %v2421 = vshll.u32 %v2420, 23
      %v2422 = vor.u32 4788187, %v2421
      %v2423 = vand.u32 2147483647, %v2422
      %v2425 = vcvt.s32.f32 %v2418
      %v2426 = vmul.f32 %v2425, %v2423
      %v2427 = vxor.u32 %v2426, 2147483648
      %v2428 = vsel %vm2345, %v2427, %v2426
      %v2429 = vsub.s32 4, %v2405
      %v2430 = vsel %vm2345, %v2429, %v2405
      %v2431 = vsel %vm2344, %v457, %v2428
      %v2432 = vsel %vm2344, 0, %v2430
      %v2433 = vcosq.f32.pop %v2431
      %v2434 = vsinq.f32.pop %v2431
      %vm2435 = vweird.f32 %v457
      %v2436 = vadd.s32 %v2432, 3
      %v2437 = vand.u32 %v2436, 3
      %vm2438 = vcmp.lt.s32.totalorder %v2437, 2
      %vm2439 = vcmp.eq.s32.totalorder %v2437, 0
      %v2440 = vxor.u32 %v2434, 2147483648
      %v2441 = vsel %vm2439, %v2433, %v2440
      %vm2442 = vcmp.eq.s32.totalorder %v2437, 2
      %v2443 = vxor.u32 %v2433, 2147483648
      %v2444 = vsel %vm2442, %v2443, %v2434
      %v2445 = vsel %vm2438, %v2441, %v2444
      %v2446 = vsel %vm2435, nan, %v2445
      %v2447 = vand.u32 2147483647, %v458
      %vm2448 = vcmp.le.f32.partialorder %v2447, 0.7853982
      %vm2449 = vcmp.lt.s32.totalorder %v458, 0
      %v2450 = vand.u32 %v458, 2139095040
      %v2451 = vshrl.u32 %v2450, 23
      %v2452 = vsub.s32 %v2451, 127
      %v2453 = vand.u32 2147483647, %v458
      %v2454 = vand.u32 %v2453, 8388607
      %v2455 = vor.u32 %v2454, 8388608
      %v2456 = vsub.s32 0, %v2455
      %v2457 = vadd.s32 %v2452, 1
      %vm2458 = vcmp.gt.s32.totalorder %v2457, 0
      %v2459 = vsel %vm2458, %v2457, 0
      %v2460 = vshrl.u32 %v2459, 5
      %v2461 = vand.u32 %v2459, 31
      %v2462 = vsub.s32 32, %v2461
      %v2463 = vshrl.u32 683565275, %v2462
      %v2464 = vshll.u32 683565275, %v2461
      %v2465 = vshrl.u32 2475754826, %v2462
      %v2466 = vor.u32 %v2464, %v2465
      %v2467 = vshll.u32 2475754826, %v2461
      %v2468 = vshrl.u32 2131351028, %v2462
      %v2469 = vor.u32 %v2467, %v2468
      %v2470 = vshll.u32 2131351028, %v2461
      %v2471 = vshrl.u32 2102212464, %v2462
      %v2472 = vor.u32 %v2470, %v2471
      %v2473 = vshll.u32 2102212464, %v2461
      %v2474 = vshrl.u32 920167782, %v2462
      %v2475 = vor.u32 %v2473, %v2474
      %v2476 = vshll.u32 920167782, %v2461
      %v2477 = vshrl.u32 1326507024, %v2462
      %v2478 = vor.u32 %v2476, %v2477
      %vm2479 = vcmp.lt.s32.totalorder %v2460, 1
      %vm2480 = vcmp.lt.s32.totalorder %v2460, 2
      %vm2481 = vcmp.lt.s32.totalorder %v2460, 3
      %vm2482 = vcmp.lt.s32.totalorder %v2460, 4
      %v2483 = vsel %vm2479, %v2463, %v2466
      %v2484 = vsel %vm2482, %v2472, 2102212464
      %v2485 = vsel %vm2481, %v2469, %v2484
      %v2486 = vsel %vm2480, %v2483, %v2485
      %v2487 = vsel %vm2479, %v2466, %v2469
      %v2488 = vsel %vm2482, %v2475, 920167782
      %v2489 = vsel %vm2481, %v2472, %v2488
      %v2490 = vsel %vm2480, %v2487, %v2489
      %v2491 = vsel %vm2479, %v2469, %v2472
      %v2492 = vsel %vm2482, %v2478, 1326507024
      %v2493 = vsel %vm2481, %v2475, %v2492
      %v2494 = vsel %vm2480, %v2491, %v2493
      %v2495 = vshll.u32 %v2455, 8
      %v2496 = vmul.u32.u64.compose %v2495, %v2494
      %v2497 = vextract.low.u32 %v2496
      %v2498 = vextract.high.u32 %v2496
      %v2499 = vmul.u32.u64.compose %v2495, %v2490
      %v2500 = vextract.low.u32 %v2499
      %v2501 = vextract.high.u32 %v2499
      %v2502 = vmul.u32 %v2495, %v2486
      %v2503 = vadd.s32 %v2498, %v2500
      %vm2504 = vc.u32 %v2498, %v2500
      %v2505 = vadd.s32 %v2501, 1
      %v2506 = vsel %vm2504, %v2505, %v2501
      %v2507 = vadd.s32 %v2502, %v2506
      %v2508 = vadd.s32 %v2507, 536870912
      %v2509 = vshrl.u32 %v2508, 30
      %v2510 = vshll.u32 %v2509, 30
      %v2511 = vsub.s32 %v2507, %v2510
      %vm2512 = vcmp.lt.s32.totalorder %v2511, 0
      %v2513 = vsub.s32 0, %v2511
      %v2514 = vsel %vm2512, %v2513, %v2511
      %v2515 = vclz %v2514
      %v2516 = vsub.s32 %v2515, 2
      %vm2517 = vcmp.gt.s32.totalorder 0, %v2516
      %v2518 = vsel %vm2517, 0, %v2516
      %v2519 = vsub.s32 32, %v2518
      %v2520 = vshll.u32 %v2511, %v2518
      %v2521 = vshrl.u32 %v2503, %v2519
      %v2522 = vor.u32 %v2520, %v2521
      %v2523 = vsub.s32 4294967266, %v2518
      %v2524 = vadd.s32 %v2523, 127
      %v2525 = vshll.u32 %v2524, 23
      %v2526 = vor.u32 4788187, %v2525
      %v2527 = vand.u32 2147483647, %v2526
      %v2529 = vcvt.s32.f32 %v2522
      %v2530 = vmul.f32 %v2529, %v2527
      %v2531 = vxor.u32 %v2530, 2147483648
      %v2532 = vsel %vm2449, %v2531, %v2530
      %v2533 = vsub.s32 4, %v2509
      %v2534 = vsel %vm2449, %v2533, %v2509
      %v2535 = vsel %vm2448, %v458, %v2532
      %v2536 = vsel %vm2448, 0, %v2534
      %v2537 = vcosq.f32.pop %v2535
      %v2538 = vsinq.f32.pop %v2535
      %vm2539 = vweird.f32 %v458
      %v2540 = vadd.s32 %v2536, 3
      %v2541 = vand.u32 %v2540, 3
      %vm2542 = vcmp.lt.s32.totalorder %v2541, 2
      %vm2543 = vcmp.eq.s32.totalorder %v2541, 0
      %v2544 = vxor.u32 %v2538, 2147483648
      %v2545 = vsel %vm2543, %v2537, %v2544
      %vm2546 = vcmp.eq.s32.totalorder %v2541, 2
      %v2547 = vxor.u32 %v2537, 2147483648
      %v2548 = vsel %vm2546, %v2547, %v2538
      %v2549 = vsel %vm2542, %v2545, %v2548
      %v2550 = vsel %vm2539, nan, %v2549
      %v2551 = vand.u32 2147483647, %v459
      %vm2552 = vcmp.le.f32.partialorder %v2551, 0.7853982
      %vm2553 = vcmp.lt.s32.totalorder %v459, 0
      %v2554 = vand.u32 %v459, 2139095040
      %v2555 = vshrl.u32 %v2554, 23
      %v2556 = vsub.s32 %v2555, 127
      %v2557 = vand.u32 2147483647, %v459
      %v2558 = vand.u32 %v2557, 8388607
      %v2559 = vor.u32 %v2558, 8388608
      %v2560 = vsub.s32 0, %v2559
      %v2561 = vadd.s32 %v2556, 1
      %vm2562 = vcmp.gt.s32.totalorder %v2561, 0
      %v2563 = vsel %vm2562, %v2561, 0
      %v2564 = vshrl.u32 %v2563, 5
      %v2565 = vand.u32 %v2563, 31
      %v2566 = vsub.s32 32, %v2565
      %v2567 = vshrl.u32 683565275, %v2566
      %v2568 = vshll.u32 683565275, %v2565
      %v2569 = vshrl.u32 2475754826, %v2566
      %v2570 = vor.u32 %v2568, %v2569
      %v2571 = vshll.u32 2475754826, %v2565
      %v2572 = vshrl.u32 2131351028, %v2566
      %v2573 = vor.u32 %v2571, %v2572
      %v2574 = vshll.u32 2131351028, %v2565
      %v2575 = vshrl.u32 2102212464, %v2566
      %v2576 = vor.u32 %v2574, %v2575
      %v2577 = vshll.u32 2102212464, %v2565
      %v2578 = vshrl.u32 920167782, %v2566
      %v2579 = vor.u32 %v2577, %v2578
      %v2580 = vshll.u32 920167782, %v2565
      %v2581 = vshrl.u32 1326507024, %v2566
      %v2582 = vor.u32 %v2580, %v2581
      %vm2583 = vcmp.lt.s32.totalorder %v2564, 1
      %vm2584 = vcmp.lt.s32.totalorder %v2564, 2
      %vm2585 = vcmp.lt.s32.totalorder %v2564, 3
      %vm2586 = vcmp.lt.s32.totalorder %v2564, 4
      %v2587 = vsel %vm2583, %v2567, %v2570
      %v2588 = vsel %vm2586, %v2576, 2102212464
      %v2589 = vsel %vm2585, %v2573, %v2588
      %v2590 = vsel %vm2584, %v2587, %v2589
      %v2591 = vsel %vm2583, %v2570, %v2573
      %v2592 = vsel %vm2586, %v2579, 920167782
      %v2593 = vsel %vm2585, %v2576, %v2592
      %v2594 = vsel %vm2584, %v2591, %v2593
      %v2595 = vsel %vm2583, %v2573, %v2576
      %v2596 = vsel %vm2586, %v2582, 1326507024
      %v2597 = vsel %vm2585, %v2579, %v2596
      %v2598 = vsel %vm2584, %v2595, %v2597
      %v2599 = vshll.u32 %v2559, 8
      %v2600 = vmul.u32.u64.compose %v2599, %v2598
      %v2601 = vextract.low.u32 %v2600
      %v2602 = vextract.high.u32 %v2600
      %v2603 = vmul.u32.u64.compose %v2599, %v2594
      %v2604 = vextract.low.u32 %v2603
      %v2605 = vextract.high.u32 %v2603
      %v2606 = vmul.u32 %v2599, %v2590
      %v2607 = vadd.s32 %v2602, %v2604
      %vm2608 = vc.u32 %v2602, %v2604
      %v2609 = vadd.s32 %v2605, 1
      %v2610 = vsel %vm2608, %v2609, %v2605
      %v2611 = vadd.s32 %v2606, %v2610
      %v2612 = vadd.s32 %v2611, 536870912
      %v2613 = vshrl.u32 %v2612, 30
      %v2614 = vshll.u32 %v2613, 30
      %v2615 = vsub.s32 %v2611, %v2614
      %vm2616 = vcmp.lt.s32.totalorder %v2615, 0
      %v2617 = vsub.s32 0, %v2615
      %v2618 = vsel %vm2616, %v2617, %v2615
      %v2619 = vclz %v2618
      %v2620 = vsub.s32 %v2619, 2
      %vm2621 = vcmp.gt.s32.totalorder 0, %v2620
      %v2622 = vsel %vm2621, 0, %v2620
      %v2623 = vsub.s32 32, %v2622
      %v2624 = vshll.u32 %v2615, %v2622
      %v2625 = vshrl.u32 %v2607, %v2623
      %v2626 = vor.u32 %v2624, %v2625
      %v2627 = vsub.s32 4294967266, %v2622
      %v2628 = vadd.s32 %v2627, 127
      %v2629 = vshll.u32 %v2628, 23
      %v2630 = vor.u32 4788187, %v2629
      %v2631 = vand.u32 2147483647, %v2630
      %v2633 = vcvt.s32.f32 %v2626
      %v2634 = vmul.f32 %v2633, %v2631
      %v2635 = vxor.u32 %v2634, 2147483648
      %v2636 = vsel %vm2553, %v2635, %v2634
      %v2637 = vsub.s32 4, %v2613
      %v2638 = vsel %vm2553, %v2637, %v2613
      %v2639 = vsel %vm2552, %v459, %v2636
      %v2640 = vsel %vm2552, 0, %v2638
      %v2641 = vcosq.f32.pop %v2639
      %v2642 = vsinq.f32.pop %v2639
      %vm2643 = vweird.f32 %v459
      %v2644 = vadd.s32 %v2640, 3
      %v2645 = vand.u32 %v2644, 3
      %vm2646 = vcmp.lt.s32.totalorder %v2645, 2
      %vm2647 = vcmp.eq.s32.totalorder %v2645, 0
      %v2648 = vxor.u32 %v2642, 2147483648
      %v2649 = vsel %vm2647, %v2641, %v2648
      %vm2650 = vcmp.eq.s32.totalorder %v2645, 2
      %v2651 = vxor.u32 %v2641, 2147483648
      %v2652 = vsel %vm2650, %v2651, %v2642
      %v2653 = vsel %vm2646, %v2649, %v2652
      %v2654 = vsel %vm2643, nan, %v2653
      %v2655 = vand.u32 2147483647, %v460
      %vm2656 = vcmp.le.f32.partialorder %v2655, 0.7853982
      %vm2657 = vcmp.lt.s32.totalorder %v460, 0
      %v2658 = vand.u32 %v460, 2139095040
      %v2659 = vshrl.u32 %v2658, 23
      %v2660 = vsub.s32 %v2659, 127
      %v2661 = vand.u32 2147483647, %v460
      %v2662 = vand.u32 %v2661, 8388607
      %v2663 = vor.u32 %v2662, 8388608
      %v2664 = vsub.s32 0, %v2663
      %v2665 = vadd.s32 %v2660, 1
      %vm2666 = vcmp.gt.s32.totalorder %v2665, 0
      %v2667 = vsel %vm2666, %v2665, 0
      %v2668 = vshrl.u32 %v2667, 5
      %v2669 = vand.u32 %v2667, 31
      %v2670 = vsub.s32 32, %v2669
      %v2671 = vshrl.u32 683565275, %v2670
      %v2672 = vshll.u32 683565275, %v2669
      %v2673 = vshrl.u32 2475754826, %v2670
      %v2674 = vor.u32 %v2672, %v2673
      %v2675 = vshll.u32 2475754826, %v2669
      %v2676 = vshrl.u32 2131351028, %v2670
      %v2677 = vor.u32 %v2675, %v2676
      %v2678 = vshll.u32 2131351028, %v2669
      %v2679 = vshrl.u32 2102212464, %v2670
      %v2680 = vor.u32 %v2678, %v2679
      %v2681 = vshll.u32 2102212464, %v2669
      %v2682 = vshrl.u32 920167782, %v2670
      %v2683 = vor.u32 %v2681, %v2682
      %v2684 = vshll.u32 920167782, %v2669
      %v2685 = vshrl.u32 1326507024, %v2670
      %v2686 = vor.u32 %v2684, %v2685
      %vm2687 = vcmp.lt.s32.totalorder %v2668, 1
      %vm2688 = vcmp.lt.s32.totalorder %v2668, 2
      %vm2689 = vcmp.lt.s32.totalorder %v2668, 3
      %vm2690 = vcmp.lt.s32.totalorder %v2668, 4
      %v2691 = vsel %vm2687, %v2671, %v2674
      %v2692 = vsel %vm2690, %v2680, 2102212464
      %v2693 = vsel %vm2689, %v2677, %v2692
      %v2694 = vsel %vm2688, %v2691, %v2693
      %v2695 = vsel %vm2687, %v2674, %v2677
      %v2696 = vsel %vm2690, %v2683, 920167782
      %v2697 = vsel %vm2689, %v2680, %v2696
      %v2698 = vsel %vm2688, %v2695, %v2697
      %v2699 = vsel %vm2687, %v2677, %v2680
      %v2700 = vsel %vm2690, %v2686, 1326507024
      %v2701 = vsel %vm2689, %v2683, %v2700
      %v2702 = vsel %vm2688, %v2699, %v2701
      %v2703 = vshll.u32 %v2663, 8
      %v2704 = vmul.u32.u64.compose %v2703, %v2702
      %v2705 = vextract.low.u32 %v2704
      %v2706 = vextract.high.u32 %v2704
      %v2707 = vmul.u32.u64.compose %v2703, %v2698
      %v2708 = vextract.low.u32 %v2707
      %v2709 = vextract.high.u32 %v2707
      %v2710 = vmul.u32 %v2703, %v2694
      %v2711 = vadd.s32 %v2706, %v2708
      %vm2712 = vc.u32 %v2706, %v2708
      %v2713 = vadd.s32 %v2709, 1
      %v2714 = vsel %vm2712, %v2713, %v2709
      %v2715 = vadd.s32 %v2710, %v2714
      %v2716 = vadd.s32 %v2715, 536870912
      %v2717 = vshrl.u32 %v2716, 30
      %v2718 = vshll.u32 %v2717, 30
      %v2719 = vsub.s32 %v2715, %v2718
      %vm2720 = vcmp.lt.s32.totalorder %v2719, 0
      %v2721 = vsub.s32 0, %v2719
      %v2722 = vsel %vm2720, %v2721, %v2719
      %v2723 = vclz %v2722
      %v2724 = vsub.s32 %v2723, 2
      %vm2725 = vcmp.gt.s32.totalorder 0, %v2724
      %v2726 = vsel %vm2725, 0, %v2724
      %v2727 = vsub.s32 32, %v2726
      %v2728 = vshll.u32 %v2719, %v2726
      %v2729 = vshrl.u32 %v2711, %v2727
      %v2730 = vor.u32 %v2728, %v2729
      %v2731 = vsub.s32 4294967266, %v2726
      %v2732 = vadd.s32 %v2731, 127
      %v2733 = vshll.u32 %v2732, 23
      %v2734 = vor.u32 4788187, %v2733
      %v2735 = vand.u32 2147483647, %v2734
      %v2737 = vcvt.s32.f32 %v2730
      %v2738 = vmul.f32 %v2737, %v2735
      %v2739 = vxor.u32 %v2738, 2147483648
      %v2740 = vsel %vm2657, %v2739, %v2738
      %v2741 = vsub.s32 4, %v2717
      %v2742 = vsel %vm2657, %v2741, %v2717
      %v2743 = vsel %vm2656, %v460, %v2740
      %v2744 = vsel %vm2656, 0, %v2742
      %v2745 = vcosq.f32.pop %v2743
      %v2746 = vsinq.f32.pop %v2743
      %vm2747 = vweird.f32 %v460
      %v2748 = vadd.s32 %v2744, 3
      %v2749 = vand.u32 %v2748, 3
      %vm2750 = vcmp.lt.s32.totalorder %v2749, 2
      %vm2751 = vcmp.eq.s32.totalorder %v2749, 0
      %v2752 = vxor.u32 %v2746, 2147483648
      %v2753 = vsel %vm2751, %v2745, %v2752
      %vm2754 = vcmp.eq.s32.totalorder %v2749, 2
      %v2755 = vxor.u32 %v2745, 2147483648
      %v2756 = vsel %vm2754, %v2755, %v2746
      %v2757 = vsel %vm2750, %v2753, %v2756
      %v2758 = vsel %vm2747, nan, %v2757
      %v2759 = vand.u32 2147483647, %v461
      %vm2760 = vcmp.le.f32.partialorder %v2759, 0.7853982
      %vm2761 = vcmp.lt.s32.totalorder %v461, 0
      %v2762 = vand.u32 %v461, 2139095040
      %v2763 = vshrl.u32 %v2762, 23
      %v2764 = vsub.s32 %v2763, 127
      %v2765 = vand.u32 2147483647, %v461
      %v2766 = vand.u32 %v2765, 8388607
      %v2767 = vor.u32 %v2766, 8388608
      %v2768 = vsub.s32 0, %v2767
      %v2769 = vadd.s32 %v2764, 1
      %vm2770 = vcmp.gt.s32.totalorder %v2769, 0
      %v2771 = vsel %vm2770, %v2769, 0
      %v2772 = vshrl.u32 %v2771, 5
      %v2773 = vand.u32 %v2771, 31
      %v2774 = vsub.s32 32, %v2773
      %v2775 = vshrl.u32 683565275, %v2774
      %v2776 = vshll.u32 683565275, %v2773
      %v2777 = vshrl.u32 2475754826, %v2774
      %v2778 = vor.u32 %v2776, %v2777
      %v2779 = vshll.u32 2475754826, %v2773
      %v2780 = vshrl.u32 2131351028, %v2774
      %v2781 = vor.u32 %v2779, %v2780
      %v2782 = vshll.u32 2131351028, %v2773
      %v2783 = vshrl.u32 2102212464, %v2774
      %v2784 = vor.u32 %v2782, %v2783
      %v2785 = vshll.u32 2102212464, %v2773
      %v2786 = vshrl.u32 920167782, %v2774
      %v2787 = vor.u32 %v2785, %v2786
      %v2788 = vshll.u32 920167782, %v2773
      %v2789 = vshrl.u32 1326507024, %v2774
      %v2790 = vor.u32 %v2788, %v2789
      %vm2791 = vcmp.lt.s32.totalorder %v2772, 1
      %vm2792 = vcmp.lt.s32.totalorder %v2772, 2
      %vm2793 = vcmp.lt.s32.totalorder %v2772, 3
      %vm2794 = vcmp.lt.s32.totalorder %v2772, 4
      %v2795 = vsel %vm2791, %v2775, %v2778
      %v2796 = vsel %vm2794, %v2784, 2102212464
      %v2797 = vsel %vm2793, %v2781, %v2796
      %v2798 = vsel %vm2792, %v2795, %v2797
      %v2799 = vsel %vm2791, %v2778, %v2781
      %v2800 = vsel %vm2794, %v2787, 920167782
      %v2801 = vsel %vm2793, %v2784, %v2800
      %v2802 = vsel %vm2792, %v2799, %v2801
      %v2803 = vsel %vm2791, %v2781, %v2784
      %v2804 = vsel %vm2794, %v2790, 1326507024
      %v2805 = vsel %vm2793, %v2787, %v2804
      %v2806 = vsel %vm2792, %v2803, %v2805
      %v2807 = vshll.u32 %v2767, 8
      %v2808 = vmul.u32.u64.compose %v2807, %v2806
      %v2809 = vextract.low.u32 %v2808
      %v2810 = vextract.high.u32 %v2808
      %v2811 = vmul.u32.u64.compose %v2807, %v2802
      %v2812 = vextract.low.u32 %v2811
      %v2813 = vextract.high.u32 %v2811
      %v2814 = vmul.u32 %v2807, %v2798
      %v2815 = vadd.s32 %v2810, %v2812
      %vm2816 = vc.u32 %v2810, %v2812
      %v2817 = vadd.s32 %v2813, 1
      %v2818 = vsel %vm2816, %v2817, %v2813
      %v2819 = vadd.s32 %v2814, %v2818
      %v2820 = vadd.s32 %v2819, 536870912
      %v2821 = vshrl.u32 %v2820, 30
      %v2822 = vshll.u32 %v2821, 30
      %v2823 = vsub.s32 %v2819, %v2822
      %vm2824 = vcmp.lt.s32.totalorder %v2823, 0
      %v2825 = vsub.s32 0, %v2823
      %v2826 = vsel %vm2824, %v2825, %v2823
      %v2827 = vclz %v2826
      %v2828 = vsub.s32 %v2827, 2
      %vm2829 = vcmp.gt.s32.totalorder 0, %v2828
      %v2830 = vsel %vm2829, 0, %v2828
      %v2831 = vsub.s32 32, %v2830
      %v2832 = vshll.u32 %v2823, %v2830
      %v2833 = vshrl.u32 %v2815, %v2831
      %v2834 = vor.u32 %v2832, %v2833
      %v2835 = vsub.s32 4294967266, %v2830
      %v2836 = vadd.s32 %v2835, 127
      %v2837 = vshll.u32 %v2836, 23
      %v2838 = vor.u32 4788187, %v2837
      %v2839 = vand.u32 2147483647, %v2838
      %v2841 = vcvt.s32.f32 %v2834
      %v2842 = vmul.f32 %v2841, %v2839
      %v2843 = vxor.u32 %v2842, 2147483648
      %v2844 = vsel %vm2761, %v2843, %v2842
      %v2845 = vsub.s32 4, %v2821
      %v2846 = vsel %vm2761, %v2845, %v2821
      %v2847 = vsel %vm2760, %v461, %v2844
      %v2848 = vsel %vm2760, 0, %v2846
      %v2849 = vcosq.f32.pop %v2847
      %v2850 = vsinq.f32.pop %v2847
      %vm2851 = vweird.f32 %v461
      %v2852 = vadd.s32 %v2848, 3
      %v2853 = vand.u32 %v2852, 3
      %vm2854 = vcmp.lt.s32.totalorder %v2853, 2
      %vm2855 = vcmp.eq.s32.totalorder %v2853, 0
      %v2856 = vxor.u32 %v2850, 2147483648
      %v2857 = vsel %vm2855, %v2849, %v2856
      %vm2858 = vcmp.eq.s32.totalorder %v2853, 2
      %v2859 = vxor.u32 %v2849, 2147483648
      %v2860 = vsel %vm2858, %v2859, %v2850
      %v2861 = vsel %vm2854, %v2857, %v2860
      %v2862 = vsel %vm2851, nan, %v2861
      %v2863 = vand.u32 2147483647, %v462
      %vm2864 = vcmp.le.f32.partialorder %v2863, 0.7853982
      %vm2865 = vcmp.lt.s32.totalorder %v462, 0
      %v2866 = vand.u32 %v462, 2139095040
      %v2867 = vshrl.u32 %v2866, 23
      %v2868 = vsub.s32 %v2867, 127
      %v2869 = vand.u32 2147483647, %v462
      %v2870 = vand.u32 %v2869, 8388607
      %v2871 = vor.u32 %v2870, 8388608
      %v2872 = vsub.s32 0, %v2871
      %v2873 = vadd.s32 %v2868, 1
      %vm2874 = vcmp.gt.s32.totalorder %v2873, 0
      %v2875 = vsel %vm2874, %v2873, 0
      %v2876 = vshrl.u32 %v2875, 5
      %v2877 = vand.u32 %v2875, 31
      %v2878 = vsub.s32 32, %v2877
      %v2879 = vshrl.u32 683565275, %v2878
      %v2880 = vshll.u32 683565275, %v2877
      %v2881 = vshrl.u32 2475754826, %v2878
      %v2882 = vor.u32 %v2880, %v2881
      %v2883 = vshll.u32 2475754826, %v2877
      %v2884 = vshrl.u32 2131351028, %v2878
      %v2885 = vor.u32 %v2883, %v2884
      %v2886 = vshll.u32 2131351028, %v2877
      %v2887 = vshrl.u32 2102212464, %v2878
      %v2888 = vor.u32 %v2886, %v2887
      %v2889 = vshll.u32 2102212464, %v2877
      %v2890 = vshrl.u32 920167782, %v2878
      %v2891 = vor.u32 %v2889, %v2890
      %v2892 = vshll.u32 920167782, %v2877
      %v2893 = vshrl.u32 1326507024, %v2878
      %v2894 = vor.u32 %v2892, %v2893
      %vm2895 = vcmp.lt.s32.totalorder %v2876, 1
      %vm2896 = vcmp.lt.s32.totalorder %v2876, 2
      %vm2897 = vcmp.lt.s32.totalorder %v2876, 3
      %vm2898 = vcmp.lt.s32.totalorder %v2876, 4
      %v2899 = vsel %vm2895, %v2879, %v2882
      %v2900 = vsel %vm2898, %v2888, 2102212464
      %v2901 = vsel %vm2897, %v2885, %v2900
      %v2902 = vsel %vm2896, %v2899, %v2901
      %v2903 = vsel %vm2895, %v2882, %v2885
      %v2904 = vsel %vm2898, %v2891, 920167782
      %v2905 = vsel %vm2897, %v2888, %v2904
      %v2906 = vsel %vm2896, %v2903, %v2905
      %v2907 = vsel %vm2895, %v2885, %v2888
      %v2908 = vsel %vm2898, %v2894, 1326507024
      %v2909 = vsel %vm2897, %v2891, %v2908
      %v2910 = vsel %vm2896, %v2907, %v2909
      %v2911 = vshll.u32 %v2871, 8
      %v2912 = vmul.u32.u64.compose %v2911, %v2910
      %v2913 = vextract.low.u32 %v2912
      %v2914 = vextract.high.u32 %v2912
      %v2915 = vmul.u32.u64.compose %v2911, %v2906
      %v2916 = vextract.low.u32 %v2915
      %v2917 = vextract.high.u32 %v2915
      %v2918 = vmul.u32 %v2911, %v2902
      %v2919 = vadd.s32 %v2914, %v2916
      %vm2920 = vc.u32 %v2914, %v2916
      %v2921 = vadd.s32 %v2917, 1
      %v2922 = vsel %vm2920, %v2921, %v2917
      %v2923 = vadd.s32 %v2918, %v2922
      %v2924 = vadd.s32 %v2923, 536870912
      %v2925 = vshrl.u32 %v2924, 30
      %v2926 = vshll.u32 %v2925, 30
      %v2927 = vsub.s32 %v2923, %v2926
      %vm2928 = vcmp.lt.s32.totalorder %v2927, 0
      %v2929 = vsub.s32 0, %v2927
      %v2930 = vsel %vm2928, %v2929, %v2927
      %v2931 = vclz %v2930
      %v2932 = vsub.s32 %v2931, 2
      %vm2933 = vcmp.gt.s32.totalorder 0, %v2932
      %v2934 = vsel %vm2933, 0, %v2932
      %v2935 = vsub.s32 32, %v2934
      %v2936 = vshll.u32 %v2927, %v2934
      %v2937 = vshrl.u32 %v2919, %v2935
      %v2938 = vor.u32 %v2936, %v2937
      %v2939 = vsub.s32 4294967266, %v2934
      %v2940 = vadd.s32 %v2939, 127
      %v2941 = vshll.u32 %v2940, 23
      %v2942 = vor.u32 4788187, %v2941
      %v2943 = vand.u32 2147483647, %v2942
      %v2945 = vcvt.s32.f32 %v2938
      %v2946 = vmul.f32 %v2945, %v2943
      %v2947 = vxor.u32 %v2946, 2147483648
      %v2948 = vsel %vm2865, %v2947, %v2946
      %v2949 = vsub.s32 4, %v2925
      %v2950 = vsel %vm2865, %v2949, %v2925
      %v2951 = vsel %vm2864, %v462, %v2948
      %v2952 = vsel %vm2864, 0, %v2950
      %v2953 = vcosq.f32.pop %v2951
      %v2954 = vsinq.f32.pop %v2951
      %vm2955 = vweird.f32 %v462
      %v2956 = vadd.s32 %v2952, 3
      %v2957 = vand.u32 %v2956, 3
      %vm2958 = vcmp.lt.s32.totalorder %v2957, 2
      %vm2959 = vcmp.eq.s32.totalorder %v2957, 0
      %v2960 = vxor.u32 %v2954, 2147483648
      %v2961 = vsel %vm2959, %v2953, %v2960
      %vm2962 = vcmp.eq.s32.totalorder %v2957, 2
      %v2963 = vxor.u32 %v2953, 2147483648
      %v2964 = vsel %vm2962, %v2963, %v2954
      %v2965 = vsel %vm2958, %v2961, %v2964
      %v2966 = vsel %vm2955, nan, %v2965
      %v2967 = vand.u32 2147483647, %v463
      %vm2968 = vcmp.le.f32.partialorder %v2967, 0.7853982
      %vm2969 = vcmp.lt.s32.totalorder %v463, 0
      %v2970 = vand.u32 %v463, 2139095040
      %v2971 = vshrl.u32 %v2970, 23
      %v2972 = vsub.s32 %v2971, 127
      %v2973 = vand.u32 2147483647, %v463
      %v2974 = vand.u32 %v2973, 8388607
      %v2975 = vor.u32 %v2974, 8388608
      %v2976 = vsub.s32 0, %v2975
      %v2977 = vadd.s32 %v2972, 1
      %vm2978 = vcmp.gt.s32.totalorder %v2977, 0
      %v2979 = vsel %vm2978, %v2977, 0
      %v2980 = vshrl.u32 %v2979, 5
      %v2981 = vand.u32 %v2979, 31
      %v2982 = vsub.s32 32, %v2981
      %v2983 = vshrl.u32 683565275, %v2982
      %v2984 = vshll.u32 683565275, %v2981
      %v2985 = vshrl.u32 2475754826, %v2982
      %v2986 = vor.u32 %v2984, %v2985
      %v2987 = vshll.u32 2475754826, %v2981
      %v2988 = vshrl.u32 2131351028, %v2982
      %v2989 = vor.u32 %v2987, %v2988
      %v2990 = vshll.u32 2131351028, %v2981
      %v2991 = vshrl.u32 2102212464, %v2982
      %v2992 = vor.u32 %v2990, %v2991
      %v2993 = vshll.u32 2102212464, %v2981
      %v2994 = vshrl.u32 920167782, %v2982
      %v2995 = vor.u32 %v2993, %v2994
      %v2996 = vshll.u32 920167782, %v2981
      %v2997 = vshrl.u32 1326507024, %v2982
      %v2998 = vor.u32 %v2996, %v2997
      %vm2999 = vcmp.lt.s32.totalorder %v2980, 1
      %vm3000 = vcmp.lt.s32.totalorder %v2980, 2
      %vm3001 = vcmp.lt.s32.totalorder %v2980, 3
      %vm3002 = vcmp.lt.s32.totalorder %v2980, 4
      %v3003 = vsel %vm2999, %v2983, %v2986
      %v3004 = vsel %vm3002, %v2992, 2102212464
      %v3005 = vsel %vm3001, %v2989, %v3004
      %v3006 = vsel %vm3000, %v3003, %v3005
      %v3007 = vsel %vm2999, %v2986, %v2989
      %v3008 = vsel %vm3002, %v2995, 920167782
      %v3009 = vsel %vm3001, %v2992, %v3008
      %v3010 = vsel %vm3000, %v3007, %v3009
      %v3011 = vsel %vm2999, %v2989, %v2992
      %v3012 = vsel %vm3002, %v2998, 1326507024
      %v3013 = vsel %vm3001, %v2995, %v3012
      %v3014 = vsel %vm3000, %v3011, %v3013
      %v3015 = vshll.u32 %v2975, 8
      %v3016 = vmul.u32.u64.compose %v3015, %v3014
      %v3017 = vextract.low.u32 %v3016
      %v3018 = vextract.high.u32 %v3016
      %v3019 = vmul.u32.u64.compose %v3015, %v3010
      %v3020 = vextract.low.u32 %v3019
      %v3021 = vextract.high.u32 %v3019
      %v3022 = vmul.u32 %v3015, %v3006
      %v3023 = vadd.s32 %v3018, %v3020
      %vm3024 = vc.u32 %v3018, %v3020
      %v3025 = vadd.s32 %v3021, 1
      %v3026 = vsel %vm3024, %v3025, %v3021
      %v3027 = vadd.s32 %v3022, %v3026
      %v3028 = vadd.s32 %v3027, 536870912
      %v3029 = vshrl.u32 %v3028, 30
      %v3030 = vshll.u32 %v3029, 30
      %v3031 = vsub.s32 %v3027, %v3030
      %vm3032 = vcmp.lt.s32.totalorder %v3031, 0
      %v3033 = vsub.s32 0, %v3031
      %v3034 = vsel %vm3032, %v3033, %v3031
      %v3035 = vclz %v3034
      %v3036 = vsub.s32 %v3035, 2
      %vm3037 = vcmp.gt.s32.totalorder 0, %v3036
      %v3038 = vsel %vm3037, 0, %v3036
      %v3039 = vsub.s32 32, %v3038
      %v3040 = vshll.u32 %v3031, %v3038
      %v3041 = vshrl.u32 %v3023, %v3039
      %v3042 = vor.u32 %v3040, %v3041
      %v3043 = vsub.s32 4294967266, %v3038
      %v3044 = vadd.s32 %v3043, 127
      %v3045 = vshll.u32 %v3044, 23
      %v3046 = vor.u32 4788187, %v3045
      %v3047 = vand.u32 2147483647, %v3046
      %v3049 = vcvt.s32.f32 %v3042
      %v3050 = vmul.f32 %v3049, %v3047
      %v3051 = vxor.u32 %v3050, 2147483648
      %v3052 = vsel %vm2969, %v3051, %v3050
      %v3053 = vsub.s32 4, %v3029
      %v3054 = vsel %vm2969, %v3053, %v3029
      %v3055 = vsel %vm2968, %v463, %v3052
      %v3056 = vsel %vm2968, 0, %v3054
      %v3057 = vcosq.f32.pop %v3055
      %v3058 = vsinq.f32.pop %v3055
      %vm3059 = vweird.f32 %v463
      %v3060 = vadd.s32 %v3056, 3
      %v3061 = vand.u32 %v3060, 3
      %vm3062 = vcmp.lt.s32.totalorder %v3061, 2
      %vm3063 = vcmp.eq.s32.totalorder %v3061, 0
      %v3064 = vxor.u32 %v3058, 2147483648
      %v3065 = vsel %vm3063, %v3057, %v3064
      %vm3066 = vcmp.eq.s32.totalorder %v3061, 2
      %v3067 = vxor.u32 %v3057, 2147483648
      %v3068 = vsel %vm3066, %v3067, %v3058
      %v3069 = vsel %vm3062, %v3065, %v3068
      %v3070 = vsel %vm3059, nan, %v3069
      %v3071 = vand.u32 2147483647, %v464
      %vm3072 = vcmp.le.f32.partialorder %v3071, 0.7853982
      %vm3073 = vcmp.lt.s32.totalorder %v464, 0
      %v3074 = vand.u32 %v464, 2139095040
      %v3075 = vshrl.u32 %v3074, 23
      %v3076 = vsub.s32 %v3075, 127
      %v3077 = vand.u32 2147483647, %v464
      %v3078 = vand.u32 %v3077, 8388607
      %v3079 = vor.u32 %v3078, 8388608
      %v3080 = vsub.s32 0, %v3079
      %v3081 = vadd.s32 %v3076, 1
      %vm3082 = vcmp.gt.s32.totalorder %v3081, 0
      %v3083 = vsel %vm3082, %v3081, 0
      %v3084 = vshrl.u32 %v3083, 5
      %v3085 = vand.u32 %v3083, 31
      %v3086 = vsub.s32 32, %v3085
      %v3087 = vshrl.u32 683565275, %v3086
      %v3088 = vshll.u32 683565275, %v3085
      %v3089 = vshrl.u32 2475754826, %v3086
      %v3090 = vor.u32 %v3088, %v3089
      %v3091 = vshll.u32 2475754826, %v3085
      %v3092 = vshrl.u32 2131351028, %v3086
      %v3093 = vor.u32 %v3091, %v3092
      %v3094 = vshll.u32 2131351028, %v3085
      %v3095 = vshrl.u32 2102212464, %v3086
      %v3096 = vor.u32 %v3094, %v3095
      %v3097 = vshll.u32 2102212464, %v3085
      %v3098 = vshrl.u32 920167782, %v3086
      %v3099 = vor.u32 %v3097, %v3098
      %v3100 = vshll.u32 920167782, %v3085
      %v3101 = vshrl.u32 1326507024, %v3086
      %v3102 = vor.u32 %v3100, %v3101
      %vm3103 = vcmp.lt.s32.totalorder %v3084, 1
      %vm3104 = vcmp.lt.s32.totalorder %v3084, 2
      %vm3105 = vcmp.lt.s32.totalorder %v3084, 3
      %vm3106 = vcmp.lt.s32.totalorder %v3084, 4
      %v3107 = vsel %vm3103, %v3087, %v3090
      %v3108 = vsel %vm3106, %v3096, 2102212464
      %v3109 = vsel %vm3105, %v3093, %v3108
      %v3110 = vsel %vm3104, %v3107, %v3109
      %v3111 = vsel %vm3103, %v3090, %v3093
      %v3112 = vsel %vm3106, %v3099, 920167782
      %v3113 = vsel %vm3105, %v3096, %v3112
      %v3114 = vsel %vm3104, %v3111, %v3113
      %v3115 = vsel %vm3103, %v3093, %v3096
      %v3116 = vsel %vm3106, %v3102, 1326507024
      %v3117 = vsel %vm3105, %v3099, %v3116
      %v3118 = vsel %vm3104, %v3115, %v3117
      %v3119 = vshll.u32 %v3079, 8
      %v3120 = vmul.u32.u64.compose %v3119, %v3118
      %v3121 = vextract.low.u32 %v3120
      %v3122 = vextract.high.u32 %v3120
      %v3123 = vmul.u32.u64.compose %v3119, %v3114
      %v3124 = vextract.low.u32 %v3123
      %v3125 = vextract.high.u32 %v3123
      %v3126 = vmul.u32 %v3119, %v3110
      %v3127 = vadd.s32 %v3122, %v3124
      %vm3128 = vc.u32 %v3122, %v3124
      %v3129 = vadd.s32 %v3125, 1
      %v3130 = vsel %vm3128, %v3129, %v3125
      %v3131 = vadd.s32 %v3126, %v3130
      %v3132 = vadd.s32 %v3131, 536870912
      %v3133 = vshrl.u32 %v3132, 30
      %v3134 = vshll.u32 %v3133, 30
      %v3135 = vsub.s32 %v3131, %v3134
      %vm3136 = vcmp.lt.s32.totalorder %v3135, 0
      %v3137 = vsub.s32 0, %v3135
      %v3138 = vsel %vm3136, %v3137, %v3135
      %v3139 = vclz %v3138
      %v3140 = vsub.s32 %v3139, 2
      %vm3141 = vcmp.gt.s32.totalorder 0, %v3140
      %v3142 = vsel %vm3141, 0, %v3140
      %v3143 = vsub.s32 32, %v3142
      %v3144 = vshll.u32 %v3135, %v3142
      %v3145 = vshrl.u32 %v3127, %v3143
      %v3146 = vor.u32 %v3144, %v3145
      %v3147 = vsub.s32 4294967266, %v3142
      %v3148 = vadd.s32 %v3147, 127
      %v3149 = vshll.u32 %v3148, 23
      %v3150 = vor.u32 4788187, %v3149
      %v3151 = vand.u32 2147483647, %v3150
      %v3153 = vcvt.s32.f32 %v3146
      %v3154 = vmul.f32 %v3153, %v3151
      %v3155 = vxor.u32 %v3154, 2147483648
      %v3156 = vsel %vm3073, %v3155, %v3154
      %v3157 = vsub.s32 4, %v3133
      %v3158 = vsel %vm3073, %v3157, %v3133
      %v3159 = vsel %vm3072, %v464, %v3156
      %v3160 = vsel %vm3072, 0, %v3158
      %v3161 = vcosq.f32.pop %v3159
      %v3162 = vsinq.f32.pop %v3159
      %vm3163 = vweird.f32 %v464
      %v3164 = vadd.s32 %v3160, 3
      %v3165 = vand.u32 %v3164, 3
      %vm3166 = vcmp.lt.s32.totalorder %v3165, 2
      %vm3167 = vcmp.eq.s32.totalorder %v3165, 0
      %v3168 = vxor.u32 %v3162, 2147483648
      %v3169 = vsel %vm3167, %v3161, %v3168
      %vm3170 = vcmp.eq.s32.totalorder %v3165, 2
      %v3171 = vxor.u32 %v3161, 2147483648
      %v3172 = vsel %vm3170, %v3171, %v3162
      %v3173 = vsel %vm3166, %v3169, %v3172
      %v3174 = vsel %vm3163, nan, %v3173
      %v3175 = vand.u32 2147483647, %v465
      %vm3176 = vcmp.le.f32.partialorder %v3175, 0.7853982
      %vm3177 = vcmp.lt.s32.totalorder %v465, 0
      %v3178 = vand.u32 %v465, 2139095040
      %v3179 = vshrl.u32 %v3178, 23
      %v3180 = vsub.s32 %v3179, 127
      %v3181 = vand.u32 2147483647, %v465
      %v3182 = vand.u32 %v3181, 8388607
      %v3183 = vor.u32 %v3182, 8388608
      %v3184 = vsub.s32 0, %v3183
      %v3185 = vadd.s32 %v3180, 1
      %vm3186 = vcmp.gt.s32.totalorder %v3185, 0
      %v3187 = vsel %vm3186, %v3185, 0
      %v3188 = vshrl.u32 %v3187, 5
      %v3189 = vand.u32 %v3187, 31
      %v3190 = vsub.s32 32, %v3189
      %v3191 = vshrl.u32 683565275, %v3190
      %v3192 = vshll.u32 683565275, %v3189
      %v3193 = vshrl.u32 2475754826, %v3190
      %v3194 = vor.u32 %v3192, %v3193
      %v3195 = vshll.u32 2475754826, %v3189
      %v3196 = vshrl.u32 2131351028, %v3190
      %v3197 = vor.u32 %v3195, %v3196
      %v3198 = vshll.u32 2131351028, %v3189
      %v3199 = vshrl.u32 2102212464, %v3190
      %v3200 = vor.u32 %v3198, %v3199
      %v3201 = vshll.u32 2102212464, %v3189
      %v3202 = vshrl.u32 920167782, %v3190
      %v3203 = vor.u32 %v3201, %v3202
      %v3204 = vshll.u32 920167782, %v3189
      %v3205 = vshrl.u32 1326507024, %v3190
      %v3206 = vor.u32 %v3204, %v3205
      %vm3207 = vcmp.lt.s32.totalorder %v3188, 1
      %vm3208 = vcmp.lt.s32.totalorder %v3188, 2
      %vm3209 = vcmp.lt.s32.totalorder %v3188, 3
      %vm3210 = vcmp.lt.s32.totalorder %v3188, 4
      %v3211 = vsel %vm3207, %v3191, %v3194
      %v3212 = vsel %vm3210, %v3200, 2102212464
      %v3213 = vsel %vm3209, %v3197, %v3212
      %v3214 = vsel %vm3208, %v3211, %v3213
      %v3215 = vsel %vm3207, %v3194, %v3197
      %v3216 = vsel %vm3210, %v3203, 920167782
      %v3217 = vsel %vm3209, %v3200, %v3216
      %v3218 = vsel %vm3208, %v3215, %v3217
      %v3219 = vsel %vm3207, %v3197, %v3200
      %v3220 = vsel %vm3210, %v3206, 1326507024
      %v3221 = vsel %vm3209, %v3203, %v3220
      %v3222 = vsel %vm3208, %v3219, %v3221
      %v3223 = vshll.u32 %v3183, 8
      %v3224 = vmul.u32.u64.compose %v3223, %v3222
      %v3225 = vextract.low.u32 %v3224
      %v3226 = vextract.high.u32 %v3224
      %v3227 = vmul.u32.u64.compose %v3223, %v3218
      %v3228 = vextract.low.u32 %v3227
      %v3229 = vextract.high.u32 %v3227
      %v3230 = vmul.u32 %v3223, %v3214
      %v3231 = vadd.s32 %v3226, %v3228
      %vm3232 = vc.u32 %v3226, %v3228
      %v3233 = vadd.s32 %v3229, 1
      %v3234 = vsel %vm3232, %v3233, %v3229
      %v3235 = vadd.s32 %v3230, %v3234
      %v3236 = vadd.s32 %v3235, 536870912
      %v3237 = vshrl.u32 %v3236, 30
      %v3238 = vshll.u32 %v3237, 30
      %v3239 = vsub.s32 %v3235, %v3238
      %vm3240 = vcmp.lt.s32.totalorder %v3239, 0
      %v3241 = vsub.s32 0, %v3239
      %v3242 = vsel %vm3240, %v3241, %v3239
      %v3243 = vclz %v3242
      %v3244 = vsub.s32 %v3243, 2
      %vm3245 = vcmp.gt.s32.totalorder 0, %v3244
      %v3246 = vsel %vm3245, 0, %v3244
      %v3247 = vsub.s32 32, %v3246
      %v3248 = vshll.u32 %v3239, %v3246
      %v3249 = vshrl.u32 %v3231, %v3247
      %v3250 = vor.u32 %v3248, %v3249
      %v3251 = vsub.s32 4294967266, %v3246
      %v3252 = vadd.s32 %v3251, 127
      %v3253 = vshll.u32 %v3252, 23
      %v3254 = vor.u32 4788187, %v3253
      %v3255 = vand.u32 2147483647, %v3254
      %v3257 = vcvt.s32.f32 %v3250
      %v3258 = vmul.f32 %v3257, %v3255
      %v3259 = vxor.u32 %v3258, 2147483648
      %v3260 = vsel %vm3177, %v3259, %v3258
      %v3261 = vsub.s32 4, %v3237
      %v3262 = vsel %vm3177, %v3261, %v3237
      %v3263 = vsel %vm3176, %v465, %v3260
      %v3264 = vsel %vm3176, 0, %v3262
      %v3265 = vcosq.f32.pop %v3263
      %v3266 = vsinq.f32.pop %v3263
      %vm3267 = vweird.f32 %v465
      %v3268 = vadd.s32 %v3264, 3
      %v3269 = vand.u32 %v3268, 3
      %vm3270 = vcmp.lt.s32.totalorder %v3269, 2
      %vm3271 = vcmp.eq.s32.totalorder %v3269, 0
      %v3272 = vxor.u32 %v3266, 2147483648
      %v3273 = vsel %vm3271, %v3265, %v3272
      %vm3274 = vcmp.eq.s32.totalorder %v3269, 2
      %v3275 = vxor.u32 %v3265, 2147483648
      %v3276 = vsel %vm3274, %v3275, %v3266
      %v3277 = vsel %vm3270, %v3273, %v3276
      %v3278 = vsel %vm3267, nan, %v3277
      %v3279 = vand.u32 2147483647, %v466
      %vm3280 = vcmp.le.f32.partialorder %v3279, 0.7853982
      %vm3281 = vcmp.lt.s32.totalorder %v466, 0
      %v3282 = vand.u32 %v466, 2139095040
      %v3283 = vshrl.u32 %v3282, 23
      %v3284 = vsub.s32 %v3283, 127
      %v3285 = vand.u32 2147483647, %v466
      %v3286 = vand.u32 %v3285, 8388607
      %v3287 = vor.u32 %v3286, 8388608
      %v3288 = vsub.s32 0, %v3287
      %v3289 = vadd.s32 %v3284, 1
      %vm3290 = vcmp.gt.s32.totalorder %v3289, 0
      %v3291 = vsel %vm3290, %v3289, 0
      %v3292 = vshrl.u32 %v3291, 5
      %v3293 = vand.u32 %v3291, 31
      %v3294 = vsub.s32 32, %v3293
      %v3295 = vshrl.u32 683565275, %v3294
      %v3296 = vshll.u32 683565275, %v3293
      %v3297 = vshrl.u32 2475754826, %v3294
      %v3298 = vor.u32 %v3296, %v3297
      %v3299 = vshll.u32 2475754826, %v3293
      %v3300 = vshrl.u32 2131351028, %v3294
      %v3301 = vor.u32 %v3299, %v3300
      %v3302 = vshll.u32 2131351028, %v3293
      %v3303 = vshrl.u32 2102212464, %v3294
      %v3304 = vor.u32 %v3302, %v3303
      %v3305 = vshll.u32 2102212464, %v3293
      %v3306 = vshrl.u32 920167782, %v3294
      %v3307 = vor.u32 %v3305, %v3306
      %v3308 = vshll.u32 920167782, %v3293
      %v3309 = vshrl.u32 1326507024, %v3294
      %v3310 = vor.u32 %v3308, %v3309
      %vm3311 = vcmp.lt.s32.totalorder %v3292, 1
      %vm3312 = vcmp.lt.s32.totalorder %v3292, 2
      %vm3313 = vcmp.lt.s32.totalorder %v3292, 3
      %vm3314 = vcmp.lt.s32.totalorder %v3292, 4
      %v3315 = vsel %vm3311, %v3295, %v3298
      %v3316 = vsel %vm3314, %v3304, 2102212464
      %v3317 = vsel %vm3313, %v3301, %v3316
      %v3318 = vsel %vm3312, %v3315, %v3317
      %v3319 = vsel %vm3311, %v3298, %v3301
      %v3320 = vsel %vm3314, %v3307, 920167782
      %v3321 = vsel %vm3313, %v3304, %v3320
      %v3322 = vsel %vm3312, %v3319, %v3321
      %v3323 = vsel %vm3311, %v3301, %v3304
      %v3324 = vsel %vm3314, %v3310, 1326507024
      %v3325 = vsel %vm3313, %v3307, %v3324
      %v3326 = vsel %vm3312, %v3323, %v3325
      %v3327 = vshll.u32 %v3287, 8
      %v3328 = vmul.u32.u64.compose %v3327, %v3326
      %v3329 = vextract.low.u32 %v3328
      %v3330 = vextract.high.u32 %v3328
      %v3331 = vmul.u32.u64.compose %v3327, %v3322
      %v3332 = vextract.low.u32 %v3331
      %v3333 = vextract.high.u32 %v3331
      %v3334 = vmul.u32 %v3327, %v3318
      %v3335 = vadd.s32 %v3330, %v3332
      %vm3336 = vc.u32 %v3330, %v3332
      %v3337 = vadd.s32 %v3333, 1
      %v3338 = vsel %vm3336, %v3337, %v3333
      %v3339 = vadd.s32 %v3334, %v3338
      %v3340 = vadd.s32 %v3339, 536870912
      %v3341 = vshrl.u32 %v3340, 30
      %v3342 = vshll.u32 %v3341, 30
      %v3343 = vsub.s32 %v3339, %v3342
      %vm3344 = vcmp.lt.s32.totalorder %v3343, 0
      %v3345 = vsub.s32 0, %v3343
      %v3346 = vsel %vm3344, %v3345, %v3343
      %v3347 = vclz %v3346
      %v3348 = vsub.s32 %v3347, 2
      %vm3349 = vcmp.gt.s32.totalorder 0, %v3348
      %v3350 = vsel %vm3349, 0, %v3348
      %v3351 = vsub.s32 32, %v3350
      %v3352 = vshll.u32 %v3343, %v3350
      %v3353 = vshrl.u32 %v3335, %v3351
      %v3354 = vor.u32 %v3352, %v3353
      %v3355 = vsub.s32 4294967266, %v3350
      %v3356 = vadd.s32 %v3355, 127
      %v3357 = vshll.u32 %v3356, 23
      %v3358 = vor.u32 4788187, %v3357
      %v3359 = vand.u32 2147483647, %v3358
      %v3361 = vcvt.s32.f32 %v3354
      %v3362 = vmul.f32 %v3361, %v3359
      %v3363 = vxor.u32 %v3362, 2147483648
      %v3364 = vsel %vm3281, %v3363, %v3362
      %v3365 = vsub.s32 4, %v3341
      %v3366 = vsel %vm3281, %v3365, %v3341
      %v3367 = vsel %vm3280, %v466, %v3364
      %v3368 = vsel %vm3280, 0, %v3366
      %v3369 = vcosq.f32.pop %v3367
      %v3370 = vsinq.f32.pop %v3367
      %vm3371 = vweird.f32 %v466
      %v3372 = vadd.s32 %v3368, 3
      %v3373 = vand.u32 %v3372, 3
      %vm3374 = vcmp.lt.s32.totalorder %v3373, 2
      %vm3375 = vcmp.eq.s32.totalorder %v3373, 0
      %v3376 = vxor.u32 %v3370, 2147483648
      %v3377 = vsel %vm3375, %v3369, %v3376
      %vm3378 = vcmp.eq.s32.totalorder %v3373, 2
      %v3379 = vxor.u32 %v3369, 2147483648
      %v3380 = vsel %vm3378, %v3379, %v3370
      %v3381 = vsel %vm3374, %v3377, %v3380
      %v3382 = vsel %vm3371, nan, %v3381
      %v3383 = vand.u32 2147483647, %v467
      %vm3384 = vcmp.le.f32.partialorder %v3383, 0.7853982
      %vm3385 = vcmp.lt.s32.totalorder %v467, 0
      %v3386 = vand.u32 %v467, 2139095040
      %v3387 = vshrl.u32 %v3386, 23
      %v3388 = vsub.s32 %v3387, 127
      %v3389 = vand.u32 2147483647, %v467
      %v3390 = vand.u32 %v3389, 8388607
      %v3391 = vor.u32 %v3390, 8388608
      %v3392 = vsub.s32 0, %v3391
      %v3393 = vadd.s32 %v3388, 1
      %vm3394 = vcmp.gt.s32.totalorder %v3393, 0
      %v3395 = vsel %vm3394, %v3393, 0
      %v3396 = vshrl.u32 %v3395, 5
      %v3397 = vand.u32 %v3395, 31
      %v3398 = vsub.s32 32, %v3397
      %v3399 = vshrl.u32 683565275, %v3398
      %v3400 = vshll.u32 683565275, %v3397
      %v3401 = vshrl.u32 2475754826, %v3398
      %v3402 = vor.u32 %v3400, %v3401
      %v3403 = vshll.u32 2475754826, %v3397
      %v3404 = vshrl.u32 2131351028, %v3398
      %v3405 = vor.u32 %v3403, %v3404
      %v3406 = vshll.u32 2131351028, %v3397
      %v3407 = vshrl.u32 2102212464, %v3398
      %v3408 = vor.u32 %v3406, %v3407
      %v3409 = vshll.u32 2102212464, %v3397
      %v3410 = vshrl.u32 920167782, %v3398
      %v3411 = vor.u32 %v3409, %v3410
      %v3412 = vshll.u32 920167782, %v3397
      %v3413 = vshrl.u32 1326507024, %v3398
      %v3414 = vor.u32 %v3412, %v3413
      %vm3415 = vcmp.lt.s32.totalorder %v3396, 1
      %vm3416 = vcmp.lt.s32.totalorder %v3396, 2
      %vm3417 = vcmp.lt.s32.totalorder %v3396, 3
      %vm3418 = vcmp.lt.s32.totalorder %v3396, 4
      %v3419 = vsel %vm3415, %v3399, %v3402
      %v3420 = vsel %vm3418, %v3408, 2102212464
      %v3421 = vsel %vm3417, %v3405, %v3420
      %v3422 = vsel %vm3416, %v3419, %v3421
      %v3423 = vsel %vm3415, %v3402, %v3405
      %v3424 = vsel %vm3418, %v3411, 920167782
      %v3425 = vsel %vm3417, %v3408, %v3424
      %v3426 = vsel %vm3416, %v3423, %v3425
      %v3427 = vsel %vm3415, %v3405, %v3408
      %v3428 = vsel %vm3418, %v3414, 1326507024
      %v3429 = vsel %vm3417, %v3411, %v3428
      %v3430 = vsel %vm3416, %v3427, %v3429
      %v3431 = vshll.u32 %v3391, 8
      %v3432 = vmul.u32.u64.compose %v3431, %v3430
      %v3433 = vextract.low.u32 %v3432
      %v3434 = vextract.high.u32 %v3432
      %v3435 = vmul.u32.u64.compose %v3431, %v3426
      %v3436 = vextract.low.u32 %v3435
      %v3437 = vextract.high.u32 %v3435
      %v3438 = vmul.u32 %v3431, %v3422
      %v3439 = vadd.s32 %v3434, %v3436
      %vm3440 = vc.u32 %v3434, %v3436
      %v3441 = vadd.s32 %v3437, 1
      %v3442 = vsel %vm3440, %v3441, %v3437
      %v3443 = vadd.s32 %v3438, %v3442
      %v3444 = vadd.s32 %v3443, 536870912
      %v3445 = vshrl.u32 %v3444, 30
      %v3446 = vshll.u32 %v3445, 30
      %v3447 = vsub.s32 %v3443, %v3446
      %vm3448 = vcmp.lt.s32.totalorder %v3447, 0
      %v3449 = vsub.s32 0, %v3447
      %v3450 = vsel %vm3448, %v3449, %v3447
      %v3451 = vclz %v3450
      %v3452 = vsub.s32 %v3451, 2
      %vm3453 = vcmp.gt.s32.totalorder 0, %v3452
      %v3454 = vsel %vm3453, 0, %v3452
      %v3455 = vsub.s32 32, %v3454
      %v3456 = vshll.u32 %v3447, %v3454
      %v3457 = vshrl.u32 %v3439, %v3455
      %v3458 = vor.u32 %v3456, %v3457
      %v3459 = vsub.s32 4294967266, %v3454
      %v3460 = vadd.s32 %v3459, 127
      %v3461 = vshll.u32 %v3460, 23
      %v3462 = vor.u32 4788187, %v3461
      %v3463 = vand.u32 2147483647, %v3462
      %v3465 = vcvt.s32.f32 %v3458
      %v3466 = vmul.f32 %v3465, %v3463
      %v3467 = vxor.u32 %v3466, 2147483648
      %v3468 = vsel %vm3385, %v3467, %v3466
      %v3469 = vsub.s32 4, %v3445
      %v3470 = vsel %vm3385, %v3469, %v3445
      %v3471 = vsel %vm3384, %v467, %v3468
      %v3472 = vsel %vm3384, 0, %v3470
      %v3473 = vcosq.f32.pop %v3471
      %v3474 = vsinq.f32.pop %v3471
      %vm3475 = vweird.f32 %v467
      %v3476 = vadd.s32 %v3472, 3
      %v3477 = vand.u32 %v3476, 3
      %vm3478 = vcmp.lt.s32.totalorder %v3477, 2
      %vm3479 = vcmp.eq.s32.totalorder %v3477, 0
      %v3480 = vxor.u32 %v3474, 2147483648
      %v3481 = vsel %vm3479, %v3473, %v3480
      %vm3482 = vcmp.eq.s32.totalorder %v3477, 2
      %v3483 = vxor.u32 %v3473, 2147483648
      %v3484 = vsel %vm3482, %v3483, %v3474
      %v3485 = vsel %vm3478, %v3481, %v3484
      %v3486 = vsel %vm3475, nan, %v3485
      %v3487 = vand.u32 2147483647, %v468
      %vm3488 = vcmp.le.f32.partialorder %v3487, 0.7853982
      %vm3489 = vcmp.lt.s32.totalorder %v468, 0
      %v3490 = vand.u32 %v468, 2139095040
      %v3491 = vshrl.u32 %v3490, 23
      %v3492 = vsub.s32 %v3491, 127
      %v3493 = vand.u32 2147483647, %v468
      %v3494 = vand.u32 %v3493, 8388607
      %v3495 = vor.u32 %v3494, 8388608
      %v3496 = vsub.s32 0, %v3495
      %v3497 = vadd.s32 %v3492, 1
      %vm3498 = vcmp.gt.s32.totalorder %v3497, 0
      %v3499 = vsel %vm3498, %v3497, 0
      %v3500 = vshrl.u32 %v3499, 5
      %v3501 = vand.u32 %v3499, 31
      %v3502 = vsub.s32 32, %v3501
      %v3503 = vshrl.u32 683565275, %v3502
      %v3504 = vshll.u32 683565275, %v3501
      %v3505 = vshrl.u32 2475754826, %v3502
      %v3506 = vor.u32 %v3504, %v3505
      %v3507 = vshll.u32 2475754826, %v3501
      %v3508 = vshrl.u32 2131351028, %v3502
      %v3509 = vor.u32 %v3507, %v3508
      %v3510 = vshll.u32 2131351028, %v3501
      %v3511 = vshrl.u32 2102212464, %v3502
      %v3512 = vor.u32 %v3510, %v3511
      %v3513 = vshll.u32 2102212464, %v3501
      %v3514 = vshrl.u32 920167782, %v3502
      %v3515 = vor.u32 %v3513, %v3514
      %v3516 = vshll.u32 920167782, %v3501
      %v3517 = vshrl.u32 1326507024, %v3502
      %v3518 = vor.u32 %v3516, %v3517
      %vm3519 = vcmp.lt.s32.totalorder %v3500, 1
      %vm3520 = vcmp.lt.s32.totalorder %v3500, 2
      %vm3521 = vcmp.lt.s32.totalorder %v3500, 3
      %vm3522 = vcmp.lt.s32.totalorder %v3500, 4
      %v3523 = vsel %vm3519, %v3503, %v3506
      %v3524 = vsel %vm3522, %v3512, 2102212464
      %v3525 = vsel %vm3521, %v3509, %v3524
      %v3526 = vsel %vm3520, %v3523, %v3525
      %v3527 = vsel %vm3519, %v3506, %v3509
      %v3528 = vsel %vm3522, %v3515, 920167782
      %v3529 = vsel %vm3521, %v3512, %v3528
      %v3530 = vsel %vm3520, %v3527, %v3529
      %v3531 = vsel %vm3519, %v3509, %v3512
      %v3532 = vsel %vm3522, %v3518, 1326507024
      %v3533 = vsel %vm3521, %v3515, %v3532
      %v3534 = vsel %vm3520, %v3531, %v3533
      %v3535 = vshll.u32 %v3495, 8
      %v3536 = vmul.u32.u64.compose %v3535, %v3534
      %v3537 = vextract.low.u32 %v3536
      %v3538 = vextract.high.u32 %v3536
      %v3539 = vmul.u32.u64.compose %v3535, %v3530
      %v3540 = vextract.low.u32 %v3539
      %v3541 = vextract.high.u32 %v3539
      %v3542 = vmul.u32 %v3535, %v3526
      %v3543 = vadd.s32 %v3538, %v3540
      %vm3544 = vc.u32 %v3538, %v3540
      %v3545 = vadd.s32 %v3541, 1
      %v3546 = vsel %vm3544, %v3545, %v3541
      %v3547 = vadd.s32 %v3542, %v3546
      %v3548 = vadd.s32 %v3547, 536870912
      %v3549 = vshrl.u32 %v3548, 30
      %v3550 = vshll.u32 %v3549, 30
      %v3551 = vsub.s32 %v3547, %v3550
      %vm3552 = vcmp.lt.s32.totalorder %v3551, 0
      %v3553 = vsub.s32 0, %v3551
      %v3554 = vsel %vm3552, %v3553, %v3551
      %v3555 = vclz %v3554
      %v3556 = vsub.s32 %v3555, 2
      %vm3557 = vcmp.gt.s32.totalorder 0, %v3556
      %v3558 = vsel %vm3557, 0, %v3556
      %v3559 = vsub.s32 32, %v3558
      %v3560 = vshll.u32 %v3551, %v3558
      %v3561 = vshrl.u32 %v3543, %v3559
      %v3562 = vor.u32 %v3560, %v3561
      %v3563 = vsub.s32 4294967266, %v3558
      %v3564 = vadd.s32 %v3563, 127
      %v3565 = vshll.u32 %v3564, 23
      %v3566 = vor.u32 4788187, %v3565
      %v3567 = vand.u32 2147483647, %v3566
      %v3569 = vcvt.s32.f32 %v3562
      %v3570 = vmul.f32 %v3569, %v3567
      %v3571 = vxor.u32 %v3570, 2147483648
      %v3572 = vsel %vm3489, %v3571, %v3570
      %v3573 = vsub.s32 4, %v3549
      %v3574 = vsel %vm3489, %v3573, %v3549
      %v3575 = vsel %vm3488, %v468, %v3572
      %v3576 = vsel %vm3488, 0, %v3574
      %v3577 = vcosq.f32.pop %v3575
      %v3578 = vsinq.f32.pop %v3575
      %vm3579 = vweird.f32 %v468
      %v3580 = vadd.s32 %v3576, 3
      %v3581 = vand.u32 %v3580, 3
      %vm3582 = vcmp.lt.s32.totalorder %v3581, 2
      %vm3583 = vcmp.eq.s32.totalorder %v3581, 0
      %v3584 = vxor.u32 %v3578, 2147483648
      %v3585 = vsel %vm3583, %v3577, %v3584
      %vm3586 = vcmp.eq.s32.totalorder %v3581, 2
      %v3587 = vxor.u32 %v3577, 2147483648
      %v3588 = vsel %vm3586, %v3587, %v3578
      %v3589 = vsel %vm3582, %v3585, %v3588
      %v3590 = vsel %vm3579, nan, %v3589
      %v3591 = vand.u32 2147483647, %v469
      %vm3592 = vcmp.le.f32.partialorder %v3591, 0.7853982
      %vm3593 = vcmp.lt.s32.totalorder %v469, 0
      %v3594 = vand.u32 %v469, 2139095040
      %v3595 = vshrl.u32 %v3594, 23
      %v3596 = vsub.s32 %v3595, 127
      %v3597 = vand.u32 2147483647, %v469
      %v3598 = vand.u32 %v3597, 8388607
      %v3599 = vor.u32 %v3598, 8388608
      %v3600 = vsub.s32 0, %v3599
      %v3601 = vadd.s32 %v3596, 1
      %vm3602 = vcmp.gt.s32.totalorder %v3601, 0
      %v3603 = vsel %vm3602, %v3601, 0
      %v3604 = vshrl.u32 %v3603, 5
      %v3605 = vand.u32 %v3603, 31
      %v3606 = vsub.s32 32, %v3605
      %v3607 = vshrl.u32 683565275, %v3606
      %v3608 = vshll.u32 683565275, %v3605
      %v3609 = vshrl.u32 2475754826, %v3606
      %v3610 = vor.u32 %v3608, %v3609
      %v3611 = vshll.u32 2475754826, %v3605
      %v3612 = vshrl.u32 2131351028, %v3606
      %v3613 = vor.u32 %v3611, %v3612
      %v3614 = vshll.u32 2131351028, %v3605
      %v3615 = vshrl.u32 2102212464, %v3606
      %v3616 = vor.u32 %v3614, %v3615
      %v3617 = vshll.u32 2102212464, %v3605
      %v3618 = vshrl.u32 920167782, %v3606
      %v3619 = vor.u32 %v3617, %v3618
      %v3620 = vshll.u32 920167782, %v3605
      %v3621 = vshrl.u32 1326507024, %v3606
      %v3622 = vor.u32 %v3620, %v3621
      %vm3623 = vcmp.lt.s32.totalorder %v3604, 1
      %vm3624 = vcmp.lt.s32.totalorder %v3604, 2
      %vm3625 = vcmp.lt.s32.totalorder %v3604, 3
      %vm3626 = vcmp.lt.s32.totalorder %v3604, 4
      %v3627 = vsel %vm3623, %v3607, %v3610
      %v3628 = vsel %vm3626, %v3616, 2102212464
      %v3629 = vsel %vm3625, %v3613, %v3628
      %v3630 = vsel %vm3624, %v3627, %v3629
      %v3631 = vsel %vm3623, %v3610, %v3613
      %v3632 = vsel %vm3626, %v3619, 920167782
      %v3633 = vsel %vm3625, %v3616, %v3632
      %v3634 = vsel %vm3624, %v3631, %v3633
      %v3635 = vsel %vm3623, %v3613, %v3616
      %v3636 = vsel %vm3626, %v3622, 1326507024
      %v3637 = vsel %vm3625, %v3619, %v3636
      %v3638 = vsel %vm3624, %v3635, %v3637
      %v3639 = vshll.u32 %v3599, 8
      %v3640 = vmul.u32.u64.compose %v3639, %v3638
      %v3641 = vextract.low.u32 %v3640
      %v3642 = vextract.high.u32 %v3640
      %v3643 = vmul.u32.u64.compose %v3639, %v3634
      %v3644 = vextract.low.u32 %v3643
      %v3645 = vextract.high.u32 %v3643
      %v3646 = vmul.u32 %v3639, %v3630
      %v3647 = vadd.s32 %v3642, %v3644
      %vm3648 = vc.u32 %v3642, %v3644
      %v3649 = vadd.s32 %v3645, 1
      %v3650 = vsel %vm3648, %v3649, %v3645
      %v3651 = vadd.s32 %v3646, %v3650
      %v3652 = vadd.s32 %v3651, 536870912
      %v3653 = vshrl.u32 %v3652, 30
      %v3654 = vshll.u32 %v3653, 30
      %v3655 = vsub.s32 %v3651, %v3654
      %vm3656 = vcmp.lt.s32.totalorder %v3655, 0
      %v3657 = vsub.s32 0, %v3655
      %v3658 = vsel %vm3656, %v3657, %v3655
      %v3659 = vclz %v3658
      %v3660 = vsub.s32 %v3659, 2
      %vm3661 = vcmp.gt.s32.totalorder 0, %v3660
      %v3662 = vsel %vm3661, 0, %v3660
      %v3663 = vsub.s32 32, %v3662
      %v3664 = vshll.u32 %v3655, %v3662
      %v3665 = vshrl.u32 %v3647, %v3663
      %v3666 = vor.u32 %v3664, %v3665
      %v3667 = vsub.s32 4294967266, %v3662
      %v3668 = vadd.s32 %v3667, 127
      %v3669 = vshll.u32 %v3668, 23
      %v3670 = vor.u32 4788187, %v3669
      %v3671 = vand.u32 2147483647, %v3670
      %v3673 = vcvt.s32.f32 %v3666
      %v3674 = vmul.f32 %v3673, %v3671
      %v3675 = vxor.u32 %v3674, 2147483648
      %v3676 = vsel %vm3593, %v3675, %v3674
      %v3677 = vsub.s32 4, %v3653
      %v3678 = vsel %vm3593, %v3677, %v3653
      %v3679 = vsel %vm3592, %v469, %v3676
      %v3680 = vsel %vm3592, 0, %v3678
      %v3681 = vcosq.f32.pop %v3679
      %v3682 = vsinq.f32.pop %v3679
      %vm3683 = vweird.f32 %v469
      %v3684 = vadd.s32 %v3680, 3
      %v3685 = vand.u32 %v3684, 3
      %vm3686 = vcmp.lt.s32.totalorder %v3685, 2
      %vm3687 = vcmp.eq.s32.totalorder %v3685, 0
      %v3688 = vxor.u32 %v3682, 2147483648
      %v3689 = vsel %vm3687, %v3681, %v3688
      %vm3690 = vcmp.eq.s32.totalorder %v3685, 2
      %v3691 = vxor.u32 %v3681, 2147483648
      %v3692 = vsel %vm3690, %v3691, %v3682
      %v3693 = vsel %vm3686, %v3689, %v3692
      %v3694 = vsel %vm3683, nan, %v3693
      %v3695 = vand.u32 2147483647, %v470
      %vm3696 = vcmp.le.f32.partialorder %v3695, 0.7853982
      %vm3697 = vcmp.lt.s32.totalorder %v470, 0
      %v3698 = vand.u32 %v470, 2139095040
      %v3699 = vshrl.u32 %v3698, 23
      %v3700 = vsub.s32 %v3699, 127
      %v3701 = vand.u32 2147483647, %v470
      %v3702 = vand.u32 %v3701, 8388607
      %v3703 = vor.u32 %v3702, 8388608
      %v3704 = vsub.s32 0, %v3703
      %v3705 = vadd.s32 %v3700, 1
      %vm3706 = vcmp.gt.s32.totalorder %v3705, 0
      %v3707 = vsel %vm3706, %v3705, 0
      %v3708 = vshrl.u32 %v3707, 5
      %v3709 = vand.u32 %v3707, 31
      %v3710 = vsub.s32 32, %v3709
      %v3711 = vshrl.u32 683565275, %v3710
      %v3712 = vshll.u32 683565275, %v3709
      %v3713 = vshrl.u32 2475754826, %v3710
      %v3714 = vor.u32 %v3712, %v3713
      %v3715 = vshll.u32 2475754826, %v3709
      %v3716 = vshrl.u32 2131351028, %v3710
      %v3717 = vor.u32 %v3715, %v3716
      %v3718 = vshll.u32 2131351028, %v3709
      %v3719 = vshrl.u32 2102212464, %v3710
      %v3720 = vor.u32 %v3718, %v3719
      %v3721 = vshll.u32 2102212464, %v3709
      %v3722 = vshrl.u32 920167782, %v3710
      %v3723 = vor.u32 %v3721, %v3722
      %v3724 = vshll.u32 920167782, %v3709
      %v3725 = vshrl.u32 1326507024, %v3710
      %v3726 = vor.u32 %v3724, %v3725
      %vm3727 = vcmp.lt.s32.totalorder %v3708, 1
      %vm3728 = vcmp.lt.s32.totalorder %v3708, 2
      %vm3729 = vcmp.lt.s32.totalorder %v3708, 3
      %vm3730 = vcmp.lt.s32.totalorder %v3708, 4
      %v3731 = vsel %vm3727, %v3711, %v3714
      %v3732 = vsel %vm3730, %v3720, 2102212464
      %v3733 = vsel %vm3729, %v3717, %v3732
      %v3734 = vsel %vm3728, %v3731, %v3733
      %v3735 = vsel %vm3727, %v3714, %v3717
      %v3736 = vsel %vm3730, %v3723, 920167782
      %v3737 = vsel %vm3729, %v3720, %v3736
      %v3738 = vsel %vm3728, %v3735, %v3737
      %v3739 = vsel %vm3727, %v3717, %v3720
      %v3740 = vsel %vm3730, %v3726, 1326507024
      %v3741 = vsel %vm3729, %v3723, %v3740
      %v3742 = vsel %vm3728, %v3739, %v3741
      %v3743 = vshll.u32 %v3703, 8
      %v3744 = vmul.u32.u64.compose %v3743, %v3742
      %v3745 = vextract.low.u32 %v3744
      %v3746 = vextract.high.u32 %v3744
      %v3747 = vmul.u32.u64.compose %v3743, %v3738
      %v3748 = vextract.low.u32 %v3747
      %v3749 = vextract.high.u32 %v3747
      %v3750 = vmul.u32 %v3743, %v3734
      %v3751 = vadd.s32 %v3746, %v3748
      %vm3752 = vc.u32 %v3746, %v3748
      %v3753 = vadd.s32 %v3749, 1
      %v3754 = vsel %vm3752, %v3753, %v3749
      %v3755 = vadd.s32 %v3750, %v3754
      %v3756 = vadd.s32 %v3755, 536870912
      %v3757 = vshrl.u32 %v3756, 30
      %v3758 = vshll.u32 %v3757, 30
      %v3759 = vsub.s32 %v3755, %v3758
      %vm3760 = vcmp.lt.s32.totalorder %v3759, 0
      %v3761 = vsub.s32 0, %v3759
      %v3762 = vsel %vm3760, %v3761, %v3759
      %v3763 = vclz %v3762
      %v3764 = vsub.s32 %v3763, 2
      %vm3765 = vcmp.gt.s32.totalorder 0, %v3764
      %v3766 = vsel %vm3765, 0, %v3764
      %v3767 = vsub.s32 32, %v3766
      %v3768 = vshll.u32 %v3759, %v3766
      %v3769 = vshrl.u32 %v3751, %v3767
      %v3770 = vor.u32 %v3768, %v3769
      %v3771 = vsub.s32 4294967266, %v3766
      %v3772 = vadd.s32 %v3771, 127
      %v3773 = vshll.u32 %v3772, 23
      %v3774 = vor.u32 4788187, %v3773
      %v3775 = vand.u32 2147483647, %v3774
      %v3777 = vcvt.s32.f32 %v3770
      %v3778 = vmul.f32 %v3777, %v3775
      %v3779 = vxor.u32 %v3778, 2147483648
      %v3780 = vsel %vm3697, %v3779, %v3778
      %v3781 = vsub.s32 4, %v3757
      %v3782 = vsel %vm3697, %v3781, %v3757
      %v3783 = vsel %vm3696, %v470, %v3780
      %v3784 = vsel %vm3696, 0, %v3782
      %v3785 = vcosq.f32.pop %v3783
      %v3786 = vsinq.f32.pop %v3783
      %vm3787 = vweird.f32 %v470
      %v3788 = vadd.s32 %v3784, 3
      %v3789 = vand.u32 %v3788, 3
      %vm3790 = vcmp.lt.s32.totalorder %v3789, 2
      %vm3791 = vcmp.eq.s32.totalorder %v3789, 0
      %v3792 = vxor.u32 %v3786, 2147483648
      %v3793 = vsel %vm3791, %v3785, %v3792
      %vm3794 = vcmp.eq.s32.totalorder %v3789, 2
      %v3795 = vxor.u32 %v3785, 2147483648
      %v3796 = vsel %vm3794, %v3795, %v3786
      %v3797 = vsel %vm3790, %v3793, %v3796
      %v3798 = vsel %vm3787, nan, %v3797
      %v3799 = vld [vmem:[%s3] sm:$0xff]
      %v3800 = vld [vmem:[%s3 + $0x8] sm:$0xff]
      %v3801 = vld [vmem:[%s3 + $0x10] sm:$0xff]
      %v3802 = vld [vmem:[%s3 + $0x18] sm:$0xff]
      %vm3803 = vcmask 261120
      %v3805 = vsel %vm3803, %v574, 0
      %v3808 = vsel %vm3803, %v678, 0
      %v3811 = vsel %vm3803, %v782, 0
      %v3814 = vsel %vm3803, %v886, 0
      %v3817 = vsel %vm3803, %v990, 0
      %v3820 = vsel %vm3803, %v1094, 0
      %v3823 = vsel %vm3803, %v1198, 0
      %v3826 = vsel %vm3803, %v1302, 0
      %v3829 = vsel %vm3803, %v1406, 0
      %v3832 = vsel %vm3803, %v1510, 0
      %v3835 = vsel %vm3803, %v1614, 0
      %v3838 = vsel %vm3803, %v1718, 0
      %v3841 = vsel %vm3803, %v1822, 0
      %v3844 = vsel %vm3803, %v1926, 0
      %v3847 = vsel %vm3803, %v2030, 0
      %v3850 = vsel %vm3803, %v2134, 0
      %v3853 = vsel %vm3803, %v2238, 0
      %v3856 = vsel %vm3803, %v2342, 0
      %v3859 = vsel %vm3803, %v2446, 0
      %v3862 = vsel %vm3803, %v2550, 0
      %v3865 = vsel %vm3803, %v2654, 0
      %v3868 = vsel %vm3803, %v2758, 0
      %v3871 = vsel %vm3803, %v2862, 0
      %v3874 = vsel %vm3803, %v2966, 0
      %v3877 = vsel %vm3803, %v3070, 0
      %v3880 = vsel %vm3803, %v3174, 0
      %v3883 = vsel %vm3803, %v3278, 0
      %v3886 = vsel %vm3803, %v3382, 0
      %v3889 = vsel %vm3803, %v3486, 0
      %v3892 = vsel %vm3803, %v3590, 0
      %v3895 = vsel %vm3803, %v3694, 0
      %v3898 = vsel %vm3803, %v3798, 0
      %3900 = vmatprep.subr.mxu0 0.0
      %3901 = vmatpush1.msra.mxu0 %v3799
      %3902 = vmatprep.subr.mxu0 0.0
      %3903 = vmatpush1.msra.mxu0 %v3800
      %3904 = vmatprep.subr.mxu0 0.0
      %3905 = vmatpush1.msra.mxu0 %v3801
      %3906 = vmatprep.subr.mxu0 0.0
      %3907 = vmatpush1.msra.mxu0 %v3802
      %3908 = vmatprep.subr.mxu0 0.0
      %3909 = vmatpush1.msra.mxu0 0.0
      %3910 = vmatprep.subr.mxu0 0.0
      %3911 = vmatpush1.msra.mxu0 0.0
      %3912 = vmatprep.subr.mxu0 0.0
      %3913 = vmatpush1.msra.mxu0 0.0
      %3914 = vmatprep.subr.mxu0 0.0
      %3915 = vmatpush1.msra.mxu0 0.0
      %3916 = vmatprep.subr.mxu0 0.0
      %3917 = vmatpush1.msra.mxu0 0.0
      %3918 = vmatprep.subr.mxu0 0.0
      %3919 = vmatpush1.msra.mxu0 0.0
      %3920 = vmatprep.subr.mxu0 0.0
      %3921 = vmatpush1.msra.mxu0 0.0
      %3922 = vmatprep.subr.mxu0 0.0
      %3923 = vmatpush1.msra.mxu0 0.0
      %3924 = vmatprep.subr.mxu0 0.0
      %3925 = vmatpush1.msra.mxu0 0.0
      %3926 = vmatprep.subr.mxu0 0.0
      %3927 = vmatpush1.msra.mxu0 0.0
      %3928 = vmatprep.subr.mxu0 0.0
      %3929 = vmatpush1.msra.mxu0 0.0
      %3930 = vmatprep.subr.mxu0 0.0
      %3931 = vmatpush1.msra.mxu0 0.0
      %3932 = vmatprep.subr.mxu0 0.0
      %3933 = vmatpush1.msra.mxu0 0.0
      %3934 = vmatprep.subr.mxu0 0.0
      %3935 = vmatpush1.msra.mxu0 0.0
      %3936 = vmatprep.subr.mxu0 0.0
      %3937 = vmatpush1.msra.mxu0 0.0
      %3938 = vmatprep.subr.mxu0 0.0
      %3939 = vmatpush1.msra.mxu0 0.0
      %3940 = vmatprep.subr.mxu0 0.0
      %3941 = vmatpush1.msra.mxu0 0.0
      %3942 = vmatprep.subr.mxu0 0.0
      %3943 = vmatpush1.msra.mxu0 0.0
      %3944 = vmatprep.subr.mxu0 0.0
      %3945 = vmatpush1.msra.mxu0 0.0
      %3946 = vmatprep.subr.mxu0 0.0
      %3947 = vmatpush1.msra.mxu0 0.0
      %3948 = vmatprep.subr.mxu0 0.0
      %3949 = vmatpush1.msra.mxu0 0.0
      %3950 = vmatprep.subr.mxu0 0.0
      %3951 = vmatpush1.msra.mxu0 0.0
      %3952 = vmatprep.subr.mxu0 0.0
      %3953 = vmatpush1.msra.mxu0 0.0
      %3954 = vmatprep.subr.mxu0 0.0
      %3955 = vmatpush1.msra.mxu0 0.0
      %3956 = vmatprep.subr.mxu0 0.0
      %3957 = vmatpush1.msra.mxu0 0.0
      %3958 = vmatprep.subr.mxu0 0.0
      %3959 = vmatpush1.msra.mxu0 0.0
      %3960 = vmatprep.subr.mxu0 0.0
      %3961 = vmatpush1.msra.mxu0 0.0
      %3962 = vmatprep.subr.mxu0 0.0
      %3963 = vmatpush1.msra.mxu0 0.0
      %3964 = vmatprep.mubr.f32.mxu0 0.0
      %3965 = vmatmul.mubr.f32.gmra.mrb[0].mxu0 %v3805
      %v3966 = vpop.f32.mrb[0].mxu0
      %v3967 = vadd.f32 0.0, %v3966
      %v3968 = vpop.f32.mrb[0].mxu0
      %3969 = vmatprep.mubr.f32.mxu0 0.0
      %3970 = vmatmul.mubr.f32.gmra.mrb[0].mxu0 %v3808
      %v3971 = vpop.f32.mrb[0].mxu0
      %v3972 = vadd.f32 0.0, %v3971
      %v3973 = vpop.f32.mrb[0].mxu0
      %3974 = vmatprep.mubr.f32.mxu0 0.0
      %3975 = vmatmul.mubr.f32.gmra.mrb[0].mxu0 %v3811
      %v3976 = vpop.f32.mrb[0].mxu0
      %v3977 = vadd.f32 0.0, %v3976
      %v3978 = vpop.f32.mrb[0].mxu0
      %3979 = vmatprep.mubr.f32.mxu0 0.0
      %3980 = vmatmul.mubr.f32.gmra.mrb[0].mxu0 %v3814
      %v3981 = vpop.f32.mrb[0].mxu0
      %v3982 = vadd.f32 0.0, %v3981
      %v3983 = vpop.f32.mrb[0].mxu0
      %3984 = vmatprep.mubr.f32.mxu0 0.0
      %3985 = vmatmul.mubr.f32.gmra.mrb[0].mxu0 %v3817
      %v3986 = vpop.f32.mrb[0].mxu0
      %v3987 = vadd.f32 0.0, %v3986
      %v3988 = vpop.f32.mrb[0].mxu0
      %3989 = vmatprep.mubr.f32.mxu0 0.0
      %3990 = vmatmul.mubr.f32.gmra.mrb[0].mxu0 %v3820
      %v3991 = vpop.f32.mrb[0].mxu0
      %v3992 = vadd.f32 0.0, %v3991
      %v3993 = vpop.f32.mrb[0].mxu0
      %3994 = vmatprep.mubr.f32.mxu0 0.0
      %3995 = vmatmul.mubr.f32.gmra.mrb[0].mxu0 %v3823
      %v3996 = vpop.f32.mrb[0].mxu0
      %v3997 = vadd.f32 0.0, %v3996
      %v3998 = vpop.f32.mrb[0].mxu0
      %3999 = vmatprep.mubr.f32.mxu0 0.0
      %4000 = vmatmul.mubr.f32.gmra.mrb[0].mxu0 %v3826
      %v4001 = vpop.f32.mrb[0].mxu0
      %v4002 = vadd.f32 0.0, %v4001
      %v4003 = vpop.f32.mrb[0].mxu0
      %4004 = vmatprep.mubr.f32.mxu0 0.0
      %4005 = vmatmul.mubr.f32.gmra.mrb[0].mxu0 %v3829
      %v4006 = vpop.f32.mrb[0].mxu0
      %v4007 = vadd.f32 0.0, %v4006
      %v4008 = vpop.f32.mrb[0].mxu0
      %4009 = vmatprep.mubr.f32.mxu0 0.0
      %4010 = vmatmul.mubr.f32.gmra.mrb[0].mxu0 %v3832
      %v4011 = vpop.f32.mrb[0].mxu0
      %v4012 = vadd.f32 0.0, %v4011
      %v4013 = vpop.f32.mrb[0].mxu0
      %4014 = vmatprep.mubr.f32.mxu0 0.0
      %4015 = vmatmul.mubr.f32.gmra.mrb[0].mxu0 %v3835
      %v4016 = vpop.f32.mrb[0].mxu0
      %v4017 = vadd.f32 0.0, %v4016
      %v4018 = vpop.f32.mrb[0].mxu0
      %4019 = vmatprep.mubr.f32.mxu0 0.0
      %4020 = vmatmul.mubr.f32.gmra.mrb[0].mxu0 %v3838
      %v4021 = vpop.f32.mrb[0].mxu0
      %v4022 = vadd.f32 0.0, %v4021
      %v4023 = vpop.f32.mrb[0].mxu0
      %4024 = vmatprep.mubr.f32.mxu0 0.0
      %4025 = vmatmul.mubr.f32.gmra.mrb[0].mxu0 %v3841
      %v4026 = vpop.f32.mrb[0].mxu0
      %v4027 = vadd.f32 0.0, %v4026
      %v4028 = vpop.f32.mrb[0].mxu0
      %4029 = vmatprep.mubr.f32.mxu0 0.0
      %4030 = vmatmul.mubr.f32.gmra.mrb[0].mxu0 %v3844
      %v4031 = vpop.f32.mrb[0].mxu0
      %v4032 = vadd.f32 0.0, %v4031
      %v4033 = vpop.f32.mrb[0].mxu0
      %4034 = vmatprep.mubr.f32.mxu0 0.0
      %4035 = vmatmul.mubr.f32.gmra.mrb[0].mxu0 %v3847
      %v4036 = vpop.f32.mrb[0].mxu0
      %v4037 = vadd.f32 0.0, %v4036
      %v4038 = vpop.f32.mrb[0].mxu0
      %4039 = vmatprep.mubr.f32.mxu0 0.0
      %4040 = vmatmul.mubr.f32.gmra.mrb[0].mxu0 %v3850
      %v4041 = vpop.f32.mrb[0].mxu0
      %v4042 = vadd.f32 0.0, %v4041
      %v4043 = vpop.f32.mrb[0].mxu0
      %4044 = vmatprep.mubr.f32.mxu0 0.0
      %4045 = vmatmul.mubr.f32.gmra.mrb[0].mxu0 %v3853
      %v4046 = vpop.f32.mrb[0].mxu0
      %v4047 = vadd.f32 0.0, %v4046
      %v4048 = vpop.f32.mrb[0].mxu0
      %4049 = vmatprep.mubr.f32.mxu0 0.0
      %4050 = vmatmul.mubr.f32.gmra.mrb[0].mxu0 %v3856
      %v4051 = vpop.f32.mrb[0].mxu0
      %v4052 = vadd.f32 0.0, %v4051
      %v4053 = vpop.f32.mrb[0].mxu0
      %4054 = vmatprep.mubr.f32.mxu0 0.0
      %4055 = vmatmul.mubr.f32.gmra.mrb[0].mxu0 %v3859
      %v4056 = vpop.f32.mrb[0].mxu0
      %v4057 = vadd.f32 0.0, %v4056
      %v4058 = vpop.f32.mrb[0].mxu0
      %4059 = vmatprep.mubr.f32.mxu0 0.0
      %4060 = vmatmul.mubr.f32.gmra.mrb[0].mxu0 %v3862
      %v4061 = vpop.f32.mrb[0].mxu0
      %v4062 = vadd.f32 0.0, %v4061
      %v4063 = vpop.f32.mrb[0].mxu0
      %4064 = vmatprep.mubr.f32.mxu0 0.0
      %4065 = vmatmul.mubr.f32.gmra.mrb[0].mxu0 %v3865
      %v4066 = vpop.f32.mrb[0].mxu0
      %v4067 = vadd.f32 0.0, %v4066
      %v4068 = vpop.f32.mrb[0].mxu0
      %4069 = vmatprep.mubr.f32.mxu0 0.0
      %4070 = vmatmul.mubr.f32.gmra.mrb[0].mxu0 %v3868
      %v4071 = vpop.f32.mrb[0].mxu0
      %v4072 = vadd.f32 0.0, %v4071
      %v4073 = vpop.f32.mrb[0].mxu0
      %4074 = vmatprep.mubr.f32.mxu0 0.0
      %4075 = vmatmul.mubr.f32.gmra.mrb[0].mxu0 %v3871
      %v4076 = vpop.f32.mrb[0].mxu0
      %v4077 = vadd.f32 0.0, %v4076
      %v4078 = vpop.f32.mrb[0].mxu0
      %4079 = vmatprep.mubr.f32.mxu0 0.0
      %4080 = vmatmul.mubr.f32.gmra.mrb[0].mxu0 %v3874
      %v4081 = vpop.f32.mrb[0].mxu0
      %v4082 = vadd.f32 0.0, %v4081
      %v4083 = vpop.f32.mrb[0].mxu0
      %4084 = vmatprep.mubr.f32.mxu0 0.0
      %4085 = vmatmul.mubr.f32.gmra.mrb[0].mxu0 %v3877
      %v4086 = vpop.f32.mrb[0].mxu0
      %v4087 = vadd.f32 0.0, %v4086
      %v4088 = vpop.f32.mrb[0].mxu0
      %4089 = vmatprep.mubr.f32.mxu0 0.0
      %4090 = vmatmul.mubr.f32.gmra.mrb[0].mxu0 %v3880
      %v4091 = vpop.f32.mrb[0].mxu0
      %v4092 = vadd.f32 0.0, %v4091
      %v4093 = vpop.f32.mrb[0].mxu0
      %4094 = vmatprep.mubr.f32.mxu0 0.0
      %4095 = vmatmul.mubr.f32.gmra.mrb[0].mxu0 %v3883
      %v4096 = vpop.f32.mrb[0].mxu0
      %v4097 = vadd.f32 0.0, %v4096
      %v4098 = vpop.f32.mrb[0].mxu0
      %4099 = vmatprep.mubr.f32.mxu0 0.0
      %4100 = vmatmul.mubr.f32.gmra.mrb[0].mxu0 %v3886
      %v4101 = vpop.f32.mrb[0].mxu0
      %v4102 = vadd.f32 0.0, %v4101
      %v4103 = vpop.f32.mrb[0].mxu0
      %4104 = vmatprep.mubr.f32.mxu0 0.0
      %4105 = vmatmul.mubr.f32.gmra.mrb[0].mxu0 %v3889
      %v4106 = vpop.f32.mrb[0].mxu0
      %v4107 = vadd.f32 0.0, %v4106
      %v4108 = vpop.f32.mrb[0].mxu0
      %4109 = vmatprep.mubr.f32.mxu0 0.0
      %4110 = vmatmul.mubr.f32.gmra.mrb[0].mxu0 %v3892
      %v4111 = vpop.f32.mrb[0].mxu0
      %v4112 = vadd.f32 0.0, %v4111
      %v4113 = vpop.f32.mrb[0].mxu0
      %4114 = vmatprep.mubr.f32.mxu0 0.0
      %4115 = vmatmul.mubr.f32.gmra.mrb[0].mxu0 %v3895
      %v4116 = vpop.f32.mrb[0].mxu0
      %v4117 = vadd.f32 0.0, %v4116
      %v4118 = vpop.f32.mrb[0].mxu0
      %4119 = vmatprep.mubr.f32.mxu0 0.0
      %4120 = vmatmul.mubr.f32.gmra.mrb[0].mxu0 %v3898
      %v4121 = vpop.f32.mrb[0].mxu0
      %v4122 = vadd.f32 0.0, %v4121
      %v4123 = vpop.f32.mrb[0].mxu0
      %4124 = vdwg.mxu0
      %4125 = vst.msk [vmem:[%s199] sm:$0xff] %vm3803, %v3967
      %4126 = vst.msk [vmem:[%s199 + $0x8] sm:$0xff] %vm3803, %v3972
      %4127 = vst.msk [vmem:[%s199 + $0x10] sm:$0xff] %vm3803, %v3977
      %4128 = vst.msk [vmem:[%s199 + $0x18] sm:$0xff] %vm3803, %v3982
      %4129 = vst.msk [vmem:[%s199 + $0x20] sm:$0xff] %vm3803, %v3987
      %4130 = vst.msk [vmem:[%s199 + $0x28] sm:$0xff] %vm3803, %v3992
      %4131 = vst.msk [vmem:[%s199 + $0x30] sm:$0xff] %vm3803, %v3997
      %4132 = vst.msk [vmem:[%s199 + $0x38] sm:$0xff] %vm3803, %v4002
      %4133 = vst.msk [vmem:[%s199 + $0x40] sm:$0xff] %vm3803, %v4007
      %4134 = vst.msk [vmem:[%s199 + $0x48] sm:$0xff] %vm3803, %v4012
      %4135 = vst.msk [vmem:[%s199 + $0x50] sm:$0xff] %vm3803, %v4017
      %4136 = vst.msk [vmem:[%s199 + $0x58] sm:$0xff] %vm3803, %v4022
      %4137 = vst.msk [vmem:[%s199 + $0x60] sm:$0xff] %vm3803, %v4027
      %4138 = vst.msk [vmem:[%s199 + $0x68] sm:$0xff] %vm3803, %v4032
      %4139 = vst.msk [vmem:[%s199 + $0x70] sm:$0xff] %vm3803, %v4037
      %4140 = vst.msk [vmem:[%s199 + $0x78] sm:$0xff] %vm3803, %v4042
      %4141 = vst.msk [vmem:[%s199 + $0x80] sm:$0xff] %vm3803, %v4047
      %4142 = vst.msk [vmem:[%s199 + $0x88] sm:$0xff] %vm3803, %v4052
      %4143 = vst.msk [vmem:[%s199 + $0x90] sm:$0xff] %vm3803, %v4057
      %4144 = vst.msk [vmem:[%s199 + $0x98] sm:$0xff] %vm3803, %v4062
      %4145 = vst.msk [vmem:[%s199 + $0xa0] sm:$0xff] %vm3803, %v4067
      %4146 = vst.msk [vmem:[%s199 + $0xa8] sm:$0xff] %vm3803, %v4072
      %4147 = vst.msk [vmem:[%s199 + $0xb0] sm:$0xff] %vm3803, %v4077
      %4148 = vst.msk [vmem:[%s199 + $0xb8] sm:$0xff] %vm3803, %v4082
      %4149 = vst.msk [vmem:[%s199 + $0xc0] sm:$0xff] %vm3803, %v4087
      %4150 = vst.msk [vmem:[%s199 + $0xc8] sm:$0xff] %vm3803, %v4092
      %4151 = vst.msk [vmem:[%s199 + $0xd0] sm:$0xff] %vm3803, %v4097
      %4152 = vst.msk [vmem:[%s199 + $0xd8] sm:$0xff] %vm3803, %v4102
      %4153 = vst.msk [vmem:[%s199 + $0xe0] sm:$0xff] %vm3803, %v4107
      %4154 = vst.msk [vmem:[%s199 + $0xe8] sm:$0xff] %vm3803, %v4112
      %4155 = vst.msk [vmem:[%s199 + $0xf0] sm:$0xff] %vm3803, %v4117
      %4156 = vst.msk [vmem:[%s199 + $0xf8] sm:$0xff] %vm3803, %v4122
      %s4157 = smul.u32 32, %s15
      %p4158 = scmp.lt.s32.totalorder %s4157, 63
      %s4159 = scalar_select %p4158, %s4157, 63
      %s4160 = smul.addr %s4159, 8
      %s4161 = scalar_lea.vmem %s4, %s4160
      // Predicated region
      $region37: #{tpu_custom_call.1} parent=35 // pred_check
        %p4162 = pneg %p122
      $region38: #{tpu_custom_call.1} parent=35 // pred_check_branch
        %4164 = sbr.rel (%p4162) target = $region40
      $region39: #{tpu_custom_call.1} parent=35 // pred_region
        %s4165 = smul.u32 32, %s15
      $region40: #{tpu_custom_call.1} parent=35 // pred_fallthru
        _
    $region36: #{tpu_custom_call.1} parent=5 // pred_fallthru
      _
    %p4166 = scmp.le.s32.totalorder 2, %s10
    // Predicated region
    $region41: #{tpu_custom_call.1} parent=5 // pred_check
      %p4167 = pneg %p4166
    $region42: #{tpu_custom_call.1} parent=5 // pred_check_branch
      %4169 = sbr.rel (%p4167) target = $region44
    $region43: #{tpu_custom_call.1} parent=5 // pred_region
      %s4170 = ssub.s32 %s10, 2
      // Predicated region
      $region45: #{tpu_custom_call.1} parent=43 // pred_check
        %p4171 = pneg %p128
      $region46: #{tpu_custom_call.1} parent=43 // pred_check_branch
        %4173 = sbr.rel (%p4171) target = $region48
      $region47: #{tpu_custom_call.1} parent=43 // pred_region
        %s4174 = smul.u32 32, %s16
        %p4175 = scmp.lt.s32.totalorder %s4174, 63
        %s4176 = scalar_select %p4175, %s4174, 63
        %s4177 = smul.addr %s4176, 8
        %s4178 = scalar_lea.vmem %s4, %s4177
      $region48: #{tpu_custom_call.1} parent=43 // pred_fallthru
        _
    $region44: #{tpu_custom_call.1} parent=5 // pred_fallthru
      _
  $region6: #{tpu_custom_call.1} parent=0 // loop_footer
    %s14 = sadd.s32 1, %s10
  $region7: #{tpu_custom_call.1} parent=0 // loop_footer_branch
    %9 = sbr.rel target = $region3
  $region8: #{tpu_custom_call.1} parent=0 // loop_exit
    _

</llo_original>
